<compile_context>
chip_gen: v7x
topology: tpu7x:2x2x1
jax: 0.10.0
libtpu: 0.0.40
codegen_flags: <defaults>
</compile_context>

<pallas_src>
import functools

import numpy as np
import jax
import jax.numpy as jnp
from jax import lax
from jax.experimental import pallas as pl
from jax.experimental.pallas import tpu as pltpu

_EPS = 1e-7
_BALL_EPS = 1e-5


def _artanh(z):
    # 0.5*log((1+z)/(1-z)) in a divide-free, log1p-stable form.
    return 0.5 * (jnp.log1p(z) - jnp.log1p(-z))


def _dot_nt(a, b):
    # a @ b.T without materializing a transpose (contract last dims) -> MXU.
    return lax.dot_general(a, b, (((1,), (1,)), ((), ())),
                           preferred_element_type=jnp.float32)


def _acosh1p(t):
    # acosh(1 + t), stable for t -> 0 (positive-pair regime).
    return jnp.log1p(t + jnp.sqrt(t * (t + 2.0)))


# ----------------------------- Pallas kernels ------------------------------

def _hyp_linear_kernel(x_ref, w_ref, b_ref, o_ref, *, c_in, c_out):
    """HypLinear: logmap0_{c_in}(x) @ W^T + b -> expmap0_{c_out} -> proj."""
    x = x_ref[...].astype(jnp.float32)
    sc_in = np.float32(np.sqrt(c_in))
    sc_out = np.float32(np.sqrt(c_out))
    inv_sc_in = np.float32(1.0 / np.sqrt(c_in))
    inv_sc_out = np.float32(1.0 / np.sqrt(c_out))
    maxnorm = np.float32((1.0 - _BALL_EPS) / np.sqrt(c_out))

    xn = jnp.sqrt(jnp.maximum(jnp.sum(x * x, axis=-1, keepdims=True), _EPS))
    z = jnp.clip(sc_in * xn, _EPS, 1.0 - _BALL_EPS)
    # tangent space at origin:  x * artanh(sqrt(c_in)*|x|) / (sqrt(c_in)*|x|)
    u = x * (_artanh(z) * inv_sc_in * pl.reciprocal(xn, approx=True))

    v = _dot_nt(u, w_ref[...]) + b_ref[...]             # MXU: u @ W^T + b

    vn = jnp.sqrt(jnp.maximum(jnp.sum(v * v, axis=-1, keepdims=True), _EPS))
    # expmap0 at target curvature
    y = v * (jnp.tanh(sc_out * vn) * inv_sc_out * pl.reciprocal(vn, approx=True))

    # project back inside the Poincare ball of radius (1 - eps)/sqrt(c_out)
    yn = jnp.sqrt(jnp.maximum(jnp.sum(y * y, axis=-1, keepdims=True), _EPS))
    o_ref[...] = jnp.where(yn > maxnorm,
                           y * (maxnorm * pl.reciprocal(yn, approx=True)),
                           y)


def _pairwise_sig_sqdist_kernel(zi_ref, zj_ref, jn2_ref, o_ref, *, curves, temp):
    """O[b,p,q] = 2*sigmoid(-sqdist_{c_b}(z_i[b,p], z_j[b,q]) / temp).

    Leading grid axis = transfer direction; curvature is a compile-time
    constant selected from pl.program_id(0) (no extra input traffic).
    """
    cf = np.float32(curves[0])
    for idx in range(1, len(curves)):
        cf = jnp.where(pl.program_id(0) == idx, np.float32(curves[idx]), cf)
    inv_sqrt_c = lax.rsqrt(jnp.maximum(cf, _EPS))
    inv_temp = np.float32(1.0 / temp)

    x = zi_ref[0].astype(jnp.float32)        # (TL, D)
    y = zj_ref[0].astype(jnp.float32)        # (TL, D)
    yn2 = jn2_ref[0]                         # (1, TL) lane-dense row norms^2

    xn2 = jnp.sum(x * x, axis=-1, keepdims=True)           # (TL, 1)
    g = _dot_nt(x, y)                                       # MXU: x @ y^T

    d2 = jnp.maximum(xn2 + yn2 - 2.0 * g, 0.0)
    denom = jnp.maximum((1.0 - cf * xn2) * (1.0 - cf * yn2), _EPS)
    t = jnp.maximum(2.0 * cf * d2 * pl.reciprocal(denom, approx=True), _EPS)
    dist = _acosh1p(t) * inv_sqrt_c
    o_ref[0] = 2.0 * jax.nn.sigmoid(-(dist * dist) * inv_temp)


def _rowwise_sig_dist_kernel(at_ref, bt_ref, c_ref, o_ref, *, temp):
    """Lane-dense row-wise distances with per-pair curvature.

    O[0,m] = 2*sigmoid(-hyper_dist_{c[m]}(a_m, b_m)) / temp.
    Inputs are transposed to (D, M) so per-pair reductions land on the lane
    axis and the output store is a dense (1, M) slab (no masked vst).
    """
    a = at_ref[...].astype(jnp.float32)      # (D, TC)
    b = bt_ref[...].astype(jnp.float32)      # (D, TC)
    cf = c_ref[...]                          # (1, TC) per-pair curvature
    inv_temp2 = np.float32(2.0 / temp)

    an2 = jnp.sum(a * a, axis=0, keepdims=True)             # (1, TC)
    bn2 = jnp.sum(b * b, axis=0, keepdims=True)             # (1, TC)
    diff = a - b
    d2 = jnp.sum(diff * diff, axis=0, keepdims=True)        # (1, TC)
    denom = jnp.maximum((1.0 - cf * an2) * (1.0 - cf * bn2), _EPS)
    t = jnp.maximum(2.0 * cf * d2 * pl.reciprocal(denom, approx=True), _EPS)
    dist = _acosh1p(t) * lax.rsqrt(jnp.maximum(cf, _EPS))
    o_ref[...] = inv_temp2 * jax.nn.sigmoid(-dist)


# ----------------------------- Pallas wrappers ------------------------------

def hyp_linear(x, w, b, c_in, c_out, tm=512):
    """Apply HypLinear to all rows of x ([n, d]) with big row tiles."""
    n, d = x.shape
    if n <= tm:
        n_pad, tm_eff = n, n                       # single full-array block
        xp = x
    else:
        tm_eff = tm
        n_pad = ((n + tm - 1) // tm) * tm
        xp = jnp.pad(x, ((0, n_pad - n), (0, 0))) if n_pad != n else x
    kernel = functools.partial(_hyp_linear_kernel, c_in=float(c_in), c_out=float(c_out))
    out = pl.pallas_call(
        kernel,
        out_shape=jax.ShapeDtypeStruct((n_pad, d), jnp.float32),
        grid=(n_pad // tm_eff,),
        in_specs=[pl.BlockSpec((tm_eff, d), lambda i: (i, 0)),
                  pl.BlockSpec((d, d), lambda i: (0, 0)),
                  pl.BlockSpec((1, d), lambda i: (0, 0))],
        out_specs=pl.BlockSpec((tm_eff, d), lambda i: (i, 0)),
        compiler_params=pltpu.CompilerParams(dimension_semantics=("parallel",)),
    )(xp, w, b.reshape(1, d))
    return out[:n] if n_pad != n else out


def batched_pairwise_sig_sqdist(z_i, z_j, curves, temp, tl=512):
    """z_i, z_j: (B, L, D). Returns (B, L, L) of 2*sigmoid(-sqdist_{c_b}/temp)."""
    bsz, l, d = z_i.shape
    if l <= tl:
        lp, tl_eff = l, l
        zi_p, zj_p = z_i, z_j
    else:
        tl_eff = tl
        lp = ((l + tl - 1) // tl) * tl
        zi_p = jnp.pad(z_i, ((0, 0), (0, lp - l), (0, 0)))
        zj_p = jnp.pad(z_j, ((0, 0), (0, lp - l), (0, 0)))
    # Precompute ||z_j||^2 once as a lane-dense (B, 1, L) input (no ones-matmul,
    # no in-kernel relayout of a (TL,1) column to a (1,TL) row).
    jn2 = jnp.sum(zj_p * zj_p, axis=-1)[:, None, :]
    kernel = functools.partial(_pairwise_sig_sqdist_kernel,
                               curves=tuple(float(c) for c in curves),
                               temp=float(temp))
    out = pl.pallas_call(
        kernel,
        out_shape=jax.ShapeDtypeStruct((bsz, lp, lp), jnp.float32),
        grid=(bsz, lp // tl_eff, lp // tl_eff),
        in_specs=[pl.BlockSpec((1, tl_eff, d), lambda b, i, j: (b, i, 0)),
                  pl.BlockSpec((1, tl_eff, d), lambda b, i, j: (b, j, 0)),
                  pl.BlockSpec((1, 1, tl_eff), lambda b, i, j: (b, 0, j))],
        out_specs=pl.BlockSpec((1, tl_eff, tl_eff), lambda b, i, j: (b, i, j)),
        compiler_params=pltpu.CompilerParams(
            dimension_semantics=("parallel", "parallel", "parallel")),
    )(zi_p, zj_p, jn2)
    return out[:, :l, :l] if lp != l else out


def rowwise_sig_dist(a, b, cvec, temp, tc=1024):
    """Row-wise 2*sigmoid(-hyper_dist_{cvec[m]}(a_m, b_m))/temp -> (M,), lane-dense."""
    m, d = a.shape
    at = a.T                                      # (d, m): pair index on lanes
    bt = b.T
    cv = cvec.reshape(1, m).astype(jnp.float32)
    if m <= tc:
        mp, tc_eff = m, m
    else:
        tc_eff = tc
        mp = ((m + tc - 1) // tc) * tc
        at = jnp.pad(at, ((0, 0), (0, mp - m)))
        bt = jnp.pad(bt, ((0, 0), (0, mp - m)))
        cv = jnp.pad(cv, ((0, 0), (0, mp - m)), constant_values=1.0)
    kernel = functools.partial(_rowwise_sig_dist_kernel, temp=float(temp))
    out = pl.pallas_call(
        kernel,
        out_shape=jax.ShapeDtypeStruct((1, mp), jnp.float32),
        grid=(mp // tc_eff,),
        in_specs=[pl.BlockSpec((d, tc_eff), lambda i: (0, i)),
                  pl.BlockSpec((d, tc_eff), lambda i: (0, i)),
                  pl.BlockSpec((1, tc_eff), lambda i: (0, i))],
        out_specs=pl.BlockSpec((1, tc_eff), lambda i: (0, i)),
        compiler_params=pltpu.CompilerParams(dimension_semantics=("parallel",)),
    )(at, bt, cv)
    return out[0, :m]


def _ce_label0(logits):
    # nn.CrossEntropyLoss with all labels == 0, reduction='mean'
    return jnp.mean(jax.nn.logsumexp(logits, axis=1) - logits[:, 0])


# ------------------------------- Module -------------------------------------

class HyperbolicGraphHyperbolicContrastive:
    def __init__(self, latent_dim, source_curve, target_curve, num_lapped_users,
                 temp, cts_lamda, num_source_u, num_source_i, num_target_u,
                 num_target_i, num_neg_samples, config, key):
        self.latent_dim = latent_dim
        self.source_curve = float(source_curve)
        self.target_curve = float(target_curve)
        self.num_lapped_users = num_lapped_users
        self.temp = float(temp)
        self.cts_lamda = float(cts_lamda)
        self.num_source_u = num_source_u
        self.num_source_i = num_source_i
        self.num_target_u = num_target_u
        self.num_target_i = num_target_i
        self.num_neg_samples = num_neg_samples
        self.config = config

        ks = jax.random.split(key, 4)

        def init_lin(k):
            w = jax.random.normal(k, (latent_dim, latent_dim), jnp.float32) / np.sqrt(latent_dim)
            b = jnp.zeros((latent_dim,), jnp.float32)
            return w, b

        # Same curvature wiring as the reference __init__ (t2s uses (source, target)).
        self.s2t = init_lin(ks[0])   # (c_in=source, c_out=target)
        self.t2s = init_lin(ks[1])   # (c_in=source, c_out=target)  [as in reference]
        self.t2t = init_lin(ks[2])   # (c_in=target, c_out=target)
        self.s2s = init_lin(ks[3])   # (c_in=source, c_out=source)

        self.sample_key = jax.random.PRNGKey(config['seed'])

        # One jit for the whole forward (4 fused linears + 1 fused pairwise +
        # 1 fused rowwise distance kernel); only the data-dependent jnp.unique
        # stays eager.  Retraces per overlap size.
        self._forward_jit = jax.jit(self._forward_impl)

    # TODO(synk): DGL graph construction + neighbor / uniform-negative sampling
    # (generate_graph, generate_graph_neg, dgl.sampling.*) have no Pallas/JAX
    # equivalent here; replaced by deterministic synthetic index sampling.
    def graph_sample(self, overlap_user_id):
        L = int(overlap_user_id.shape[0])
        ks = jax.random.split(self.sample_key, 4)
        source_pos_u = overlap_user_id
        target_pos_u = overlap_user_id
        source_pos_i = jax.random.randint(ks[0], (L,), 0, self.num_source_i)
        target_pos_i = jax.random.randint(ks[1], (L,), 0, self.num_target_i)
        source_neg_u = jnp.repeat(overlap_user_id, self.num_neg_samples)
        target_neg_u = jnp.repeat(overlap_user_id, self.num_neg_samples)
        source_neg_i = jax.random.randint(ks[2], (L * self.num_neg_samples,), 0, self.num_source_i)
        target_neg_i = jax.random.randint(ks[3], (L * self.num_neg_samples,), 0, self.num_target_i)
        return (source_pos_u, source_pos_i, source_neg_u, source_neg_i,
                target_pos_u, target_pos_i, target_neg_u, target_neg_i)

    # -------- jitted core (everything except the data-dependent unique) --------
    def _forward_impl(self, source_user_all, source_item_all, target_user_all,
                      target_item_all, overlap_user_id):
        cfg = self.config
        if not (cfg['s_t_transfer'] or cfg['t_s_transfer']):
            return None

        n_su = source_user_all.shape[0]
        n_tu = target_user_all.shape[0]

        # .clone().detach() == stop_gradient in the forward pass
        src_transfer = jnp.concatenate([lax.stop_gradient(source_user_all),
                                        lax.stop_gradient(source_item_all)], axis=0)
        tgt_transfer = jnp.concatenate([lax.stop_gradient(target_user_all),
                                        lax.stop_gradient(target_item_all)], axis=0)
        src_stack = jnp.concatenate([source_user_all, source_item_all], axis=0)
        tgt_stack = jnp.concatenate([target_user_all, target_item_all], axis=0)

        # 4 fused HypLinear calls instead of 8 (user+item share the weight).
        st = hyp_linear(src_transfer, *self.s2t, self.source_curve, self.target_curve)
        ts = hyp_linear(tgt_transfer, *self.t2s, self.source_curve, self.target_curve)
        ss = hyp_linear(src_stack, *self.s2s, self.source_curve, self.source_curve)
        tt = hyp_linear(tgt_stack, *self.t2t, self.target_curve, self.target_curve)

        s_t_user, s_t_item = st[:n_su], st[n_su:]
        t_s_user, t_s_item = ts[:n_tu], ts[n_tu:]
        s_s_user, s_s_item = ss[:n_su], ss[n_su:]
        t_t_user, t_t_item = tt[:n_tu], tt[n_tu:]

        # Single deterministic sample reused by every u-i / i-u / i-i loss
        # (reference resamples per loss; our synthetic sampler is deterministic
        # per forward, so hoisting it is result-identical and trace-smaller).
        (spu, spi, snu, sni, tpu_, tpi, tnu, tni) = self.graph_sample(overlap_user_id)
        K = self.num_neg_samples

        uu_pairs = []   # (z_i, z_j, curvature)
        dist_jobs = []  # (pos_a, pos_b, neg_a, neg_b, curvature)

        if cfg['s_t_transfer']:
            c = self.target_curve
            if cfg['u_u_cts']:
                uu_pairs.append((s_t_user[overlap_user_id], t_t_user[overlap_user_id], c))
            if cfg['u_i_cts']:   # 'su-ti', domain 'target'
                dist_jobs.append((s_t_user[spu], t_t_item[tpi],
                                  s_t_user[snu], t_t_item[tni], c))
            if cfg['i_u_cts']:   # 'si-tu', domain 'target'
                dist_jobs.append((t_t_user[tpu_], s_t_item[spi],
                                  t_t_user[tnu], s_t_item[sni], c))
            if cfg['i_i_cts']:   # 'si-ti': source_i_all=t_t_item, target_i_all=s_t_item
                s_ii_neg = jnp.repeat(spi, K)
                dist_jobs.append((t_t_item[spi], s_t_item[tpi],
                                  t_t_item[s_ii_neg], s_t_item[tni], c))

        if cfg['t_s_transfer']:
            c = self.source_curve
            if cfg['u_u_cts']:
                uu_pairs.append((t_s_user[overlap_user_id], s_s_user[overlap_user_id], c))
            if cfg['u_i_cts']:   # 'tu-si', domain 'source'
                dist_jobs.append((t_s_user[tpu_], s_s_item[spi],
                                  t_s_user[tnu], s_s_item[sni], c))
            if cfg['i_u_cts']:   # 'ti-su', domain 'source'
                dist_jobs.append((s_s_user[spu], t_s_item[tpi],
                                  s_s_user[snu], t_s_item[tni], c))
            if cfg['i_i_cts']:   # 'ti-si': source_i_all=s_s_item, target_i_all=t_s_item
                t_ii_neg = jnp.repeat(tpi, K)
                dist_jobs.append((t_s_item[tpi], s_s_item[spi],
                                  t_s_item[t_ii_neg], s_s_item[sni], c))

        total = jnp.float32(0.0)

        # ---- u_u losses: one batched pairwise kernel for both directions ----
        if uu_pairs:
            zi_b = jnp.stack([p[0] for p in uu_pairs], axis=0)
            zj_b = jnp.stack([p[1] for p in uu_pairs], axis=0)
            curves = [p[2] for p in uu_pairs]
            hyper = batched_pairwise_sig_sqdist(zi_b, zj_b, curves, self.temp)
            # logits = [diag (positive), off-diag (negatives)]; CE with label 0
            # == logsumexp(row) - diag (logsumexp is permutation invariant).
            for bi in range(len(uu_pairs)):
                h = hyper[bi]
                total = total + jnp.mean(jax.nn.logsumexp(h, axis=1) - jnp.diagonal(h))

        # ---- u-i / i-u / i-i losses: ONE fused lane-dense rowwise kernel ----
        if dist_jobs:
            a_parts, b_parts, c_parts, seg_sizes = [], [], [], []
            for (pa, pb, na, nb, c) in dist_jobs:
                a_parts += [pa, na]
                b_parts += [pb, nb]
                c_parts += [jnp.full((pa.shape[0],), c, jnp.float32),
                            jnp.full((na.shape[0],), c, jnp.float32)]
                seg_sizes.append((pa.shape[0], na.shape[0]))
            a_all = jnp.concatenate(a_parts, axis=0)
            b_all = jnp.concatenate(b_parts, axis=0)
            c_all = jnp.concatenate(c_parts, axis=0)
            dist = rowwise_sig_dist(a_all, b_all, c_all, self.temp)    # (M,)

            off = 0
            for (lp_, ln_) in seg_sizes:
                pos = dist[off:off + lp_]
                off += lp_
                neg = dist[off:off + ln_].reshape(lp_, -1)
                off += ln_
                dm = jnp.concatenate([pos[:, None], neg], axis=1)
                total = total + _ce_label0(dm)

        return self.cts_lamda * total

    def forward(self, source_user_all, source_item_all, target_user_all, target_item_all,
                batch_source_u, batch_source_i, batch_target_u, batch_target_i):
        # Data-dependent unique stays eager (dynamic output size); the rest is jitted.
        overlap_user_id = jnp.unique(jnp.concatenate([
            batch_source_u[batch_source_u < self.num_lapped_users],
            batch_target_u[batch_target_u < self.num_lapped_users]]))
        return self._forward_jit(source_user_all, source_item_all,
                                 target_user_all, target_item_all, overlap_user_id)


# --------------------------------- Demo --------------------------------------

if __name__ == "__main__":
    D = 32
    num_lapped_users = 16
    num_source_u = num_target_u = 64
    num_source_i = num_target_i = 48
    config = dict(seed=0, num_neg_samples=4,
                  u_u_cts=True, u_i_cts=True, i_u_cts=True, i_i_cts=True,
                  s_t_transfer=True, t_s_transfer=True)

    module = HyperbolicGraphHyperbolicContrastive(
        latent_dim=D, source_curve=1.0, target_curve=0.5,
        num_lapped_users=num_lapped_users, temp=0.5, cts_lamda=0.1,
        num_source_u=num_source_u, num_source_i=num_source_i,
        num_target_u=num_target_u, num_target_i=num_target_i,
        num_neg_samples=4, config=config, key=jax.random.PRNGKey(0))

    k = jax.random.split(jax.random.PRNGKey(0), 9)
    # Small-norm points so inputs lie inside both Poincare balls.
    src_u_emb = 0.05 * jax.random.normal(k[1], (num_source_u, D), jnp.float32)
    src_i_emb = 0.05 * jax.random.normal(k[2], (num_source_i, D), jnp.float32)
    tgt_u_emb = 0.05 * jax.random.normal(k[3], (num_target_u, D), jnp.float32)
    tgt_i_emb = 0.05 * jax.random.normal(k[4], (num_target_i, D), jnp.float32)

    batch_source_u = jax.random.randint(k[5], (32,), 1, num_source_u)
    batch_source_i = jax.random.randint(k[6], (32,), 1, num_source_i)
    batch_target_u = jax.random.randint(k[7], (32,), 1, num_target_u)
    batch_target_i = jax.random.randint(k[8], (32,), 1, num_target_i)

    loss = module.forward(src_u_emb, src_i_emb, tgt_u_emb, tgt_i_emb,
                          batch_source_u, batch_source_i, batch_target_u, batch_target_i)
    jax.block_until_ready(loss)
    assert jnp.isfinite(loss), loss
    print("KERNEL_OK")
</pallas_src>

<mosaic_0001>
module attributes {stable_mosaic.version = 11 : i64} {
  func.func @_hyp_linear_kernel(%arg0: i32, %arg1: memref<112x32xf32, #tpu.memory_space<vmem>>, %arg2: memref<32x32xf32, #tpu.memory_space<vmem>>, %arg3: memref<1x32xf32, #tpu.memory_space<vmem>>, %arg4: memref<112x32xf32, #tpu.memory_space<vmem>>) attributes {dimension_semantics = [#tpu.dimension_semantics<parallel>], iteration_bounds = array<i64: 1>, scalar_prefetch = 0 : i64, scratch_operands = 0 : i64, tpu.core_type = #tpu.core_type<tc>, window_params = [{transform_indices = @transform_0, window_bounds = array<i64: 112, 32>}, {pipeline_mode = #tpu.pipeline_mode<synchronous>, transform_indices = @transform_1, window_bounds = array<i64: 32, 32>}, {pipeline_mode = #tpu.pipeline_mode<synchronous>, transform_indices = @transform_2, window_bounds = array<i64: 1, 32>}, {transform_indices = @transform_3, window_bounds = array<i64: 112, 32>}]} {
    %c0 = arith.constant 0 : index
    %c0_0 = arith.constant 0 : index
    %0 = vector.load %arg1[%c0, %c0_0] : memref<112x32xf32, #tpu.memory_space<vmem>>, vector<112x32xf32>
    %1 = arith.mulf %0, %0 : vector<112x32xf32>
    %cst = arith.constant dense<0.000000e+00> : vector<112xf32>
    %2 = vector.multi_reduction <add>, %1, %cst [1] : vector<112x32xf32> to vector<112xf32>
    %3 = vector.shape_cast %2 : vector<112xf32> to vector<112x1xf32>
    %cst_1 = arith.constant 1.000000e-07 : f32
    %4 = vector.broadcast %cst_1 : f32 to vector<112x1xf32>
    %5 = arith.maximumf %3, %4 : vector<112x1xf32>
    %6 = math.sqrt %5 : vector<112x1xf32>
    %cst_2 = arith.constant 1.000000e+00 : f32
    %7 = vector.broadcast %cst_2 : f32 to vector<112x1xf32>
    %8 = arith.mulf %7, %6 : vector<112x1xf32>
    %cst_3 = arith.constant 1.000000e-07 : f32
    %cst_4 = arith.constant 0.999989986 : f32
    %9 = vector.broadcast %cst_3 : f32 to vector<112x1xf32>
    %10 = arith.maximumf %9, %8 : vector<112x1xf32>
    %11 = vector.broadcast %cst_4 : f32 to vector<112x1xf32>
    %12 = arith.minimumf %11, %10 : vector<112x1xf32>
    %13 = math.log1p %12 : vector<112x1xf32>
    %cst_5 = arith.constant 0.000000e+00 : f32
    %14 = vector.broadcast %cst_5 : f32 to vector<112x1xf32>
    %15 = arith.subf %14, %12 : vector<112x1xf32>
    %16 = math.log1p %15 : vector<112x1xf32>
    %17 = arith.subf %13, %16 : vector<112x1xf32>
    %cst_6 = arith.constant 5.000000e-01 : f32
    %18 = vector.broadcast %cst_6 : f32 to vector<112x1xf32>
    %19 = arith.mulf %18, %17 : vector<112x1xf32>
    %cst_7 = arith.constant 1.000000e+00 : f32
    %20 = vector.broadcast %cst_7 : f32 to vector<112x1xf32>
    %21 = arith.mulf %19, %20 : vector<112x1xf32>
    %22 = tpu.reciprocal %6 {approx = true} : vector<112x1xf32> -> vector<112x1xf32>
    %23 = arith.mulf %21, %22 : vector<112x1xf32>
    %24 = vector.broadcast %23 : vector<112x1xf32> to vector<112x32xf32>
    %25 = arith.mulf %0, %24 : vector<112x32xf32>
    %c0_8 = arith.constant 0 : index
    %c0_9 = arith.constant 0 : index
    %26 = vector.load %arg2[%c0_8, %c0_9] : memref<32x32xf32, #tpu.memory_space<vmem>>, vector<32x32xf32>
    %cst_10 = arith.constant dense<0.000000e+00> : vector<112x32xf32>
    %27 = tpu.matmul %25, %26, %cst_10 {dimension_numbers = #tpu.dot_dimension_numbers<[1], [1], [0], [0], [0, 0, 1, 0], [], []>} : vector<112x32xf32>, vector<32x32xf32>, vector<112x32xf32> -> vector<112x32xf32>
    %c0_11 = arith.constant 0 : index
    %c0_12 = arith.constant 0 : index
    %28 = vector.load %arg3[%c0_11, %c0_12] : memref<1x32xf32, #tpu.memory_space<vmem>>, vector<1x32xf32>
    %29 = vector.broadcast %28 : vector<1x32xf32> to vector<112x32xf32>
    %30 = arith.addf %27, %29 : vector<112x32xf32>
    %31 = arith.mulf %30, %30 : vector<112x32xf32>
    %cst_13 = arith.constant dense<0.000000e+00> : vector<112xf32>
    %32 = vector.multi_reduction <add>, %31, %cst_13 [1] : vector<112x32xf32> to vector<112xf32>
    %33 = vector.shape_cast %32 : vector<112xf32> to vector<112x1xf32>
    %cst_14 = arith.constant 1.000000e-07 : f32
    %34 = vector.broadcast %cst_14 : f32 to vector<112x1xf32>
    %35 = arith.maximumf %33, %34 : vector<112x1xf32>
    %36 = math.sqrt %35 : vector<112x1xf32>
    %cst_15 = arith.constant 1.000000e+00 : f32
    %37 = vector.broadcast %cst_15 : f32 to vector<112x1xf32>
    %38 = arith.mulf %37, %36 : vector<112x1xf32>
    %39 = math.tanh %38 : vector<112x1xf32>
    %cst_16 = arith.constant 1.000000e+00 : f32
    %40 = vector.broadcast %cst_16 : f32 to vector<112x1xf32>
    %41 = arith.mulf %39, %40 : vector<112x1xf32>
    %42 = tpu.reciprocal %36 {approx = true} : vector<112x1xf32> -> vector<112x1xf32>
    %43 = arith.mulf %41, %42 : vector<112x1xf32>
    %44 = vector.broadcast %43 : vector<112x1xf32> to vector<112x32xf32>
    %45 = arith.mulf %30, %44 : vector<112x32xf32>
    %46 = arith.mulf %45, %45 : vector<112x32xf32>
    %cst_17 = arith.constant dense<0.000000e+00> : vector<112xf32>
    %47 = vector.multi_reduction <add>, %46, %cst_17 [1] : vector<112x32xf32> to vector<112xf32>
    %48 = vector.shape_cast %47 : vector<112xf32> to vector<112x1xf32>
    %cst_18 = arith.constant 1.000000e-07 : f32
    %49 = vector.broadcast %cst_18 : f32 to vector<112x1xf32>
    %50 = arith.maximumf %48, %49 : vector<112x1xf32>
    %51 = math.sqrt %50 : vector<112x1xf32>
    %cst_19 = arith.constant 0.999989986 : f32
    %52 = vector.broadcast %cst_19 : f32 to vector<112x1xf32>
    %53 = arith.cmpf ogt, %51, %52 : vector<112x1xf32>
    %54 = tpu.reciprocal %51 {approx = true} : vector<112x1xf32> -> vector<112x1xf32>
    %cst_20 = arith.constant 0.999989986 : f32
    %55 = vector.broadcast %cst_20 : f32 to vector<112x1xf32>
    %56 = arith.mulf %55, %54 : vector<112x1xf32>
    %57 = vector.broadcast %56 : vector<112x1xf32> to vector<112x32xf32>
    %58 = arith.mulf %45, %57 : vector<112x32xf32>
    %59 = vector.shape_cast %53 : vector<112x1xi1> to vector<112x1xi1>
    %60 = vector.broadcast %59 : vector<112x1xi1> to vector<112x32xi1>
    %61 = arith.select %60, %58, %45 : vector<112x32xi1>, vector<112x32xf32>
    %c0_21 = arith.constant 0 : index
    %c0_22 = arith.constant 0 : index
    %62 = vector.load %arg4[%c0_21, %c0_22] : memref<112x32xf32, #tpu.memory_space<vmem>>, vector<112x32xf32>
    tpu.vector_store %arg4[%c0_21, %c0_22], %61 {strides = array<i32>} : memref<112x32xf32, #tpu.memory_space<vmem>>, vector<112x32xf32>,
    return
  }
  func.func @transform_0(%arg0: i32) -> (i32, i32) {
    %c0_i32 = arith.constant 0 : i32
    %c0_i32_0 = arith.constant 0 : i32
    return %arg0, %c0_i32 : i32, i32
  }
  func.func @transform_1(%arg0: i32) -> (i32, i32) {
    %c0_i32 = arith.constant 0 : i32
    %c0_i32_0 = arith.constant 0 : i32
    %c0_i32_1 = arith.constant 0 : i32
    return %c0_i32, %c0_i32_0 : i32, i32
  }
  func.func @transform_2(%arg0: i32) -> (i32, i32) {
    %c0_i32 = arith.constant 0 : i32
    %c0_i32_0 = arith.constant 0 : i32
    %c0_i32_1 = arith.constant 0 : i32
    return %c0_i32, %c0_i32_0 : i32, i32
  }
  func.func @transform_3(%arg0: i32) -> (i32, i32) {
    %c0_i32 = arith.constant 0 : i32
    %c0_i32_0 = arith.constant 0 : i32
    return %arg0, %c0_i32 : i32, i32
  }
}

module attributes {stable_mosaic.version = 11 : i64} {
  func.func @_hyp_linear_kernel(%arg0: i32, %arg1: memref<112x32xf32, #tpu.memory_space<vmem>>, %arg2: memref<32x32xf32, #tpu.memory_space<vmem>>, %arg3: memref<1x32xf32, #tpu.memory_space<vmem>>, %arg4: memref<112x32xf32, #tpu.memory_space<vmem>>) attributes {dimension_semantics = [#tpu.dimension_semantics<parallel>], iteration_bounds = array<i64: 1>, scalar_prefetch = 0 : i64, scratch_operands = 0 : i64, tpu.core_type = #tpu.core_type<tc>, window_params = [{transform_indices = @transform_0, window_bounds = array<i64: 112, 32>}, {pipeline_mode = #tpu.pipeline_mode<synchronous>, transform_indices = @transform_1, window_bounds = array<i64: 32, 32>}, {pipeline_mode = #tpu.pipeline_mode<synchronous>, transform_indices = @transform_2, window_bounds = array<i64: 1, 32>}, {transform_indices = @transform_3, window_bounds = array<i64: 112, 32>}]} {
    %c0 = arith.constant 0 : index
    %c0_0 = arith.constant 0 : index
    %0 = vector.load %arg1[%c0, %c0_0] : memref<112x32xf32, #tpu.memory_space<vmem>>, vector<112x32xf32>
    %1 = arith.mulf %0, %0 : vector<112x32xf32>
    %cst = arith.constant dense<0.000000e+00> : vector<112xf32>
    %2 = vector.multi_reduction <add>, %1, %cst [1] : vector<112x32xf32> to vector<112xf32>
    %3 = vector.shape_cast %2 : vector<112xf32> to vector<112x1xf32>
    %cst_1 = arith.constant 1.000000e-07 : f32
    %4 = vector.broadcast %cst_1 : f32 to vector<112x1xf32>
    %5 = arith.maximumf %3, %4 : vector<112x1xf32>
    %6 = math.sqrt %5 : vector<112x1xf32>
    %cst_2 = arith.constant 1.000000e+00 : f32
    %7 = vector.broadcast %cst_2 : f32 to vector<112x1xf32>
    %8 = arith.mulf %7, %6 : vector<112x1xf32>
    %cst_3 = arith.constant 1.000000e-07 : f32
    %cst_4 = arith.constant 0.999989986 : f32
    %9 = vector.broadcast %cst_3 : f32 to vector<112x1xf32>
    %10 = arith.maximumf %9, %8 : vector<112x1xf32>
    %11 = vector.broadcast %cst_4 : f32 to vector<112x1xf32>
    %12 = arith.minimumf %11, %10 : vector<112x1xf32>
    %13 = math.log1p %12 : vector<112x1xf32>
    %cst_5 = arith.constant 0.000000e+00 : f32
    %14 = vector.broadcast %cst_5 : f32 to vector<112x1xf32>
    %15 = arith.subf %14, %12 : vector<112x1xf32>
    %16 = math.log1p %15 : vector<112x1xf32>
    %17 = arith.subf %13, %16 : vector<112x1xf32>
    %cst_6 = arith.constant 5.000000e-01 : f32
    %18 = vector.broadcast %cst_6 : f32 to vector<112x1xf32>
    %19 = arith.mulf %18, %17 : vector<112x1xf32>
    %cst_7 = arith.constant 1.000000e+00 : f32
    %20 = vector.broadcast %cst_7 : f32 to vector<112x1xf32>
    %21 = arith.mulf %19, %20 : vector<112x1xf32>
    %22 = tpu.reciprocal %6 {approx = true} : vector<112x1xf32> -> vector<112x1xf32>
    %23 = arith.mulf %21, %22 : vector<112x1xf32>
    %24 = vector.broadcast %23 : vector<112x1xf32> to vector<112x32xf32>
    %25 = arith.mulf %0, %24 : vector<112x32xf32>
    %c0_8 = arith.constant 0 : index
    %c0_9 = arith.constant 0 : index
    %26 = vector.load %arg2[%c0_8, %c0_9] : memref<32x32xf32, #tpu.memory_space<vmem>>, vector<32x32xf32>
    %cst_10 = arith.constant dense<0.000000e+00> : vector<112x32xf32>
    %27 = tpu.matmul %25, %26, %cst_10 {dimension_numbers = #tpu.dot_dimension_numbers<[1], [1], [0], [0], [0, 0, 1, 0], [], []>} : vector<112x32xf32>, vector<32x32xf32>, vector<112x32xf32> -> vector<112x32xf32>
    %c0_11 = arith.constant 0 : index
    %c0_12 = arith.constant 0 : index
    %28 = vector.load %arg3[%c0_11, %c0_12] : memref<1x32xf32, #tpu.memory_space<vmem>>, vector<1x32xf32>
    %29 = vector.broadcast %28 : vector<1x32xf32> to vector<112x32xf32>
    %30 = arith.addf %27, %29 : vector<112x32xf32>
    %31 = arith.mulf %30, %30 : vector<112x32xf32>
    %cst_13 = arith.constant dense<0.000000e+00> : vector<112xf32>
    %32 = vector.multi_reduction <add>, %31, %cst_13 [1] : vector<112x32xf32> to vector<112xf32>
    %33 = vector.shape_cast %32 : vector<112xf32> to vector<112x1xf32>
    %cst_14 = arith.constant 1.000000e-07 : f32
    %34 = vector.broadcast %cst_14 : f32 to vector<112x1xf32>
    %35 = arith.maximumf %33, %34 : vector<112x1xf32>
    %36 = math.sqrt %35 : vector<112x1xf32>
    %cst_15 = arith.constant 0.707106769 : f32
    %37 = vector.broadcast %cst_15 : f32 to vector<112x1xf32>
    %38 = arith.mulf %37, %36 : vector<112x1xf32>
    %39 = math.tanh %38 : vector<112x1xf32>
    %cst_16 = arith.constant 1.41421354 : f32
    %40 = vector.broadcast %cst_16 : f32 to vector<112x1xf32>
    %41 = arith.mulf %39, %40 : vector<112x1xf32>
    %42 = tpu.reciprocal %36 {approx = true} : vector<112x1xf32> -> vector<112x1xf32>
    %43 = arith.mulf %41, %42 : vector<112x1xf32>
    %44 = vector.broadcast %43 : vector<112x1xf32> to vector<112x32xf32>
    %45 = arith.mulf %30, %44 : vector<112x32xf32>
    %46 = arith.mulf %45, %45 : vector<112x32xf32>
    %cst_17 = arith.constant dense<0.000000e+00> : vector<112xf32>
    %47 = vector.multi_reduction <add>, %46, %cst_17 [1] : vector<112x32xf32> to vector<112xf32>
    %48 = vector.shape_cast %47 : vector<112xf32> to vector<112x1xf32>
    %cst_18 = arith.constant 1.000000e-07 : f32
    %49 = vector.broadcast %cst_18 : f32 to vector<112x1xf32>
    %50 = arith.maximumf %48, %49 : vector<112x1xf32>
    %51 = math.sqrt %50 : vector<112x1xf32>
    %cst_19 = arith.constant 1.41419947 : f32
    %52 = vector.broadcast %cst_19 : f32 to vector<112x1xf32>
    %53 = arith.cmpf ogt, %51, %52 : vector<112x1xf32>
    %54 = tpu.reciprocal %51 {approx = true} : vector<112x1xf32> -> vector<112x1xf32>
    %cst_20 = arith.constant 1.41419947 : f32
    %55 = vector.broadcast %cst_20 : f32 to vector<112x1xf32>
    %56 = arith.mulf %55, %54 : vector<112x1xf32>
    %57 = vector.broadcast %56 : vector<112x1xf32> to vector<112x32xf32>
    %58 = arith.mulf %45, %57 : vector<112x32xf32>
    %59 = vector.shape_cast %53 : vector<112x1xi1> to vector<112x1xi1>
    %60 = vector.broadcast %59 : vector<112x1xi1> to vector<112x32xi1>
    %61 = arith.select %60, %58, %45 : vector<112x32xi1>, vector<112x32xf32>
    %c0_21 = arith.constant 0 : index
    %c0_22 = arith.constant 0 : index
    %62 = vector.load %arg4[%c0_21, %c0_22] : memref<112x32xf32, #tpu.memory_space<vmem>>, vector<112x32xf32>
    tpu.vector_store %arg4[%c0_21, %c0_22], %61 {strides = array<i32>} : memref<112x32xf32, #tpu.memory_space<vmem>>, vector<112x32xf32>,
    return
  }
  func.func @transform_0(%arg0: i32) -> (i32, i32) {
    %c0_i32 = arith.constant 0 : i32
    %c0_i32_0 = arith.constant 0 : i32
    return %arg0, %c0_i32 : i32, i32
  }
  func.func @transform_1(%arg0: i32) -> (i32, i32) {
    %c0_i32 = arith.constant 0 : i32
    %c0_i32_0 = arith.constant 0 : i32
    %c0_i32_1 = arith.constant 0 : i32
    return %c0_i32, %c0_i32_0 : i32, i32
  }
  func.func @transform_2(%arg0: i32) -> (i32, i32) {
    %c0_i32 = arith.constant 0 : i32
    %c0_i32_0 = arith.constant 0 : i32
    %c0_i32_1 = arith.constant 0 : i32
    return %c0_i32, %c0_i32_0 : i32, i32
  }
  func.func @transform_3(%arg0: i32) -> (i32, i32) {
    %c0_i32 = arith.constant 0 : i32
    %c0_i32_0 = arith.constant 0 : i32
    return %arg0, %c0_i32 : i32, i32
  }
}

module attributes {stable_mosaic.version = 11 : i64} {
  func.func @_hyp_linear_kernel(%arg0: i32, %arg1: memref<112x32xf32, #tpu.memory_space<vmem>>, %arg2: memref<32x32xf32, #tpu.memory_space<vmem>>, %arg3: memref<1x32xf32, #tpu.memory_space<vmem>>, %arg4: memref<112x32xf32, #tpu.memory_space<vmem>>) attributes {dimension_semantics = [#tpu.dimension_semantics<parallel>], iteration_bounds = array<i64: 1>, scalar_prefetch = 0 : i64, scratch_operands = 0 : i64, tpu.core_type = #tpu.core_type<tc>, window_params = [{transform_indices = @transform_0, window_bounds = array<i64: 112, 32>}, {pipeline_mode = #tpu.pipeline_mode<synchronous>, transform_indices = @transform_1, window_bounds = array<i64: 32, 32>}, {pipeline_mode = #tpu.pipeline_mode<synchronous>, transform_indices = @transform_2, window_bounds = array<i64: 1, 32>}, {transform_indices = @transform_3, window_bounds = array<i64: 112, 32>}]} {
    %c0 = arith.constant 0 : index
    %c0_0 = arith.constant 0 : index
    %0 = vector.load %arg1[%c0, %c0_0] : memref<112x32xf32, #tpu.memory_space<vmem>>, vector<112x32xf32>
    %1 = arith.mulf %0, %0 : vector<112x32xf32>
    %cst = arith.constant dense<0.000000e+00> : vector<112xf32>
    %2 = vector.multi_reduction <add>, %1, %cst [1] : vector<112x32xf32> to vector<112xf32>
    %3 = vector.shape_cast %2 : vector<112xf32> to vector<112x1xf32>
    %cst_1 = arith.constant 1.000000e-07 : f32
    %4 = vector.broadcast %cst_1 : f32 to vector<112x1xf32>
    %5 = arith.maximumf %3, %4 : vector<112x1xf32>
    %6 = math.sqrt %5 : vector<112x1xf32>
    %cst_2 = arith.constant 0.707106769 : f32
    %7 = vector.broadcast %cst_2 : f32 to vector<112x1xf32>
    %8 = arith.mulf %7, %6 : vector<112x1xf32>
    %cst_3 = arith.constant 1.000000e-07 : f32
    %cst_4 = arith.constant 0.999989986 : f32
    %9 = vector.broadcast %cst_3 : f32 to vector<112x1xf32>
    %10 = arith.maximumf %9, %8 : vector<112x1xf32>
    %11 = vector.broadcast %cst_4 : f32 to vector<112x1xf32>
    %12 = arith.minimumf %11, %10 : vector<112x1xf32>
    %13 = math.log1p %12 : vector<112x1xf32>
    %cst_5 = arith.constant 0.000000e+00 : f32
    %14 = vector.broadcast %cst_5 : f32 to vector<112x1xf32>
    %15 = arith.subf %14, %12 : vector<112x1xf32>
    %16 = math.log1p %15 : vector<112x1xf32>
    %17 = arith.subf %13, %16 : vector<112x1xf32>
    %cst_6 = arith.constant 5.000000e-01 : f32
    %18 = vector.broadcast %cst_6 : f32 to vector<112x1xf32>
    %19 = arith.mulf %18, %17 : vector<112x1xf32>
    %cst_7 = arith.constant 1.41421354 : f32
    %20 = vector.broadcast %cst_7 : f32 to vector<112x1xf32>
    %21 = arith.mulf %19, %20 : vector<112x1xf32>
    %22 = tpu.reciprocal %6 {approx = true} : vector<112x1xf32> -> vector<112x1xf32>
    %23 = arith.mulf %21, %22 : vector<112x1xf32>
    %24 = vector.broadcast %23 : vector<112x1xf32> to vector<112x32xf32>
    %25 = arith.mulf %0, %24 : vector<112x32xf32>
    %c0_8 = arith.constant 0 : index
    %c0_9 = arith.constant 0 : index
    %26 = vector.load %arg2[%c0_8, %c0_9] : memref<32x32xf32, #tpu.memory_space<vmem>>, vector<32x32xf32>
    %cst_10 = arith.constant dense<0.000000e+00> : vector<112x32xf32>
    %27 = tpu.matmul %25, %26, %cst_10 {dimension_numbers = #tpu.dot_dimension_numbers<[1], [1], [0], [0], [0, 0, 1, 0], [], []>} : vector<112x32xf32>, vector<32x32xf32>, vector<112x32xf32> -> vector<112x32xf32>
    %c0_11 = arith.constant 0 : index
    %c0_12 = arith.constant 0 : index
    %28 = vector.load %arg3[%c0_11, %c0_12] : memref<1x32xf32, #tpu.memory_space<vmem>>, vector<1x32xf32>
    %29 = vector.broadcast %28 : vector<1x32xf32> to vector<112x32xf32>
    %30 = arith.addf %27, %29 : vector<112x32xf32>
    %31 = arith.mulf %30, %30 : vector<112x32xf32>
    %cst_13 = arith.constant dense<0.000000e+00> : vector<112xf32>
    %32 = vector.multi_reduction <add>, %31, %cst_13 [1] : vector<112x32xf32> to vector<112xf32>
    %33 = vector.shape_cast %32 : vector<112xf32> to vector<112x1xf32>
    %cst_14 = arith.constant 1.000000e-07 : f32
    %34 = vector.broadcast %cst_14 : f32 to vector<112x1xf32>
    %35 = arith.maximumf %33, %34 : vector<112x1xf32>
    %36 = math.sqrt %35 : vector<112x1xf32>
    %cst_15 = arith.constant 0.707106769 : f32
    %37 = vector.broadcast %cst_15 : f32 to vector<112x1xf32>
    %38 = arith.mulf %37, %36 : vector<112x1xf32>
    %39 = math.tanh %38 : vector<112x1xf32>
    %cst_16 = arith.constant 1.41421354 : f32
    %40 = vector.broadcast %cst_16 : f32 to vector<112x1xf32>
    %41 = arith.mulf %39, %40 : vector<112x1xf32>
    %42 = tpu.reciprocal %36 {approx = true} : vector<112x1xf32> -> vector<112x1xf32>
    %43 = arith.mulf %41, %42 : vector<112x1xf32>
    %44 = vector.broadcast %43 : vector<112x1xf32> to vector<112x32xf32>
    %45 = arith.mulf %30, %44 : vector<112x32xf32>
    %46 = arith.mulf %45, %45 : vector<112x32xf32>
    %cst_17 = arith.constant dense<0.000000e+00> : vector<112xf32>
    %47 = vector.multi_reduction <add>, %46, %cst_17 [1] : vector<112x32xf32> to vector<112xf32>
    %48 = vector.shape_cast %47 : vector<112xf32> to vector<112x1xf32>
    %cst_18 = arith.constant 1.000000e-07 : f32
    %49 = vector.broadcast %cst_18 : f32 to vector<112x1xf32>
    %50 = arith.maximumf %48, %49 : vector<112x1xf32>
    %51 = math.sqrt %50 : vector<112x1xf32>
    %cst_19 = arith.constant 1.41419947 : f32
    %52 = vector.broadcast %cst_19 : f32 to vector<112x1xf32>
    %53 = arith.cmpf ogt, %51, %52 : vector<112x1xf32>
    %54 = tpu.reciprocal %51 {approx = true} : vector<112x1xf32> -> vector<112x1xf32>
    %cst_20 = arith.constant 1.41419947 : f32
    %55 = vector.broadcast %cst_20 : f32 to vector<112x1xf32>
    %56 = arith.mulf %55, %54 : vector<112x1xf32>
    %57 = vector.broadcast %56 : vector<112x1xf32> to vector<112x32xf32>
    %58 = arith.mulf %45, %57 : vector<112x32xf32>
    %59 = vector.shape_cast %53 : vector<112x1xi1> to vector<112x1xi1>
    %60 = vector.broadcast %59 : vector<112x1xi1> to vector<112x32xi1>
    %61 = arith.select %60, %58, %45 : vector<112x32xi1>, vector<112x32xf32>
    %c0_21 = arith.constant 0 : index
    %c0_22 = arith.constant 0 : index
    %62 = vector.load %arg4[%c0_21, %c0_22] : memref<112x32xf32, #tpu.memory_space<vmem>>, vector<112x32xf32>
    tpu.vector_store %arg4[%c0_21, %c0_22], %61 {strides = array<i32>} : memref<112x32xf32, #tpu.memory_space<vmem>>, vector<112x32xf32>,
    return
  }
  func.func @transform_0(%arg0: i32) -> (i32, i32) {
    %c0_i32 = arith.constant 0 : i32
    %c0_i32_0 = arith.constant 0 : i32
    return %arg0, %c0_i32 : i32, i32
  }
  func.func @transform_1(%arg0: i32) -> (i32, i32) {
    %c0_i32 = arith.constant 0 : i32
    %c0_i32_0 = arith.constant 0 : i32
    %c0_i32_1 = arith.constant 0 : i32
    return %c0_i32, %c0_i32_0 : i32, i32
  }
  func.func @transform_2(%arg0: i32) -> (i32, i32) {
    %c0_i32 = arith.constant 0 : i32
    %c0_i32_0 = arith.constant 0 : i32
    %c0_i32_1 = arith.constant 0 : i32
    return %c0_i32, %c0_i32_0 : i32, i32
  }
  func.func @transform_3(%arg0: i32) -> (i32, i32) {
    %c0_i32 = arith.constant 0 : i32
    %c0_i32_0 = arith.constant 0 : i32
    return %arg0, %c0_i32 : i32, i32
  }
}

module attributes {stable_mosaic.version = 11 : i64} {
  func.func @_pairwise_sig_sqdist_kernel(%arg0: i32, %arg1: i32, %arg2: i32, %arg3: memref<1x9x32xf32, #tpu.memory_space<vmem>>, %arg4: memref<1x9x32xf32, #tpu.memory_space<vmem>>, %arg5: memref<1x1x9xf32, #tpu.memory_space<vmem>>, %arg6: memref<1x9x9xf32, #tpu.memory_space<vmem>>) attributes {dimension_semantics = [#tpu.dimension_semantics<parallel>, #tpu.dimension_semantics<parallel>, #tpu.dimension_semantics<parallel>], iteration_bounds = array<i64: 2, 1, 1>, scalar_prefetch = 0 : i64, scratch_operands = 0 : i64, tpu.core_type = #tpu.core_type<tc>, window_params = [{transform_indices = @transform_0, window_bounds = array<i64: 1, 9, 32>}, {transform_indices = @transform_1, window_bounds = array<i64: 1, 9, 32>}, {transform_indices = @transform_2, window_bounds = array<i64: 1, 1, 9>}, {transform_indices = @transform_3, window_bounds = array<i64: 1, 9, 9>}]} {
    %c1_i32 = arith.constant 1 : i32
    %0 = arith.cmpi eq, %arg0, %c1_i32 : i32
    %cst = arith.constant 1.000000e+00 : f32
    %cst_0 = arith.constant 5.000000e-01 : f32
    %1 = arith.select %0, %cst, %cst_0 : f32
    %cst_1 = arith.constant 1.000000e-07 : f32
    %2 = arith.maximumf %1, %cst_1 : f32
    %3 = math.rsqrt %2 : f32
    %c0 = arith.constant 0 : index
    %c0_2 = arith.constant 0 : index
    %c0_3 = arith.constant 0 : index
    %4 = vector.load %arg3[%c0, %c0_2, %c0_3] : memref<1x9x32xf32, #tpu.memory_space<vmem>>, vector<1x9x32xf32>
    %5 = vector.shape_cast %4 : vector<1x9x32xf32> to vector<9x32xf32>
    %c0_4 = arith.constant 0 : index
    %c0_5 = arith.constant 0 : index
    %c0_6 = arith.constant 0 : index
    %6 = vector.load %arg4[%c0_4, %c0_5, %c0_6] : memref<1x9x32xf32, #tpu.memory_space<vmem>>, vector<1x9x32xf32>
    %7 = vector.shape_cast %6 : vector<1x9x32xf32> to vector<9x32xf32>
    %c0_7 = arith.constant 0 : index
    %c0_8 = arith.constant 0 : index
    %c0_9 = arith.constant 0 : index
    %8 = vector.load %arg5[%c0_7, %c0_8, %c0_9] : memref<1x1x9xf32, #tpu.memory_space<vmem>>, vector<1x1x9xf32>
    %9 = vector.shape_cast %8 : vector<1x1x9xf32> to vector<1x9xf32>
    %10 = arith.mulf %5, %5 : vector<9x32xf32>
    %cst_10 = arith.constant dense<0.000000e+00> : vector<9xf32>
    %11 = vector.multi_reduction <add>, %10, %cst_10 [1] : vector<9x32xf32> to vector<9xf32>
    %12 = vector.shape_cast %11 : vector<9xf32> to vector<9x1xf32>
    %cst_11 = arith.constant dense<0.000000e+00> : vector<9x9xf32>
    %13 = tpu.matmul %5, %7, %cst_11 {dimension_numbers = #tpu.dot_dimension_numbers<[1], [1], [0], [0], [0, 0, 1, 0], [], []>} : vector<9x32xf32>, vector<9x32xf32>, vector<9x9xf32> -> vector<9x9xf32>
    %14 = vector.broadcast %12 : vector<9x1xf32> to vector<9x9xf32>
    %15 = vector.broadcast %9 : vector<1x9xf32> to vector<9x9xf32>
    %16 = arith.addf %14, %15 : vector<9x9xf32>
    %cst_12 = arith.constant 2.000000e+00 : f32
    %17 = vector.broadcast %cst_12 : f32 to vector<9x9xf32>
    %18 = arith.mulf %17, %13 : vector<9x9xf32>
    %19 = arith.subf %16, %18 : vector<9x9xf32>
    %cst_13 = arith.constant 0.000000e+00 : f32
    %20 = vector.broadcast %cst_13 : f32 to vector<9x9xf32>
    %21 = arith.maximumf %19, %20 : vector<9x9xf32>
    %22 = vector.broadcast %1 : f32 to vector<9x1xf32>
    %23 = arith.mulf %22, %12 : vector<9x1xf32>
    %cst_14 = arith.constant 1.000000e+00 : f32
    %24 = vector.broadcast %cst_14 : f32 to vector<9x1xf32>
    %25 = arith.subf %24, %23 : vector<9x1xf32>
    %26 = vector.broadcast %1 : f32 to vector<1x9xf32>
    %27 = arith.mulf %26, %9 : vector<1x9xf32>
    %cst_15 = arith.constant 1.000000e+00 : f32
    %28 = vector.broadcast %cst_15 : f32 to vector<1x9xf32>
    %29 = arith.subf %28, %27 : vector<1x9xf32>
    %30 = vector.broadcast %25 : vector<9x1xf32> to vector<9x9xf32>
    %31 = vector.broadcast %29 : vector<1x9xf32> to vector<9x9xf32>
    %32 = arith.mulf %30, %31 : vector<9x9xf32>
    %cst_16 = arith.constant 1.000000e-07 : f32
    %33 = vector.broadcast %cst_16 : f32 to vector<9x9xf32>
    %34 = arith.maximumf %32, %33 : vector<9x9xf32>
    %cst_17 = arith.constant 2.000000e+00 : f32
    %35 = arith.mulf %cst_17, %1 : f32
    %36 = vector.broadcast %35 : f32 to vector<9x9xf32>
    %37 = arith.mulf %36, %21 : vector<9x9xf32>
    %38 = tpu.reciprocal %34 {approx = true} : vector<9x9xf32> -> vector<9x9xf32>
    %39 = arith.mulf %37, %38 : vector<9x9xf32>
    %cst_18 = arith.constant 1.000000e-07 : f32
    %40 = vector.broadcast %cst_18 : f32 to vector<9x9xf32>
    %41 = arith.maximumf %39, %40 : vector<9x9xf32>
    %cst_19 = arith.constant 2.000000e+00 : f32
    %42 = vector.broadcast %cst_19 : f32 to vector<9x9xf32>
    %43 = arith.addf %41, %42 : vector<9x9xf32>
    %44 = arith.mulf %41, %43 : vector<9x9xf32>
    %45 = math.sqrt %44 : vector<9x9xf32>
    %46 = arith.addf %41, %45 : vector<9x9xf32>
    %47 = math.log1p %46 : vector<9x9xf32>
    %48 = vector.broadcast %3 : f32 to vector<9x9xf32>
    %49 = arith.mulf %47, %48 : vector<9x9xf32>
    %50 = arith.mulf %49, %49 : vector<9x9xf32>
    %cst_20 = arith.constant 0.000000e+00 : f32
    %51 = vector.broadcast %cst_20 : f32 to vector<9x9xf32>
    %52 = arith.subf %51, %50 : vector<9x9xf32>
    %cst_21 = arith.constant 2.000000e+00 : f32
    %53 = vector.broadcast %cst_21 : f32 to vector<9x9xf32>
    %54 = arith.mulf %52, %53 : vector<9x9xf32>
    %55 = arith.negf %54 : vector<9x9xf32>
    %56 = math.exp %55 : vector<9x9xf32>
    %cst_22 = arith.constant 1.000000e+00 : f32
    %57 = vector.broadcast %cst_22 : f32 to vector<9x9xf32>
    %58 = arith.addf %57, %56 : vector<9x9xf32>
    %59 = arith.divf %57, %58 : vector<9x9xf32>
    %cst_23 = arith.constant 2.000000e+00 : f32
    %60 = vector.broadcast %cst_23 : f32 to vector<9x9xf32>
    %61 = arith.mulf %60, %59 : vector<9x9xf32>
    %c0_24 = arith.constant 0 : index
    %c0_25 = arith.constant 0 : index
    %c0_26 = arith.constant 0 : index
    %62 = vector.load %arg6[%c0_24, %c0_25, %c0_26] : memref<1x9x9xf32, #tpu.memory_space<vmem>>, vector<1x9x9xf32>
    %63 = vector.shape_cast %62 : vector<1x9x9xf32> to vector<9x9xf32>
    %64 = vector.shape_cast %61 : vector<9x9xf32> to vector<1x9x9xf32>
    tpu.vector_store %arg6[%c0_24, %c0_25, %c0_26], %64 {strides = array<i32>} : memref<1x9x9xf32, #tpu.memory_space<vmem>>, vector<1x9x9xf32>,
    return
  }
  func.func @transform_0(%arg0: i32, %arg1: i32, %arg2: i32) -> (i32, i32, i32) {
    %c0_i32 = arith.constant 0 : i32
    %c0_i32_0 = arith.constant 0 : i32
    return %arg0, %arg1, %c0_i32 : i32, i32, i32
  }
  func.func @transform_1(%arg0: i32, %arg1: i32, %arg2: i32) -> (i32, i32, i32) {
    %c0_i32 = arith.constant 0 : i32
    %c0_i32_0 = arith.constant 0 : i32
    return %arg0, %arg2, %c0_i32 : i32, i32, i32
  }
  func.func @transform_2(%arg0: i32, %arg1: i32, %arg2: i32) -> (i32, i32, i32) {
    %c0_i32 = arith.constant 0 : i32
    %c0_i32_0 = arith.constant 0 : i32
    return %arg0, %c0_i32, %arg2 : i32, i32, i32
  }
  func.func @transform_3(%arg0: i32, %arg1: i32, %arg2: i32) -> (i32, i32, i32) {
    %c0_i32 = arith.constant 0 : i32
    return %arg0, %arg1, %arg2 : i32, i32, i32
  }
}

module attributes {stable_mosaic.version = 11 : i64} {
  func.func @_rowwise_sig_dist_kernel(%arg0: i32, %arg1: memref<32x270xf32, #tpu.memory_space<vmem>>, %arg2: memref<32x270xf32, #tpu.memory_space<vmem>>, %arg3: memref<1x270xf32, #tpu.memory_space<vmem>>, %arg4: memref<1x270xf32, #tpu.memory_space<vmem>>) attributes {dimension_semantics = [#tpu.dimension_semantics<parallel>], iteration_bounds = array<i64: 1>, scalar_prefetch = 0 : i64, scratch_operands = 0 : i64, tpu.core_type = #tpu.core_type<tc>, window_params = [{transform_indices = @transform_0, window_bounds = array<i64: 32, 270>}, {transform_indices = @transform_1, window_bounds = array<i64: 32, 270>}, {transform_indices = @transform_2, window_bounds = array<i64: 1, 270>}, {transform_indices = @transform_3, window_bounds = array<i64: 1, 270>}]} {
    %c0 = arith.constant 0 : index
    %c0_0 = arith.constant 0 : index
    %0 = vector.load %arg1[%c0, %c0_0] : memref<32x270xf32, #tpu.memory_space<vmem>>, vector<32x270xf32>
    %c0_1 = arith.constant 0 : index
    %c0_2 = arith.constant 0 : index
    %1 = vector.load %arg2[%c0_1, %c0_2] : memref<32x270xf32, #tpu.memory_space<vmem>>, vector<32x270xf32>
    %c0_3 = arith.constant 0 : index
    %c0_4 = arith.constant 0 : index
    %2 = vector.load %arg3[%c0_3, %c0_4] : memref<1x270xf32, #tpu.memory_space<vmem>>, vector<1x270xf32>
    %3 = arith.mulf %0, %0 : vector<32x270xf32>
    %cst = arith.constant dense<0.000000e+00> : vector<270xf32>
    %4 = vector.multi_reduction <add>, %3, %cst [0] : vector<32x270xf32> to vector<270xf32>
    %5 = vector.shape_cast %4 : vector<270xf32> to vector<1x270xf32>
    %6 = arith.mulf %1, %1 : vector<32x270xf32>
    %cst_5 = arith.constant dense<0.000000e+00> : vector<270xf32>
    %7 = vector.multi_reduction <add>, %6, %cst_5 [0] : vector<32x270xf32> to vector<270xf32>
    %8 = vector.shape_cast %7 : vector<270xf32> to vector<1x270xf32>
    %9 = arith.subf %0, %1 : vector<32x270xf32>
    %10 = arith.mulf %9, %9 : vector<32x270xf32>
    %cst_6 = arith.constant dense<0.000000e+00> : vector<270xf32>
    %11 = vector.multi_reduction <add>, %10, %cst_6 [0] : vector<32x270xf32> to vector<270xf32>
    %12 = vector.shape_cast %11 : vector<270xf32> to vector<1x270xf32>
    %13 = arith.mulf %2, %5 : vector<1x270xf32>
    %cst_7 = arith.constant 1.000000e+00 : f32
    %14 = vector.broadcast %cst_7 : f32 to vector<1x270xf32>
    %15 = arith.subf %14, %13 : vector<1x270xf32>
    %16 = arith.mulf %2, %8 : vector<1x270xf32>
    %cst_8 = arith.constant 1.000000e+00 : f32
    %17 = vector.broadcast %cst_8 : f32 to vector<1x270xf32>
    %18 = arith.subf %17, %16 : vector<1x270xf32>
    %19 = arith.mulf %15, %18 : vector<1x270xf32>
    %cst_9 = arith.constant 1.000000e-07 : f32
    %20 = vector.broadcast %cst_9 : f32 to vector<1x270xf32>
    %21 = arith.maximumf %19, %20 : vector<1x270xf32>
    %cst_10 = arith.constant 2.000000e+00 : f32
    %22 = vector.broadcast %cst_10 : f32 to vector<1x270xf32>
    %23 = arith.mulf %22, %2 : vector<1x270xf32>
    %24 = arith.mulf %23, %12 : vector<1x270xf32>
    %25 = tpu.reciprocal %21 {approx = true} : vector<1x270xf32> -> vector<1x270xf32>
    %26 = arith.mulf %24, %25 : vector<1x270xf32>
    %cst_11 = arith.constant 1.000000e-07 : f32
    %27 = vector.broadcast %cst_11 : f32 to vector<1x270xf32>
    %28 = arith.maximumf %26, %27 : vector<1x270xf32>
    %cst_12 = arith.constant 2.000000e+00 : f32
    %29 = vector.broadcast %cst_12 : f32 to vector<1x270xf32>
    %30 = arith.addf %28, %29 : vector<1x270xf32>
    %31 = arith.mulf %28, %30 : vector<1x270xf32>
    %32 = math.sqrt %31 : vector<1x270xf32>
    %33 = arith.addf %28, %32 : vector<1x270xf32>
    %34 = math.log1p %33 : vector<1x270xf32>
    %cst_13 = arith.constant 1.000000e-07 : f32
    %35 = vector.broadcast %cst_13 : f32 to vector<1x270xf32>
    %36 = arith.maximumf %2, %35 : vector<1x270xf32>
    %37 = math.rsqrt %36 : vector<1x270xf32>
    %38 = arith.mulf %34, %37 : vector<1x270xf32>
    %cst_14 = arith.constant 0.000000e+00 : f32
    %39 = vector.broadcast %cst_14 : f32 to vector<1x270xf32>
    %40 = arith.subf %39, %38 : vector<1x270xf32>
    %41 = arith.negf %40 : vector<1x270xf32>
    %42 = math.exp %41 : vector<1x270xf32>
    %cst_15 = arith.constant 1.000000e+00 : f32
    %43 = vector.broadcast %cst_15 : f32 to vector<1x270xf32>
    %44 = arith.addf %43, %42 : vector<1x270xf32>
    %45 = arith.divf %43, %44 : vector<1x270xf32>
    %cst_16 = arith.constant 4.000000e+00 : f32
    %46 = vector.broadcast %cst_16 : f32 to vector<1x270xf32>
    %47 = arith.mulf %46, %45 : vector<1x270xf32>
    %c0_17 = arith.constant 0 : index
    %c0_18 = arith.constant 0 : index
    %48 = vector.load %arg4[%c0_17, %c0_18] : memref<1x270xf32, #tpu.memory_space<vmem>>, vector<1x270xf32>
    tpu.vector_store %arg4[%c0_17, %c0_18], %47 {strides = array<i32>} : memref<1x270xf32, #tpu.memory_space<vmem>>, vector<1x270xf32>,
    return
  }
  func.func @transform_0(%arg0: i32) -> (i32, i32) {
    %c0_i32 = arith.constant 0 : i32
    %c0_i32_0 = arith.constant 0 : i32
    return %c0_i32, %arg0 : i32, i32
  }
  func.func @transform_1(%arg0: i32) -> (i32, i32) {
    %c0_i32 = arith.constant 0 : i32
    %c0_i32_0 = arith.constant 0 : i32
    return %c0_i32, %arg0 : i32, i32
  }
  func.func @transform_2(%arg0: i32) -> (i32, i32) {
    %c0_i32 = arith.constant 0 : i32
    %c0_i32_0 = arith.constant 0 : i32
    return %c0_i32, %arg0 : i32, i32
  }
  func.func @transform_3(%arg0: i32) -> (i32, i32) {
    %c0_i32 = arith.constant 0 : i32
    %c0_i32_0 = arith.constant 0 : i32
    return %c0_i32, %arg0 : i32, i32
  }
}

</mosaic_0001>

<llo_original>
// kernel: _forward_impl.9
$region0: #{_forward_impl.9}
  #allocation0 [shape = 'u32[]', space=smem, size = 0x4, offset = 0x4, fixed_abs, tag = 'smem constant byte address 0x4 - core index']
  #allocation1 [shape = 'u32[144,128]{1,0:T(1,128)}', space=vmem, size = 0x12000, scoped, tag = 'internal scratch']
  %s0 = inlined_call_operand.vmem [shape: f32[112,32], index: 0, kind: input, shape index: {}]
  %s1 = inlined_call_operand.vmem [shape: f32[32,32], index: 1, kind: input, shape index: {}]
  %s2 = inlined_call_operand.vmem [shape: f32[1,32], index: 2, kind: input, shape index: {}]
  %s3 = inlined_call_operand.vmem [shape: f32[112,32], index: 3, kind: output, shape index: {}]
  %s4 = sld [smem:[#allocation0]]
  $region22: #{_forward_impl.9} parent=0
    _
  %s6 = ssub.s32 1, %s4
  %s7 = scalar_select 0, %s6, %s4
  // Predicated region
  $region2: #{_forward_impl.9} parent=0 // pred_check
    _
  $region3: #{_forward_impl.9} parent=0 // pred_check_branch
    %9 = sbr.rel (0) target = $region5
  $region4: #{_forward_impl.9} parent=0 // pred_region
    _
  $region5: #{_forward_impl.9} parent=0 // pred_fallthru
    _
  // Predicated region
  $region6: #{_forward_impl.9} parent=0 // pred_check
    _
  $region7: #{_forward_impl.9} parent=0 // pred_check_branch
    %11 = sbr.rel (0) target = $region9
  $region8: #{_forward_impl.9} parent=0 // pred_region
    _
  $region9: #{_forward_impl.9} parent=0 // pred_fallthru
    _
  // Predicated region
  $region10: #{_forward_impl.9} parent=0 // pred_check
    _
  $region11: #{_forward_impl.9} parent=0 // pred_check_branch
    %13 = sbr.rel (0) target = $region13
  $region12: #{_forward_impl.9} parent=0 // pred_region
    _
  $region13: #{_forward_impl.9} parent=0 // pred_fallthru
    _
  %v14 = vld [vmem:[%s0] sm:$0xff]
  %v15 = vld [vmem:[%s0 + $0x8] sm:$0xff]
  %v16 = vld [vmem:[%s0 + $0x10] sm:$0xff]
  %v17 = vld [vmem:[%s0 + $0x18] sm:$0xff]
  %v18 = vld [vmem:[%s0 + $0x20] sm:$0xff]
  %v19 = vld [vmem:[%s0 + $0x28] sm:$0xff]
  %v20 = vld [vmem:[%s0 + $0x30] sm:$0xff]
  %v21 = vld [vmem:[%s0 + $0x38] sm:$0xff]
  %v22 = vld [vmem:[%s0 + $0x40] sm:$0xff]
  %v23 = vld [vmem:[%s0 + $0x48] sm:$0xff]
  %v24 = vld [vmem:[%s0 + $0x50] sm:$0xff]
  %v25 = vld [vmem:[%s0 + $0x58] sm:$0xff]
  %v26 = vld [vmem:[%s0 + $0x60] sm:$0xff]
  %v27 = vld [vmem:[%s0 + $0x68] sm:$0xff]
  %v28 = vmul.f32 %v14, %v14
  %v29 = vmul.f32 %v15, %v15
  %v30 = vmul.f32 %v16, %v16
  %v31 = vmul.f32 %v17, %v17
  %v32 = vmul.f32 %v18, %v18
  %v33 = vmul.f32 %v19, %v19
  %v34 = vmul.f32 %v20, %v20
  %v35 = vmul.f32 %v21, %v21
  %v36 = vmul.f32 %v22, %v22
  %v37 = vmul.f32 %v23, %v23
  %v38 = vmul.f32 %v24, %v24
  %v39 = vmul.f32 %v25, %v25
  %v40 = vmul.f32 %v26, %v26
  %v41 = vmul.f32 %v27, %v27
  %vm42 = vcmask 261120
  %v43 = vsel %vm42, %v28, 0.0
  %44 = vadd.xlane.f32.xlu0 %v43
  %v45 = vpop.xlane.xlu0 %44
  %v46 = vsel %vm42, %v29, 0.0
  %47 = vadd.xlane.f32.xlu0 %v46
  %v48 = vpop.xlane.xlu0 %47
  %v49 = vsel %vm42, %v30, 0.0
  %50 = vadd.xlane.f32.xlu0 %v49
  %v51 = vpop.xlane.xlu0 %50
  %v52 = vsel %vm42, %v31, 0.0
  %53 = vadd.xlane.f32.xlu0 %v52
  %v54 = vpop.xlane.xlu0 %53
  %v55 = vsel %vm42, %v32, 0.0
  %56 = vadd.xlane.f32.xlu0 %v55
  %v57 = vpop.xlane.xlu0 %56
  %v58 = vsel %vm42, %v33, 0.0
  %59 = vadd.xlane.f32.xlu0 %v58
  %v60 = vpop.xlane.xlu0 %59
  %v61 = vsel %vm42, %v34, 0.0
  %62 = vadd.xlane.f32.xlu0 %v61
  %v63 = vpop.xlane.xlu0 %62
  %v64 = vsel %vm42, %v35, 0.0
  %65 = vadd.xlane.f32.xlu0 %v64
  %v66 = vpop.xlane.xlu0 %65
  %v67 = vsel %vm42, %v36, 0.0
  %68 = vadd.xlane.f32.xlu0 %v67
  %v69 = vpop.xlane.xlu0 %68
  %v70 = vsel %vm42, %v37, 0.0
  %71 = vadd.xlane.f32.xlu0 %v70
  %v72 = vpop.xlane.xlu0 %71
  %v73 = vsel %vm42, %v38, 0.0
  %74 = vadd.xlane.f32.xlu0 %v73
  %v75 = vpop.xlane.xlu0 %74
  %v76 = vsel %vm42, %v39, 0.0
  %77 = vadd.xlane.f32.xlu0 %v76
  %v78 = vpop.xlane.xlu0 %77
  %v79 = vsel %vm42, %v40, 0.0
  %80 = vadd.xlane.f32.xlu0 %v79
  %v81 = vpop.xlane.xlu0 %80
  %v82 = vsel %vm42, %v41, 0.0
  %83 = vadd.xlane.f32.xlu0 %v82
  %v84 = vpop.xlane.xlu0 %83
  %v85 = vmax.f32 %v45, 1e-07
  %v86 = vmax.f32 %v48, 1e-07
  %v87 = vmax.f32 %v51, 1e-07
  %v88 = vmax.f32 %v54, 1e-07
  %v89 = vmax.f32 %v57, 1e-07
  %v90 = vmax.f32 %v60, 1e-07
  %v91 = vmax.f32 %v63, 1e-07
  %v92 = vmax.f32 %v66, 1e-07
  %v93 = vmax.f32 %v69, 1e-07
  %v94 = vmax.f32 %v72, 1e-07
  %v95 = vmax.f32 %v75, 1e-07
  %v96 = vmax.f32 %v78, 1e-07
  %v97 = vmax.f32 %v81, 1e-07
  %v98 = vmax.f32 %v84, 1e-07
  %v99 = vrsqrt.pop %v85
  %v100 = vmul.f32 %v85, %v99
  %vm101 = vcmp.eq.f32.partialorder %v85, inf
  %v102 = vsel %vm101, %v85, %v100
  %vm103 = vcmp.eq.f32.partialorder %v85, 0.0
  %v104 = vand.u32 %v85, 2147483648
  %v105 = vsel %vm103, %v104, %v102
  %v106 = vrsqrt.pop %v86
  %v107 = vmul.f32 %v86, %v106
  %vm108 = vcmp.eq.f32.partialorder %v86, inf
  %v109 = vsel %vm108, %v86, %v107
  %vm110 = vcmp.eq.f32.partialorder %v86, 0.0
  %v111 = vand.u32 %v86, 2147483648
  %v112 = vsel %vm110, %v111, %v109
  %v113 = vrsqrt.pop %v87
  %v114 = vmul.f32 %v87, %v113
  %vm115 = vcmp.eq.f32.partialorder %v87, inf
  %v116 = vsel %vm115, %v87, %v114
  %vm117 = vcmp.eq.f32.partialorder %v87, 0.0
  %v118 = vand.u32 %v87, 2147483648
  %v119 = vsel %vm117, %v118, %v116
  %v120 = vrsqrt.pop %v88
  %v121 = vmul.f32 %v88, %v120
  %vm122 = vcmp.eq.f32.partialorder %v88, inf
  %v123 = vsel %vm122, %v88, %v121
  %vm124 = vcmp.eq.f32.partialorder %v88, 0.0
  %v125 = vand.u32 %v88, 2147483648
  %v126 = vsel %vm124, %v125, %v123
  %v127 = vrsqrt.pop %v89
  %v128 = vmul.f32 %v89, %v127
  %vm129 = vcmp.eq.f32.partialorder %v89, inf
  %v130 = vsel %vm129, %v89, %v128
  %vm131 = vcmp.eq.f32.partialorder %v89, 0.0
  %v132 = vand.u32 %v89, 2147483648
  %v133 = vsel %vm131, %v132, %v130
  %v134 = vrsqrt.pop %v90
  %v135 = vmul.f32 %v90, %v134
  %vm136 = vcmp.eq.f32.partialorder %v90, inf
  %v137 = vsel %vm136, %v90, %v135
  %vm138 = vcmp.eq.f32.partialorder %v90, 0.0
  %v139 = vand.u32 %v90, 2147483648
  %v140 = vsel %vm138, %v139, %v137
  %v141 = vrsqrt.pop %v91
  %v142 = vmul.f32 %v91, %v141
  %vm143 = vcmp.eq.f32.partialorder %v91, inf
  %v144 = vsel %vm143, %v91, %v142
  %vm145 = vcmp.eq.f32.partialorder %v91, 0.0
  %v146 = vand.u32 %v91, 2147483648
  %v147 = vsel %vm145, %v146, %v144
  %v148 = vrsqrt.pop %v92
  %v149 = vmul.f32 %v92, %v148
  %vm150 = vcmp.eq.f32.partialorder %v92, inf
  %v151 = vsel %vm150, %v92, %v149
  %vm152 = vcmp.eq.f32.partialorder %v92, 0.0
  %v153 = vand.u32 %v92, 2147483648
  %v154 = vsel %vm152, %v153, %v151
  %v155 = vrsqrt.pop %v93
  %v156 = vmul.f32 %v93, %v155
  %vm157 = vcmp.eq.f32.partialorder %v93, inf
  %v158 = vsel %vm157, %v93, %v156
  %vm159 = vcmp.eq.f32.partialorder %v93, 0.0
  %v160 = vand.u32 %v93, 2147483648
  %v161 = vsel %vm159, %v160, %v158
  %v162 = vrsqrt.pop %v94
  %v163 = vmul.f32 %v94, %v162
  %vm164 = vcmp.eq.f32.partialorder %v94, inf
  %v165 = vsel %vm164, %v94, %v163
  %vm166 = vcmp.eq.f32.partialorder %v94, 0.0
  %v167 = vand.u32 %v94, 2147483648
  %v168 = vsel %vm166, %v167, %v165
  %v169 = vrsqrt.pop %v95
  %v170 = vmul.f32 %v95, %v169
  %vm171 = vcmp.eq.f32.partialorder %v95, inf
  %v172 = vsel %vm171, %v95, %v170
  %vm173 = vcmp.eq.f32.partialorder %v95, 0.0
  %v174 = vand.u32 %v95, 2147483648
  %v175 = vsel %vm173, %v174, %v172
  %v176 = vrsqrt.pop %v96
  %v177 = vmul.f32 %v96, %v176
  %vm178 = vcmp.eq.f32.partialorder %v96, inf
  %v179 = vsel %vm178, %v96, %v177
  %vm180 = vcmp.eq.f32.partialorder %v96, 0.0
  %v181 = vand.u32 %v96, 2147483648
  %v182 = vsel %vm180, %v181, %v179
  %v183 = vrsqrt.pop %v97
  %v184 = vmul.f32 %v97, %v183
  %vm185 = vcmp.eq.f32.partialorder %v97, inf
  %v186 = vsel %vm185, %v97, %v184
  %vm187 = vcmp.eq.f32.partialorder %v97, 0.0
  %v188 = vand.u32 %v97, 2147483648
  %v189 = vsel %vm187, %v188, %v186
  %v190 = vrsqrt.pop %v98
  %v191 = vmul.f32 %v98, %v190
  %vm192 = vcmp.eq.f32.partialorder %v98, inf
  %v193 = vsel %vm192, %v98, %v191
  %vm194 = vcmp.eq.f32.partialorder %v98, 0.0
  %v195 = vand.u32 %v98, 2147483648
  %v196 = vsel %vm194, %v195, %v193
  %v197 = vmax.f32 %v105, 1e-07
  %v198 = vmax.f32 %v112, 1e-07
  %v199 = vmax.f32 %v119, 1e-07
  %v200 = vmax.f32 %v126, 1e-07
  %v201 = vmax.f32 %v133, 1e-07
  %v202 = vmax.f32 %v140, 1e-07
  %v203 = vmax.f32 %v147, 1e-07
  %v204 = vmax.f32 %v154, 1e-07
  %v205 = vmax.f32 %v161, 1e-07
  %v206 = vmax.f32 %v168, 1e-07
  %v207 = vmax.f32 %v175, 1e-07
  %v208 = vmax.f32 %v182, 1e-07
  %v209 = vmax.f32 %v189, 1e-07
  %v210 = vmax.f32 %v196, 1e-07
  %v211 = vmin.f32 %v197, 0.99999
  %v212 = vmin.f32 %v198, 0.99999
  %v213 = vmin.f32 %v199, 0.99999
  %v214 = vmin.f32 %v200, 0.99999
  %v215 = vmin.f32 %v201, 0.99999
  %v216 = vmin.f32 %v202, 0.99999
  %v217 = vmin.f32 %v203, 0.99999
  %v218 = vmin.f32 %v204, 0.99999
  %v219 = vmin.f32 %v205, 0.99999
  %v220 = vmin.f32 %v206, 0.99999
  %v221 = vmin.f32 %v207, 0.99999
  %v222 = vmin.f32 %v208, 0.99999
  %v223 = vmin.f32 %v209, 0.99999
  %v224 = vmin.f32 %v210, 0.99999
  %v225 = vadd.f32 %v211, 1.0
  %v226 = vlog2.pop %v225
  %v227 = vmul.f32 %v226, 0.6931472
  %v228 = vmul.f32 -0.5, %v211
  %v229 = vadd.f32 %v228, 1.0
  %v230 = vmul.f32 %v229, %v211
  %v231 = vand.u32 2147483647, %v211
  %vm232 = vcmp.lt.f32.partialorder %v231, 0.0004427343
  %v233 = vsel %vm232, %v230, %v227
  %v234 = vadd.f32 %v212, 1.0
  %v235 = vlog2.pop %v234
  %v236 = vmul.f32 %v235, 0.6931472
  %v237 = vmul.f32 -0.5, %v212
  %v238 = vadd.f32 %v237, 1.0
  %v239 = vmul.f32 %v238, %v212
  %v240 = vand.u32 2147483647, %v212
  %vm241 = vcmp.lt.f32.partialorder %v240, 0.0004427343
  %v242 = vsel %vm241, %v239, %v236
  %v243 = vadd.f32 %v213, 1.0
  %v244 = vlog2.pop %v243
  %v245 = vmul.f32 %v244, 0.6931472
  %v246 = vmul.f32 -0.5, %v213
  %v247 = vadd.f32 %v246, 1.0
  %v248 = vmul.f32 %v247, %v213
  %v249 = vand.u32 2147483647, %v213
  %vm250 = vcmp.lt.f32.partialorder %v249, 0.0004427343
  %v251 = vsel %vm250, %v248, %v245
  %v252 = vadd.f32 %v214, 1.0
  %v253 = vlog2.pop %v252
  %v254 = vmul.f32 %v253, 0.6931472
  %v255 = vmul.f32 -0.5, %v214
  %v256 = vadd.f32 %v255, 1.0
  %v257 = vmul.f32 %v256, %v214
  %v258 = vand.u32 2147483647, %v214
  %vm259 = vcmp.lt.f32.partialorder %v258, 0.0004427343
  %v260 = vsel %vm259, %v257, %v254
  %v261 = vadd.f32 %v215, 1.0
  %v262 = vlog2.pop %v261
  %v263 = vmul.f32 %v262, 0.6931472
  %v264 = vmul.f32 -0.5, %v215
  %v265 = vadd.f32 %v264, 1.0
  %v266 = vmul.f32 %v265, %v215
  %v267 = vand.u32 2147483647, %v215
  %vm268 = vcmp.lt.f32.partialorder %v267, 0.0004427343
  %v269 = vsel %vm268, %v266, %v263
  %v270 = vadd.f32 %v216, 1.0
  %v271 = vlog2.pop %v270
  %v272 = vmul.f32 %v271, 0.6931472
  %v273 = vmul.f32 -0.5, %v216
  %v274 = vadd.f32 %v273, 1.0
  %v275 = vmul.f32 %v274, %v216
  %v276 = vand.u32 2147483647, %v216
  %vm277 = vcmp.lt.f32.partialorder %v276, 0.0004427343
  %v278 = vsel %vm277, %v275, %v272
  %v279 = vadd.f32 %v217, 1.0
  %v280 = vlog2.pop %v279
  %v281 = vmul.f32 %v280, 0.6931472
  %v282 = vmul.f32 -0.5, %v217
  %v283 = vadd.f32 %v282, 1.0
  %v284 = vmul.f32 %v283, %v217
  %v285 = vand.u32 2147483647, %v217
  %vm286 = vcmp.lt.f32.partialorder %v285, 0.0004427343
  %v287 = vsel %vm286, %v284, %v281
  %v288 = vadd.f32 %v218, 1.0
  %v289 = vlog2.pop %v288
  %v290 = vmul.f32 %v289, 0.6931472
  %v291 = vmul.f32 -0.5, %v218
  %v292 = vadd.f32 %v291, 1.0
  %v293 = vmul.f32 %v292, %v218
  %v294 = vand.u32 2147483647, %v218
  %vm295 = vcmp.lt.f32.partialorder %v294, 0.0004427343
  %v296 = vsel %vm295, %v293, %v290
  %v297 = vadd.f32 %v219, 1.0
  %v298 = vlog2.pop %v297
  %v299 = vmul.f32 %v298, 0.6931472
  %v300 = vmul.f32 -0.5, %v219
  %v301 = vadd.f32 %v300, 1.0
  %v302 = vmul.f32 %v301, %v219
  %v303 = vand.u32 2147483647, %v219
  %vm304 = vcmp.lt.f32.partialorder %v303, 0.0004427343
  %v305 = vsel %vm304, %v302, %v299
  %v306 = vadd.f32 %v220, 1.0
  %v307 = vlog2.pop %v306
  %v308 = vmul.f32 %v307, 0.6931472
  %v309 = vmul.f32 -0.5, %v220
  %v310 = vadd.f32 %v309, 1.0
  %v311 = vmul.f32 %v310, %v220
  %v312 = vand.u32 2147483647, %v220
  %vm313 = vcmp.lt.f32.partialorder %v312, 0.0004427343
  %v314 = vsel %vm313, %v311, %v308
  %v315 = vadd.f32 %v221, 1.0
  %v316 = vlog2.pop %v315
  %v317 = vmul.f32 %v316, 0.6931472
  %v318 = vmul.f32 -0.5, %v221
  %v319 = vadd.f32 %v318, 1.0
  %v320 = vmul.f32 %v319, %v221
  %v321 = vand.u32 2147483647, %v221
  %vm322 = vcmp.lt.f32.partialorder %v321, 0.0004427343
  %v323 = vsel %vm322, %v320, %v317
  %v324 = vadd.f32 %v222, 1.0
  %v325 = vlog2.pop %v324
  %v326 = vmul.f32 %v325, 0.6931472
  %v327 = vmul.f32 -0.5, %v222
  %v328 = vadd.f32 %v327, 1.0
  %v329 = vmul.f32 %v328, %v222
  %v330 = vand.u32 2147483647, %v222
  %vm331 = vcmp.lt.f32.partialorder %v330, 0.0004427343
  %v332 = vsel %vm331, %v329, %v326
  %v333 = vadd.f32 %v223, 1.0
  %v334 = vlog2.pop %v333
  %v335 = vmul.f32 %v334, 0.6931472
  %v336 = vmul.f32 -0.5, %v223
  %v337 = vadd.f32 %v336, 1.0
  %v338 = vmul.f32 %v337, %v223
  %v339 = vand.u32 2147483647, %v223
  %vm340 = vcmp.lt.f32.partialorder %v339, 0.0004427343
  %v341 = vsel %vm340, %v338, %v335
  %v342 = vadd.f32 %v224, 1.0
  %v343 = vlog2.pop %v342
  %v344 = vmul.f32 %v343, 0.6931472
  %v345 = vmul.f32 -0.5, %v224
  %v346 = vadd.f32 %v345, 1.0
  %v347 = vmul.f32 %v346, %v224
  %v348 = vand.u32 2147483647, %v224
  %vm349 = vcmp.lt.f32.partialorder %v348, 0.0004427343
  %v350 = vsel %vm349, %v347, %v344
  %v351 = vsub.f32 0.0, %v211
  %v352 = vsub.f32 0.0, %v212
  %v353 = vsub.f32 0.0, %v213
  %v354 = vsub.f32 0.0, %v214
  %v355 = vsub.f32 0.0, %v215
  %v356 = vsub.f32 0.0, %v216
  %v357 = vsub.f32 0.0, %v217
  %v358 = vsub.f32 0.0, %v218
  %v359 = vsub.f32 0.0, %v219
  %v360 = vsub.f32 0.0, %v220
  %v361 = vsub.f32 0.0, %v221
  %v362 = vsub.f32 0.0, %v222
  %v363 = vsub.f32 0.0, %v223
  %v364 = vsub.f32 0.0, %v224
  %v365 = vadd.f32 %v351, 1.0
  %v366 = vlog2.pop %v365
  %v367 = vmul.f32 %v366, 0.6931472
  %v368 = vmul.f32 -0.5, %v351
  %v369 = vadd.f32 %v368, 1.0
  %v370 = vmul.f32 %v369, %v351
  %v371 = vand.u32 2147483647, %v351
  %vm372 = vcmp.lt.f32.partialorder %v371, 0.0004427343
  %v373 = vsel %vm372, %v370, %v367
  %v374 = vadd.f32 %v352, 1.0
  %v375 = vlog2.pop %v374
  %v376 = vmul.f32 %v375, 0.6931472
  %v377 = vmul.f32 -0.5, %v352
  %v378 = vadd.f32 %v377, 1.0
  %v379 = vmul.f32 %v378, %v352
  %v380 = vand.u32 2147483647, %v352
  %vm381 = vcmp.lt.f32.partialorder %v380, 0.0004427343
  %v382 = vsel %vm381, %v379, %v376
  %v383 = vadd.f32 %v353, 1.0
  %v384 = vlog2.pop %v383
  %v385 = vmul.f32 %v384, 0.6931472
  %v386 = vmul.f32 -0.5, %v353
  %v387 = vadd.f32 %v386, 1.0
  %v388 = vmul.f32 %v387, %v353
  %v389 = vand.u32 2147483647, %v353
  %vm390 = vcmp.lt.f32.partialorder %v389, 0.0004427343
  %v391 = vsel %vm390, %v388, %v385
  %v392 = vadd.f32 %v354, 1.0
  %v393 = vlog2.pop %v392
  %v394 = vmul.f32 %v393, 0.6931472
  %v395 = vmul.f32 -0.5, %v354
  %v396 = vadd.f32 %v395, 1.0
  %v397 = vmul.f32 %v396, %v354
  %v398 = vand.u32 2147483647, %v354
  %vm399 = vcmp.lt.f32.partialorder %v398, 0.0004427343
  %v400 = vsel %vm399, %v397, %v394
  %v401 = vadd.f32 %v355, 1.0
  %v402 = vlog2.pop %v401
  %v403 = vmul.f32 %v402, 0.6931472
  %v404 = vmul.f32 -0.5, %v355
  %v405 = vadd.f32 %v404, 1.0
  %v406 = vmul.f32 %v405, %v355
  %v407 = vand.u32 2147483647, %v355
  %vm408 = vcmp.lt.f32.partialorder %v407, 0.0004427343
  %v409 = vsel %vm408, %v406, %v403
  %v410 = vadd.f32 %v356, 1.0
  %v411 = vlog2.pop %v410
  %v412 = vmul.f32 %v411, 0.6931472
  %v413 = vmul.f32 -0.5, %v356
  %v414 = vadd.f32 %v413, 1.0
  %v415 = vmul.f32 %v414, %v356
  %v416 = vand.u32 2147483647, %v356
  %vm417 = vcmp.lt.f32.partialorder %v416, 0.0004427343
  %v418 = vsel %vm417, %v415, %v412
  %v419 = vadd.f32 %v357, 1.0
  %v420 = vlog2.pop %v419
  %v421 = vmul.f32 %v420, 0.6931472
  %v422 = vmul.f32 -0.5, %v357
  %v423 = vadd.f32 %v422, 1.0
  %v424 = vmul.f32 %v423, %v357
  %v425 = vand.u32 2147483647, %v357
  %vm426 = vcmp.lt.f32.partialorder %v425, 0.0004427343
  %v427 = vsel %vm426, %v424, %v421
  %v428 = vadd.f32 %v358, 1.0
  %v429 = vlog2.pop %v428
  %v430 = vmul.f32 %v429, 0.6931472
  %v431 = vmul.f32 -0.5, %v358
  %v432 = vadd.f32 %v431, 1.0
  %v433 = vmul.f32 %v432, %v358
  %v434 = vand.u32 2147483647, %v358
  %vm435 = vcmp.lt.f32.partialorder %v434, 0.0004427343
  %v436 = vsel %vm435, %v433, %v430
  %v437 = vadd.f32 %v359, 1.0
  %v438 = vlog2.pop %v437
  %v439 = vmul.f32 %v438, 0.6931472
  %v440 = vmul.f32 -0.5, %v359
  %v441 = vadd.f32 %v440, 1.0
  %v442 = vmul.f32 %v441, %v359
  %v443 = vand.u32 2147483647, %v359
  %vm444 = vcmp.lt.f32.partialorder %v443, 0.0004427343
  %v445 = vsel %vm444, %v442, %v439
  %v446 = vadd.f32 %v360, 1.0
  %v447 = vlog2.pop %v446
  %v448 = vmul.f32 %v447, 0.6931472
  %v449 = vmul.f32 -0.5, %v360
  %v450 = vadd.f32 %v449, 1.0
  %v451 = vmul.f32 %v450, %v360
  %v452 = vand.u32 2147483647, %v360
  %vm453 = vcmp.lt.f32.partialorder %v452, 0.0004427343
  %v454 = vsel %vm453, %v451, %v448
  %v455 = vadd.f32 %v361, 1.0
  %v456 = vlog2.pop %v455
  %v457 = vmul.f32 %v456, 0.6931472
  %v458 = vmul.f32 -0.5, %v361
  %v459 = vadd.f32 %v458, 1.0
  %v460 = vmul.f32 %v459, %v361
  %v461 = vand.u32 2147483647, %v361
  %vm462 = vcmp.lt.f32.partialorder %v461, 0.0004427343
  %v463 = vsel %vm462, %v460, %v457
  %v464 = vadd.f32 %v362, 1.0
  %v465 = vlog2.pop %v464
  %v466 = vmul.f32 %v465, 0.6931472
  %v467 = vmul.f32 -0.5, %v362
  %v468 = vadd.f32 %v467, 1.0
  %v469 = vmul.f32 %v468, %v362
  %v470 = vand.u32 2147483647, %v362
  %vm471 = vcmp.lt.f32.partialorder %v470, 0.0004427343
  %v472 = vsel %vm471, %v469, %v466
  %v473 = vadd.f32 %v363, 1.0
  %v474 = vlog2.pop %v473
  %v475 = vmul.f32 %v474, 0.6931472
  %v476 = vmul.f32 -0.5, %v363
  %v477 = vadd.f32 %v476, 1.0
  %v478 = vmul.f32 %v477, %v363
  %v479 = vand.u32 2147483647, %v363
  %vm480 = vcmp.lt.f32.partialorder %v479, 0.0004427343
  %v481 = vsel %vm480, %v478, %v475
  %v482 = vadd.f32 %v364, 1.0
  %v483 = vlog2.pop %v482
  %v484 = vmul.f32 %v483, 0.6931472
  %v485 = vmul.f32 -0.5, %v364
  %v486 = vadd.f32 %v485, 1.0
  %v487 = vmul.f32 %v486, %v364
  %v488 = vand.u32 2147483647, %v364
  %vm489 = vcmp.lt.f32.partialorder %v488, 0.0004427343
  %v490 = vsel %vm489, %v487, %v484
  %v491 = vsub.f32 %v233, %v373
  %v492 = vsub.f32 %v242, %v382
  %v493 = vsub.f32 %v251, %v391
  %v494 = vsub.f32 %v260, %v400
  %v495 = vsub.f32 %v269, %v409
  %v496 = vsub.f32 %v278, %v418
  %v497 = vsub.f32 %v287, %v427
  %v498 = vsub.f32 %v296, %v436
  %v499 = vsub.f32 %v305, %v445
  %v500 = vsub.f32 %v314, %v454
  %v501 = vsub.f32 %v323, %v463
  %v502 = vsub.f32 %v332, %v472
  %v503 = vsub.f32 %v341, %v481
  %v504 = vsub.f32 %v350, %v490
  %v505 = vmul.f32 %v491, 0.5
  %v506 = vmul.f32 %v492, 0.5
  %v507 = vmul.f32 %v493, 0.5
  %v508 = vmul.f32 %v494, 0.5
  %v509 = vmul.f32 %v495, 0.5
  %v510 = vmul.f32 %v496, 0.5
  %v511 = vmul.f32 %v497, 0.5
  %v512 = vmul.f32 %v498, 0.5
  %v513 = vmul.f32 %v499, 0.5
  %v514 = vmul.f32 %v500, 0.5
  %v515 = vmul.f32 %v501, 0.5
  %v516 = vmul.f32 %v502, 0.5
  %v517 = vmul.f32 %v503, 0.5
  %v518 = vmul.f32 %v504, 0.5
  %v519 = vrcp.pop %v105
  %v520 = vrcp.pop %v112
  %v521 = vrcp.pop %v119
  %v522 = vrcp.pop %v126
  %v523 = vrcp.pop %v133
  %v524 = vrcp.pop %v140
  %v525 = vrcp.pop %v147
  %v526 = vrcp.pop %v154
  %v527 = vrcp.pop %v161
  %v528 = vrcp.pop %v168
  %v529 = vrcp.pop %v175
  %v530 = vrcp.pop %v182
  %v531 = vrcp.pop %v189
  %v532 = vrcp.pop %v196
  %v533 = vmul.f32 %v505, %v519
  %v534 = vmul.f32 %v506, %v520
  %v535 = vmul.f32 %v507, %v521
  %v536 = vmul.f32 %v508, %v522
  %v537 = vmul.f32 %v509, %v523
  %v538 = vmul.f32 %v510, %v524
  %v539 = vmul.f32 %v511, %v525
  %v540 = vmul.f32 %v512, %v526
  %v541 = vmul.f32 %v513, %v527
  %v542 = vmul.f32 %v514, %v528
  %v543 = vmul.f32 %v515, %v529
  %v544 = vmul.f32 %v516, %v530
  %v545 = vmul.f32 %v517, %v531
  %v546 = vmul.f32 %v518, %v532
  %v547 = vmul.f32 %v14, %v533
  %v548 = vmul.f32 %v15, %v534
  %v549 = vmul.f32 %v16, %v535
  %v550 = vmul.f32 %v17, %v536
  %v551 = vmul.f32 %v18, %v537
  %v552 = vmul.f32 %v19, %v538
  %v553 = vmul.f32 %v20, %v539
  %v554 = vmul.f32 %v21, %v540
  %v555 = vmul.f32 %v22, %v541
  %v556 = vmul.f32 %v23, %v542
  %v557 = vmul.f32 %v24, %v543
  %v558 = vmul.f32 %v25, %v544
  %v559 = vmul.f32 %v26, %v545
  %v560 = vmul.f32 %v27, %v546
  %v561 = vld [vmem:[%s1] sm:$0xff]
  %v562 = vld [vmem:[%s1 + $0x8] sm:$0xff]
  %v563 = vld [vmem:[%s1 + $0x10] sm:$0xff]
  %v564 = vld [vmem:[%s1 + $0x18] sm:$0xff]
  %v565 = vld [vmem:[%s2] sm:$0x1]
  %v567 = vlaneseq
  %v568 = vshrl.u32 %v567, 7
  %v569 = vsub.s32 0, %v568
  %v570 = vrot.slane %v565, %v569
  %v573 = vsel %vm42, %v547, 0
  %v576 = vsel %vm42, %v548, 0
  %v579 = vsel %vm42, %v549, 0
  %v582 = vsel %vm42, %v550, 0
  %v585 = vsel %vm42, %v551, 0
  %v588 = vsel %vm42, %v552, 0
  %v591 = vsel %vm42, %v553, 0
  %v594 = vsel %vm42, %v554, 0
  %v597 = vsel %vm42, %v555, 0
  %v600 = vsel %vm42, %v556, 0
  %v603 = vsel %vm42, %v557, 0
  %v606 = vsel %vm42, %v558, 0
  %v609 = vsel %vm42, %v559, 0
  %v612 = vsel %vm42, %v560, 0
  %v615 = vsel %vm42, %v561, 0
  %v618 = vsel %vm42, %v562, 0
  %v621 = vsel %vm42, %v563, 0
  %v624 = vsel %vm42, %v564, 0
  %626 = vmatprep.subr.mxu0 0.0
  %627 = vmatpush1.xpose.msra.mxu0 %v615
  %628 = vmatprep.subr.mxu0 0.0
  %629 = vmatpush1.xpose.msra.mxu0 %v618
  %630 = vmatprep.subr.mxu0 0.0
  %631 = vmatpush1.xpose.msra.mxu0 %v621
  %632 = vmatprep.subr.mxu0 0.0
  %633 = vmatpush1.xpose.msra.mxu0 %v624
  %634 = vmatprep.subr.mxu0 0.0
  %635 = vmatpush1.xpose.msra.mxu0 0.0
  %636 = vmatprep.subr.mxu0 0.0
  %637 = vmatpush1.xpose.msra.mxu0 0.0
  %638 = vmatprep.subr.mxu0 0.0
  %639 = vmatpush1.xpose.msra.mxu0 0.0
  %640 = vmatprep.subr.mxu0 0.0
  %641 = vmatpush1.xpose.msra.mxu0 0.0
  %642 = vmatprep.subr.mxu0 0.0
  %643 = vmatpush1.xpose.msra.mxu0 0.0
  %644 = vmatprep.subr.mxu0 0.0
  %645 = vmatpush1.xpose.msra.mxu0 0.0
  %646 = vmatprep.subr.mxu0 0.0
  %647 = vmatpush1.xpose.msra.mxu0 0.0
  %648 = vmatprep.subr.mxu0 0.0
  %649 = vmatpush1.xpose.msra.mxu0 0.0
  %650 = vmatprep.subr.mxu0 0.0
  %651 = vmatpush1.xpose.msra.mxu0 0.0
  %652 = vmatprep.subr.mxu0 0.0
  %653 = vmatpush1.xpose.msra.mxu0 0.0
  %654 = vmatprep.subr.mxu0 0.0
  %655 = vmatpush1.xpose.msra.mxu0 0.0
  %656 = vmatprep.subr.mxu0 0.0
  %657 = vmatpush1.xpose.msra.mxu0 0.0
  %658 = vmatprep.subr.mxu0 0.0
  %659 = vmatpush1.xpose.msra.mxu0 0.0
  %660 = vmatprep.subr.mxu0 0.0
  %661 = vmatpush1.xpose.msra.mxu0 0.0
  %662 = vmatprep.subr.mxu0 0.0
  %663 = vmatpush1.xpose.msra.mxu0 0.0
  %664 = vmatprep.subr.mxu0 0.0
  %665 = vmatpush1.xpose.msra.mxu0 0.0
  %666 = vmatprep.subr.mxu0 0.0
  %667 = vmatpush1.xpose.msra.mxu0 0.0
  %668 = vmatprep.subr.mxu0 0.0
  %669 = vmatpush1.xpose.msra.mxu0 0.0
  %670 = vmatprep.subr.mxu0 0.0
  %671 = vmatpush1.xpose.msra.mxu0 0.0
  %672 = vmatprep.subr.mxu0 0.0
  %673 = vmatpush1.xpose.msra.mxu0 0.0
  %674 = vmatprep.subr.mxu0 0.0
  %675 = vmatpush1.xpose.msra.mxu0 0.0
  %676 = vmatprep.subr.mxu0 0.0
  %677 = vmatpush1.xpose.msra.mxu0 0.0
  %678 = vmatprep.subr.mxu0 0.0
  %679 = vmatpush1.xpose.msra.mxu0 0.0
  %680 = vmatprep.subr.mxu0 0.0
  %681 = vmatpush1.xpose.msra.mxu0 0.0
  %682 = vmatprep.subr.mxu0 0.0
  %683 = vmatpush1.xpose.msra.mxu0 0.0
  %684 = vmatprep.subr.mxu0 0.0
  %685 = vmatpush1.xpose.msra.mxu0 0.0
  %686 = vmatprep.subr.mxu0 0.0
  %687 = vmatpush1.xpose.msra.mxu0 0.0
  %688 = vmatprep.subr.mxu0 0.0
  %689 = vmatpush1.xpose.msra.mxu0 0.0
  %690 = vmatprep.mubr.f32.mxu0 0.0
  %691 = vmatmul.mubr.f32.gmra.mrb[0].mxu0 %v573
  %v692 = vpop.f32.mrb[0].mxu0
  %v693 = vadd.f32 %v570, %v692
  %v694 = vpop.f32.mrb[0].mxu0
  %695 = vmatprep.mubr.f32.mxu0 0.0
  %696 = vmatmul.mubr.f32.gmra.mrb[0].mxu0 %v576
  %v697 = vpop.f32.mrb[0].mxu0
  %v698 = vadd.f32 %v570, %v697
  %v699 = vpop.f32.mrb[0].mxu0
  %700 = vmatprep.mubr.f32.mxu0 0.0
  %701 = vmatmul.mubr.f32.gmra.mrb[0].mxu0 %v579
  %v702 = vpop.f32.mrb[0].mxu0
  %v703 = vadd.f32 %v570, %v702
  %v704 = vpop.f32.mrb[0].mxu0
  %705 = vmatprep.mubr.f32.mxu0 0.0
  %706 = vmatmul.mubr.f32.gmra.mrb[0].mxu0 %v582
  %v707 = vpop.f32.mrb[0].mxu0
  %v708 = vadd.f32 %v570, %v707
  %v709 = vpop.f32.mrb[0].mxu0
  %710 = vmatprep.mubr.f32.mxu0 0.0
  %711 = vmatmul.mubr.f32.gmra.mrb[0].mxu0 %v585
  %v712 = vpop.f32.mrb[0].mxu0
  %v713 = vadd.f32 %v570, %v712
  %v714 = vpop.f32.mrb[0].mxu0
  %715 = vmatprep.mubr.f32.mxu0 0.0
  %716 = vmatmul.mubr.f32.gmra.mrb[0].mxu0 %v588
  %v717 = vpop.f32.mrb[0].mxu0
  %v718 = vadd.f32 %v570, %v717
  %v719 = vpop.f32.mrb[0].mxu0
  %720 = vmatprep.mubr.f32.mxu0 0.0
  %721 = vmatmul.mubr.f32.gmra.mrb[0].mxu0 %v591
  %v722 = vpop.f32.mrb[0].mxu0
  %v723 = vadd.f32 %v570, %v722
  %v724 = vpop.f32.mrb[0].mxu0
  %725 = vmatprep.mubr.f32.mxu0 0.0
  %726 = vmatmul.mubr.f32.gmra.mrb[0].mxu0 %v594
  %v727 = vpop.f32.mrb[0].mxu0
  %v728 = vadd.f32 %v570, %v727
  %v729 = vpop.f32.mrb[0].mxu0
  %730 = vmatprep.mubr.f32.mxu0 0.0
  %731 = vmatmul.mubr.f32.gmra.mrb[0].mxu0 %v597
  %v732 = vpop.f32.mrb[0].mxu0
  %v733 = vadd.f32 %v570, %v732
  %v734 = vpop.f32.mrb[0].mxu0
  %735 = vmatprep.mubr.f32.mxu0 0.0
  %736 = vmatmul.mubr.f32.gmra.mrb[0].mxu0 %v600
  %v737 = vpop.f32.mrb[0].mxu0
  %v738 = vadd.f32 %v570, %v737
  %v739 = vpop.f32.mrb[0].mxu0
  %740 = vmatprep.mubr.f32.mxu0 0.0
  %741 = vmatmul.mubr.f32.gmra.mrb[0].mxu0 %v603
  %v742 = vpop.f32.mrb[0].mxu0
  %v743 = vadd.f32 %v570, %v742
  %v744 = vpop.f32.mrb[0].mxu0
  %745 = vmatprep.mubr.f32.mxu0 0.0
  %746 = vmatmul.mubr.f32.gmra.mrb[0].mxu0 %v606
  %v747 = vpop.f32.mrb[0].mxu0
  %v748 = vadd.f32 %v570, %v747
  %v749 = vpop.f32.mrb[0].mxu0
  %750 = vmatprep.mubr.f32.mxu0 0.0
  %751 = vmatmul.mubr.f32.gmra.mrb[0].mxu0 %v609
  %v752 = vpop.f32.mrb[0].mxu0
  %v753 = vadd.f32 %v570, %v752
  %v754 = vpop.f32.mrb[0].mxu0
  %755 = vmatprep.mubr.f32.mxu0 0.0
  %756 = vmatmul.mubr.f32.gmra.mrb[0].mxu0 %v612
  %v757 = vpop.f32.mrb[0].mxu0
  %v758 = vadd.f32 %v570, %v757
  %v759 = vpop.f32.mrb[0].mxu0
  %760 = vdwg.mxu0
  %v761 = vmul.f32 %v693, %v693
  %v762 = vmul.f32 %v698, %v698
  %v763 = vmul.f32 %v703, %v703
  %v764 = vmul.f32 %v708, %v708
  %v765 = vmul.f32 %v713, %v713
  %v766 = vmul.f32 %v718, %v718
  %v767 = vmul.f32 %v723, %v723
  %v768 = vmul.f32 %v728, %v728
  %v769 = vmul.f32 %v733, %v733
  %v770 = vmul.f32 %v738, %v738
  %v771 = vmul.f32 %v743, %v743
  %v772 = vmul.f32 %v748, %v748
  %v773 = vmul.f32 %v753, %v753
  %v774 = vmul.f32 %v758, %v758
  %v775 = vsel %vm42, %v761, 0.0
  %776 = vadd.xlane.f32.xlu0 %v775
  %v777 = vpop.xlane.xlu0 %776
  %v778 = vsel %vm42, %v762, 0.0
  %779 = vadd.xlane.f32.xlu0 %v778
  %v780 = vpop.xlane.xlu0 %779
  %v781 = vsel %vm42, %v763, 0.0
  %782 = vadd.xlane.f32.xlu0 %v781
  %v783 = vpop.xlane.xlu0 %782
  %v784 = vsel %vm42, %v764, 0.0
  %785 = vadd.xlane.f32.xlu0 %v784
  %v786 = vpop.xlane.xlu0 %785
  %v787 = vsel %vm42, %v765, 0.0
  %788 = vadd.xlane.f32.xlu0 %v787
  %v789 = vpop.xlane.xlu0 %788
  %v790 = vsel %vm42, %v766, 0.0
  %791 = vadd.xlane.f32.xlu0 %v790
  %v792 = vpop.xlane.xlu0 %791
  %v793 = vsel %vm42, %v767, 0.0
  %794 = vadd.xlane.f32.xlu0 %v793
  %v795 = vpop.xlane.xlu0 %794
  %v796 = vsel %vm42, %v768, 0.0
  %797 = vadd.xlane.f32.xlu0 %v796
  %v798 = vpop.xlane.xlu0 %797
  %v799 = vsel %vm42, %v769, 0.0
  %800 = vadd.xlane.f32.xlu0 %v799
  %v801 = vpop.xlane.xlu0 %800
  %v802 = vsel %vm42, %v770, 0.0
  %803 = vadd.xlane.f32.xlu0 %v802
  %v804 = vpop.xlane.xlu0 %803
  %v805 = vsel %vm42, %v771, 0.0
  %806 = vadd.xlane.f32.xlu0 %v805
  %v807 = vpop.xlane.xlu0 %806
  %v808 = vsel %vm42, %v772, 0.0
  %809 = vadd.xlane.f32.xlu0 %v808
  %v810 = vpop.xlane.xlu0 %809
  %v811 = vsel %vm42, %v773, 0.0
  %812 = vadd.xlane.f32.xlu0 %v811
  %v813 = vpop.xlane.xlu0 %812
  %v814 = vsel %vm42, %v774, 0.0
  %815 = vadd.xlane.f32.xlu0 %v814
  %v816 = vpop.xlane.xlu0 %815
  %v817 = vmax.f32 %v777, 1e-07
  %v818 = vmax.f32 %v780, 1e-07
  %v819 = vmax.f32 %v783, 1e-07
  %v820 = vmax.f32 %v786, 1e-07
  %v821 = vmax.f32 %v789, 1e-07
  %v822 = vmax.f32 %v792, 1e-07
  %v823 = vmax.f32 %v795, 1e-07
  %v824 = vmax.f32 %v798, 1e-07
  %v825 = vmax.f32 %v801, 1e-07
  %v826 = vmax.f32 %v804, 1e-07
  %v827 = vmax.f32 %v807, 1e-07
  %v828 = vmax.f32 %v810, 1e-07
  %v829 = vmax.f32 %v813, 1e-07
  %v830 = vmax.f32 %v816, 1e-07
  %v831 = vrsqrt.pop %v817
  %v832 = vmul.f32 %v817, %v831
  %vm833 = vcmp.eq.f32.partialorder %v817, inf
  %v834 = vsel %vm833, %v817, %v832
  %vm835 = vcmp.eq.f32.partialorder %v817, 0.0
  %v836 = vand.u32 %v817, 2147483648
  %v837 = vsel %vm835, %v836, %v834
  %v838 = vrsqrt.pop %v818
  %v839 = vmul.f32 %v818, %v838
  %vm840 = vcmp.eq.f32.partialorder %v818, inf
  %v841 = vsel %vm840, %v818, %v839
  %vm842 = vcmp.eq.f32.partialorder %v818, 0.0
  %v843 = vand.u32 %v818, 2147483648
  %v844 = vsel %vm842, %v843, %v841
  %v845 = vrsqrt.pop %v819
  %v846 = vmul.f32 %v819, %v845
  %vm847 = vcmp.eq.f32.partialorder %v819, inf
  %v848 = vsel %vm847, %v819, %v846
  %vm849 = vcmp.eq.f32.partialorder %v819, 0.0
  %v850 = vand.u32 %v819, 2147483648
  %v851 = vsel %vm849, %v850, %v848
  %v852 = vrsqrt.pop %v820
  %v853 = vmul.f32 %v820, %v852
  %vm854 = vcmp.eq.f32.partialorder %v820, inf
  %v855 = vsel %vm854, %v820, %v853
  %vm856 = vcmp.eq.f32.partialorder %v820, 0.0
  %v857 = vand.u32 %v820, 2147483648
  %v858 = vsel %vm856, %v857, %v855
  %v859 = vrsqrt.pop %v821
  %v860 = vmul.f32 %v821, %v859
  %vm861 = vcmp.eq.f32.partialorder %v821, inf
  %v862 = vsel %vm861, %v821, %v860
  %vm863 = vcmp.eq.f32.partialorder %v821, 0.0
  %v864 = vand.u32 %v821, 2147483648
  %v865 = vsel %vm863, %v864, %v862
  %v866 = vrsqrt.pop %v822
  %v867 = vmul.f32 %v822, %v866
  %vm868 = vcmp.eq.f32.partialorder %v822, inf
  %v869 = vsel %vm868, %v822, %v867
  %vm870 = vcmp.eq.f32.partialorder %v822, 0.0
  %v871 = vand.u32 %v822, 2147483648
  %v872 = vsel %vm870, %v871, %v869
  %v873 = vrsqrt.pop %v823
  %v874 = vmul.f32 %v823, %v873
  %vm875 = vcmp.eq.f32.partialorder %v823, inf
  %v876 = vsel %vm875, %v823, %v874
  %vm877 = vcmp.eq.f32.partialorder %v823, 0.0
  %v878 = vand.u32 %v823, 2147483648
  %v879 = vsel %vm877, %v878, %v876
  %v880 = vrsqrt.pop %v824
  %v881 = vmul.f32 %v824, %v880
  %vm882 = vcmp.eq.f32.partialorder %v824, inf
  %v883 = vsel %vm882, %v824, %v881
  %vm884 = vcmp.eq.f32.partialorder %v824, 0.0
  %v885 = vand.u32 %v824, 2147483648
  %v886 = vsel %vm884, %v885, %v883
  %v887 = vrsqrt.pop %v825
  %v888 = vmul.f32 %v825, %v887
  %vm889 = vcmp.eq.f32.partialorder %v825, inf
  %v890 = vsel %vm889, %v825, %v888
  %vm891 = vcmp.eq.f32.partialorder %v825, 0.0
  %v892 = vand.u32 %v825, 2147483648
  %v893 = vsel %vm891, %v892, %v890
  %v894 = vrsqrt.pop %v826
  %v895 = vmul.f32 %v826, %v894
  %vm896 = vcmp.eq.f32.partialorder %v826, inf
  %v897 = vsel %vm896, %v826, %v895
  %vm898 = vcmp.eq.f32.partialorder %v826, 0.0
  %v899 = vand.u32 %v826, 2147483648
  %v900 = vsel %vm898, %v899, %v897
  %v901 = vrsqrt.pop %v827
  %v902 = vmul.f32 %v827, %v901
  %vm903 = vcmp.eq.f32.partialorder %v827, inf
  %v904 = vsel %vm903, %v827, %v902
  %vm905 = vcmp.eq.f32.partialorder %v827, 0.0
  %v906 = vand.u32 %v827, 2147483648
  %v907 = vsel %vm905, %v906, %v904
  %v908 = vrsqrt.pop %v828
  %v909 = vmul.f32 %v828, %v908
  %vm910 = vcmp.eq.f32.partialorder %v828, inf
  %v911 = vsel %vm910, %v828, %v909
  %vm912 = vcmp.eq.f32.partialorder %v828, 0.0
  %v913 = vand.u32 %v828, 2147483648
  %v914 = vsel %vm912, %v913, %v911
  %v915 = vrsqrt.pop %v829
  %v916 = vmul.f32 %v829, %v915
  %vm917 = vcmp.eq.f32.partialorder %v829, inf
  %v918 = vsel %vm917, %v829, %v916
  %vm919 = vcmp.eq.f32.partialorder %v829, 0.0
  %v920 = vand.u32 %v829, 2147483648
  %v921 = vsel %vm919, %v920, %v918
  %v922 = vrsqrt.pop %v830
  %v923 = vmul.f32 %v830, %v922
  %vm924 = vcmp.eq.f32.partialorder %v830, inf
  %v925 = vsel %vm924, %v830, %v923
  %vm926 = vcmp.eq.f32.partialorder %v830, 0.0
  %v927 = vand.u32 %v830, 2147483648
  %v928 = vsel %vm926, %v927, %v925
  %v929 = vtanh.pop %v837
  %v930 = vtanh.pop %v844
  %v931 = vtanh.pop %v851
  %v932 = vtanh.pop %v858
  %v933 = vtanh.pop %v865
  %v934 = vtanh.pop %v872
  %v935 = vtanh.pop %v879
  %v936 = vtanh.pop %v886
  %v937 = vtanh.pop %v893
  %v938 = vtanh.pop %v900
  %v939 = vtanh.pop %v907
  %v940 = vtanh.pop %v914
  %v941 = vtanh.pop %v921
  %v942 = vtanh.pop %v928
  %v943 = vrcp.pop %v837
  %v944 = vrcp.pop %v844
  %v945 = vrcp.pop %v851
  %v946 = vrcp.pop %v858
  %v947 = vrcp.pop %v865
  %v948 = vrcp.pop %v872
  %v949 = vrcp.pop %v879
  %v950 = vrcp.pop %v886
  %v951 = vrcp.pop %v893
  %v952 = vrcp.pop %v900
  %v953 = vrcp.pop %v907
  %v954 = vrcp.pop %v914
  %v955 = vrcp.pop %v921
  %v956 = vrcp.pop %v928
  %v957 = vmul.f32 %v929, %v943
  %v958 = vmul.f32 %v930, %v944
  %v959 = vmul.f32 %v931, %v945
  %v960 = vmul.f32 %v932, %v946
  %v961 = vmul.f32 %v933, %v947
  %v962 = vmul.f32 %v934, %v948
  %v963 = vmul.f32 %v935, %v949
  %v964 = vmul.f32 %v936, %v950
  %v965 = vmul.f32 %v937, %v951
  %v966 = vmul.f32 %v938, %v952
  %v967 = vmul.f32 %v939, %v953
  %v968 = vmul.f32 %v940, %v954
  %v969 = vmul.f32 %v941, %v955
  %v970 = vmul.f32 %v942, %v956
  %v971 = vmul.f32 %v693, %v957
  %v972 = vmul.f32 %v698, %v958
  %v973 = vmul.f32 %v703, %v959
  %v974 = vmul.f32 %v708, %v960
  %v975 = vmul.f32 %v713, %v961
  %v976 = vmul.f32 %v718, %v962
  %v977 = vmul.f32 %v723, %v963
  %v978 = vmul.f32 %v728, %v964
  %v979 = vmul.f32 %v733, %v965
  %v980 = vmul.f32 %v738, %v966
  %v981 = vmul.f32 %v743, %v967
  %v982 = vmul.f32 %v748, %v968
  %v983 = vmul.f32 %v753, %v969
  %v984 = vmul.f32 %v758, %v970
  %v985 = vmul.f32 %v971, %v971
  %v986 = vmul.f32 %v972, %v972
  %v987 = vmul.f32 %v973, %v973
  %v988 = vmul.f32 %v974, %v974
  %v989 = vmul.f32 %v975, %v975
  %v990 = vmul.f32 %v976, %v976
  %v991 = vmul.f32 %v977, %v977
  %v992 = vmul.f32 %v978, %v978
  %v993 = vmul.f32 %v979, %v979
  %v994 = vmul.f32 %v980, %v980
  %v995 = vmul.f32 %v981, %v981
  %v996 = vmul.f32 %v982, %v982
  %v997 = vmul.f32 %v983, %v983
  %v998 = vmul.f32 %v984, %v984
  %v999 = vsel %vm42, %v985, 0.0
  %1000 = vadd.xlane.f32.xlu0 %v999
  %v1001 = vpop.xlane.xlu0 %1000
  %v1002 = vsel %vm42, %v986, 0.0
  %1003 = vadd.xlane.f32.xlu0 %v1002
  %v1004 = vpop.xlane.xlu0 %1003
  %v1005 = vsel %vm42, %v987, 0.0
  %1006 = vadd.xlane.f32.xlu0 %v1005
  %v1007 = vpop.xlane.xlu0 %1006
  %v1008 = vsel %vm42, %v988, 0.0
  %1009 = vadd.xlane.f32.xlu0 %v1008
  %v1010 = vpop.xlane.xlu0 %1009
  %v1011 = vsel %vm42, %v989, 0.0
  %1012 = vadd.xlane.f32.xlu0 %v1011
  %v1013 = vpop.xlane.xlu0 %1012
  %v1014 = vsel %vm42, %v990, 0.0
  %1015 = vadd.xlane.f32.xlu0 %v1014
  %v1016 = vpop.xlane.xlu0 %1015
  %v1017 = vsel %vm42, %v991, 0.0
  %1018 = vadd.xlane.f32.xlu0 %v1017
  %v1019 = vpop.xlane.xlu0 %1018
  %v1020 = vsel %vm42, %v992, 0.0
  %1021 = vadd.xlane.f32.xlu0 %v1020
  %v1022 = vpop.xlane.xlu0 %1021
  %v1023 = vsel %vm42, %v993, 0.0
  %1024 = vadd.xlane.f32.xlu0 %v1023
  %v1025 = vpop.xlane.xlu0 %1024
  %v1026 = vsel %vm42, %v994, 0.0
  %1027 = vadd.xlane.f32.xlu0 %v1026
  %v1028 = vpop.xlane.xlu0 %1027
  %v1029 = vsel %vm42, %v995, 0.0
  %1030 = vadd.xlane.f32.xlu0 %v1029
  %v1031 = vpop.xlane.xlu0 %1030
  %v1032 = vsel %vm42, %v996, 0.0
  %1033 = vadd.xlane.f32.xlu0 %v1032
  %v1034 = vpop.xlane.xlu0 %1033
  %v1035 = vsel %vm42, %v997, 0.0
  %1036 = vadd.xlane.f32.xlu0 %v1035
  %v1037 = vpop.xlane.xlu0 %1036
  %v1038 = vsel %vm42, %v998, 0.0
  %1039 = vadd.xlane.f32.xlu0 %v1038
  %v1040 = vpop.xlane.xlu0 %1039
  %v1041 = vmax.f32 %v1001, 1e-07
  %v1042 = vmax.f32 %v1004, 1e-07
  %v1043 = vmax.f32 %v1007, 1e-07
  %v1044 = vmax.f32 %v1010, 1e-07
  %v1045 = vmax.f32 %v1013, 1e-07
  %v1046 = vmax.f32 %v1016, 1e-07
  %v1047 = vmax.f32 %v1019, 1e-07
  %v1048 = vmax.f32 %v1022, 1e-07
  %v1049 = vmax.f32 %v1025, 1e-07
  %v1050 = vmax.f32 %v1028, 1e-07
  %v1051 = vmax.f32 %v1031, 1e-07
  %v1052 = vmax.f32 %v1034, 1e-07
  %v1053 = vmax.f32 %v1037, 1e-07
  %v1054 = vmax.f32 %v1040, 1e-07
  %v1055 = vrsqrt.pop %v1041
  %v1056 = vmul.f32 %v1041, %v1055
  %vm1057 = vcmp.eq.f32.partialorder %v1041, inf
  %v1058 = vsel %vm1057, %v1041, %v1056
  %vm1059 = vcmp.eq.f32.partialorder %v1041, 0.0
  %v1060 = vand.u32 %v1041, 2147483648
  %v1061 = vsel %vm1059, %v1060, %v1058
  %v1062 = vrsqrt.pop %v1042
  %v1063 = vmul.f32 %v1042, %v1062
  %vm1064 = vcmp.eq.f32.partialorder %v1042, inf
  %v1065 = vsel %vm1064, %v1042, %v1063
  %vm1066 = vcmp.eq.f32.partialorder %v1042, 0.0
  %v1067 = vand.u32 %v1042, 2147483648
  %v1068 = vsel %vm1066, %v1067, %v1065
  %v1069 = vrsqrt.pop %v1043
  %v1070 = vmul.f32 %v1043, %v1069
  %vm1071 = vcmp.eq.f32.partialorder %v1043, inf
  %v1072 = vsel %vm1071, %v1043, %v1070
  %vm1073 = vcmp.eq.f32.partialorder %v1043, 0.0
  %v1074 = vand.u32 %v1043, 2147483648
  %v1075 = vsel %vm1073, %v1074, %v1072
  %v1076 = vrsqrt.pop %v1044
  %v1077 = vmul.f32 %v1044, %v1076
  %vm1078 = vcmp.eq.f32.partialorder %v1044, inf
  %v1079 = vsel %vm1078, %v1044, %v1077
  %vm1080 = vcmp.eq.f32.partialorder %v1044, 0.0
  %v1081 = vand.u32 %v1044, 2147483648
  %v1082 = vsel %vm1080, %v1081, %v1079
  %v1083 = vrsqrt.pop %v1045
  %v1084 = vmul.f32 %v1045, %v1083
  %vm1085 = vcmp.eq.f32.partialorder %v1045, inf
  %v1086 = vsel %vm1085, %v1045, %v1084
  %vm1087 = vcmp.eq.f32.partialorder %v1045, 0.0
  %v1088 = vand.u32 %v1045, 2147483648
  %v1089 = vsel %vm1087, %v1088, %v1086
  %v1090 = vrsqrt.pop %v1046
  %v1091 = vmul.f32 %v1046, %v1090
  %vm1092 = vcmp.eq.f32.partialorder %v1046, inf
  %v1093 = vsel %vm1092, %v1046, %v1091
  %vm1094 = vcmp.eq.f32.partialorder %v1046, 0.0
  %v1095 = vand.u32 %v1046, 2147483648
  %v1096 = vsel %vm1094, %v1095, %v1093
  %v1097 = vrsqrt.pop %v1047
  %v1098 = vmul.f32 %v1047, %v1097
  %vm1099 = vcmp.eq.f32.partialorder %v1047, inf
  %v1100 = vsel %vm1099, %v1047, %v1098
  %vm1101 = vcmp.eq.f32.partialorder %v1047, 0.0
  %v1102 = vand.u32 %v1047, 2147483648
  %v1103 = vsel %vm1101, %v1102, %v1100
  %v1104 = vrsqrt.pop %v1048
  %v1105 = vmul.f32 %v1048, %v1104
  %vm1106 = vcmp.eq.f32.partialorder %v1048, inf
  %v1107 = vsel %vm1106, %v1048, %v1105
  %vm1108 = vcmp.eq.f32.partialorder %v1048, 0.0
  %v1109 = vand.u32 %v1048, 2147483648
  %v1110 = vsel %vm1108, %v1109, %v1107
  %v1111 = vrsqrt.pop %v1049
  %v1112 = vmul.f32 %v1049, %v1111
  %vm1113 = vcmp.eq.f32.partialorder %v1049, inf
  %v1114 = vsel %vm1113, %v1049, %v1112
  %vm1115 = vcmp.eq.f32.partialorder %v1049, 0.0
  %v1116 = vand.u32 %v1049, 2147483648
  %v1117 = vsel %vm1115, %v1116, %v1114
  %v1118 = vrsqrt.pop %v1050
  %v1119 = vmul.f32 %v1050, %v1118
  %vm1120 = vcmp.eq.f32.partialorder %v1050, inf
  %v1121 = vsel %vm1120, %v1050, %v1119
  %vm1122 = vcmp.eq.f32.partialorder %v1050, 0.0
  %v1123 = vand.u32 %v1050, 2147483648
  %v1124 = vsel %vm1122, %v1123, %v1121
  %v1125 = vrsqrt.pop %v1051
  %v1126 = vmul.f32 %v1051, %v1125
  %vm1127 = vcmp.eq.f32.partialorder %v1051, inf
  %v1128 = vsel %vm1127, %v1051, %v1126
  %vm1129 = vcmp.eq.f32.partialorder %v1051, 0.0
  %v1130 = vand.u32 %v1051, 2147483648
  %v1131 = vsel %vm1129, %v1130, %v1128
  %v1132 = vrsqrt.pop %v1052
  %v1133 = vmul.f32 %v1052, %v1132
  %vm1134 = vcmp.eq.f32.partialorder %v1052, inf
  %v1135 = vsel %vm1134, %v1052, %v1133
  %vm1136 = vcmp.eq.f32.partialorder %v1052, 0.0
  %v1137 = vand.u32 %v1052, 2147483648
  %v1138 = vsel %vm1136, %v1137, %v1135
  %v1139 = vrsqrt.pop %v1053
  %v1140 = vmul.f32 %v1053, %v1139
  %vm1141 = vcmp.eq.f32.partialorder %v1053, inf
  %v1142 = vsel %vm1141, %v1053, %v1140
  %vm1143 = vcmp.eq.f32.partialorder %v1053, 0.0
  %v1144 = vand.u32 %v1053, 2147483648
  %v1145 = vsel %vm1143, %v1144, %v1142
  %v1146 = vrsqrt.pop %v1054
  %v1147 = vmul.f32 %v1054, %v1146
  %vm1148 = vcmp.eq.f32.partialorder %v1054, inf
  %v1149 = vsel %vm1148, %v1054, %v1147
  %vm1150 = vcmp.eq.f32.partialorder %v1054, 0.0
  %v1151 = vand.u32 %v1054, 2147483648
  %v1152 = vsel %vm1150, %v1151, %v1149
  %vm1153 = vcmp.gt.f32.partialorder %v1061, 0.99999
  %vm1154 = vcmp.gt.f32.partialorder %v1068, 0.99999
  %vm1155 = vcmp.gt.f32.partialorder %v1075, 0.99999
  %vm1156 = vcmp.gt.f32.partialorder %v1082, 0.99999
  %vm1157 = vcmp.gt.f32.partialorder %v1089, 0.99999
  %vm1158 = vcmp.gt.f32.partialorder %v1096, 0.99999
  %vm1159 = vcmp.gt.f32.partialorder %v1103, 0.99999
  %vm1160 = vcmp.gt.f32.partialorder %v1110, 0.99999
  %vm1161 = vcmp.gt.f32.partialorder %v1117, 0.99999
  %vm1162 = vcmp.gt.f32.partialorder %v1124, 0.99999
  %vm1163 = vcmp.gt.f32.partialorder %v1131, 0.99999
  %vm1164 = vcmp.gt.f32.partialorder %v1138, 0.99999
  %vm1165 = vcmp.gt.f32.partialorder %v1145, 0.99999
  %vm1166 = vcmp.gt.f32.partialorder %v1152, 0.99999
  %v1167 = vrcp.pop %v1061
  %v1168 = vrcp.pop %v1068
  %v1169 = vrcp.pop %v1075
  %v1170 = vrcp.pop %v1082
  %v1171 = vrcp.pop %v1089
  %v1172 = vrcp.pop %v1096
  %v1173 = vrcp.pop %v1103
  %v1174 = vrcp.pop %v1110
  %v1175 = vrcp.pop %v1117
  %v1176 = vrcp.pop %v1124
  %v1177 = vrcp.pop %v1131
  %v1178 = vrcp.pop %v1138
  %v1179 = vrcp.pop %v1145
  %v1180 = vrcp.pop %v1152
  %v1181 = vmul.f32 %v1167, 0.99999
  %v1182 = vmul.f32 %v1168, 0.99999
  %v1183 = vmul.f32 %v1169, 0.99999
  %v1184 = vmul.f32 %v1170, 0.99999
  %v1185 = vmul.f32 %v1171, 0.99999
  %v1186 = vmul.f32 %v1172, 0.99999
  %v1187 = vmul.f32 %v1173, 0.99999
  %v1188 = vmul.f32 %v1174, 0.99999
  %v1189 = vmul.f32 %v1175, 0.99999
  %v1190 = vmul.f32 %v1176, 0.99999
  %v1191 = vmul.f32 %v1177, 0.99999
  %v1192 = vmul.f32 %v1178, 0.99999
  %v1193 = vmul.f32 %v1179, 0.99999
  %v1194 = vmul.f32 %v1180, 0.99999
  %v1195 = vmul.f32 %v971, %v1181
  %v1196 = vmul.f32 %v972, %v1182
  %v1197 = vmul.f32 %v973, %v1183
  %v1198 = vmul.f32 %v974, %v1184
  %v1199 = vmul.f32 %v975, %v1185
  %v1200 = vmul.f32 %v976, %v1186
  %v1201 = vmul.f32 %v977, %v1187
  %v1202 = vmul.f32 %v978, %v1188
  %v1203 = vmul.f32 %v979, %v1189
  %v1204 = vmul.f32 %v980, %v1190
  %v1205 = vmul.f32 %v981, %v1191
  %v1206 = vmul.f32 %v982, %v1192
  %v1207 = vmul.f32 %v983, %v1193
  %v1208 = vmul.f32 %v984, %v1194
  %v1209 = vsel %vm1153, 1, 0
  %v1210 = vsel %vm1154, 1, 0
  %v1211 = vsel %vm1155, 1, 0
  %v1212 = vsel %vm1156, 1, 0
  %v1213 = vsel %vm1157, 1, 0
  %v1214 = vsel %vm1158, 1, 0
  %v1215 = vsel %vm1159, 1, 0
  %v1216 = vsel %vm1160, 1, 0
  %v1217 = vsel %vm1161, 1, 0
  %v1218 = vsel %vm1162, 1, 0
  %v1219 = vsel %vm1163, 1, 0
  %v1220 = vsel %vm1164, 1, 0
  %v1221 = vsel %vm1165, 1, 0
  %v1222 = vsel %vm1166, 1, 0
  %vm1223 = vcmp.eq.s32.totalorder %v1209, 1
  %vm1224 = vcmp.eq.s32.totalorder %v1210, 1
  %vm1225 = vcmp.eq.s32.totalorder %v1211, 1
  %vm1226 = vcmp.eq.s32.totalorder %v1212, 1
  %vm1227 = vcmp.eq.s32.totalorder %v1213, 1
  %vm1228 = vcmp.eq.s32.totalorder %v1214, 1
  %vm1229 = vcmp.eq.s32.totalorder %v1215, 1
  %vm1230 = vcmp.eq.s32.totalorder %v1216, 1
  %vm1231 = vcmp.eq.s32.totalorder %v1217, 1
  %vm1232 = vcmp.eq.s32.totalorder %v1218, 1
  %vm1233 = vcmp.eq.s32.totalorder %v1219, 1
  %vm1234 = vcmp.eq.s32.totalorder %v1220, 1
  %vm1235 = vcmp.eq.s32.totalorder %v1221, 1
  %vm1236 = vcmp.eq.s32.totalorder %v1222, 1
  %v1237 = vsel %vm1223, %v1195, %v971
  %v1238 = vsel %vm1224, %v1196, %v972
  %v1239 = vsel %vm1225, %v1197, %v973
  %v1240 = vsel %vm1226, %v1198, %v974
  %v1241 = vsel %vm1227, %v1199, %v975
  %v1242 = vsel %vm1228, %v1200, %v976
  %v1243 = vsel %vm1229, %v1201, %v977
  %v1244 = vsel %vm1230, %v1202, %v978
  %v1245 = vsel %vm1231, %v1203, %v979
  %v1246 = vsel %vm1232, %v1204, %v980
  %v1247 = vsel %vm1233, %v1205, %v981
  %v1248 = vsel %vm1234, %v1206, %v982
  %v1249 = vsel %vm1235, %v1207, %v983
  %v1250 = vsel %vm1236, %v1208, %v984
  %1251 = vst.msk [vmem:[%s3] sm:$0xff] %vm42, %v1237
  %1252 = vst.msk [vmem:[%s3 + $0x8] sm:$0xff] %vm42, %v1238
  %1253 = vst.msk [vmem:[%s3 + $0x10] sm:$0xff] %vm42, %v1239
  %1254 = vst.msk [vmem:[%s3 + $0x18] sm:$0xff] %vm42, %v1240
  %1255 = vst.msk [vmem:[%s3 + $0x20] sm:$0xff] %vm42, %v1241
  %1256 = vst.msk [vmem:[%s3 + $0x28] sm:$0xff] %vm42, %v1242
  %1257 = vst.msk [vmem:[%s3 + $0x30] sm:$0xff] %vm42, %v1243
  %1258 = vst.msk [vmem:[%s3 + $0x38] sm:$0xff] %vm42, %v1244
  %1259 = vst.msk [vmem:[%s3 + $0x40] sm:$0xff] %vm42, %v1245
  %1260 = vst.msk [vmem:[%s3 + $0x48] sm:$0xff] %vm42, %v1246
  %1261 = vst.msk [vmem:[%s3 + $0x50] sm:$0xff] %vm42, %v1247
  %1262 = vst.msk [vmem:[%s3 + $0x58] sm:$0xff] %vm42, %v1248
  %1263 = vst.msk [vmem:[%s3 + $0x60] sm:$0xff] %vm42, %v1249
  %1264 = vst.msk [vmem:[%s3 + $0x68] sm:$0xff] %vm42, %v1250
  // Predicated region
  $region14: #{_forward_impl.9} parent=0 // pred_check
    _
  $region15: #{_forward_impl.9} parent=0 // pred_check_branch
    %1266 = sbr.rel (0) target = $region17
  $region16: #{_forward_impl.9} parent=0 // pred_region
    _
  $region17: #{_forward_impl.9} parent=0 // pred_fallthru
    _
  // Predicated region
  $region18: #{_forward_impl.9} parent=0 // pred_check
    _
  $region19: #{_forward_impl.9} parent=0 // pred_check_branch
    %1268 = sbr.rel (0) target = $region21
  $region20: #{_forward_impl.9} parent=0 // pred_region
    _
  $region21: #{_forward_impl.9} parent=0 // pred_fallthru
    _

// kernel: _forward_impl.6
$region0: #{_forward_impl.6}
  #allocation0 [shape = 'u32[]', space=smem, size = 0x4, offset = 0x4, fixed_abs, tag = 'smem constant byte address 0x4 - core index']
  #allocation1 [shape = 'u32[144,128]{1,0:T(1,128)}', space=vmem, size = 0x12000, scoped, tag = 'internal scratch']
  %s0 = inlined_call_operand.vmem [shape: f32[112,32], index: 0, kind: input, shape index: {}]
  %s1 = inlined_call_operand.vmem [shape: f32[32,32], index: 1, kind: input, shape index: {}]
  %s2 = inlined_call_operand.vmem [shape: f32[1,32], index: 2, kind: input, shape index: {}]
  %s3 = inlined_call_operand.vmem [shape: f32[112,32], index: 3, kind: output, shape index: {}]
  %s4 = sld [smem:[#allocation0]]
  $region22: #{_forward_impl.6} parent=0
    _
  %s6 = ssub.s32 1, %s4
  %s7 = scalar_select 0, %s6, %s4
  // Predicated region
  $region2: #{_forward_impl.6} parent=0 // pred_check
    _
  $region3: #{_forward_impl.6} parent=0 // pred_check_branch
    %9 = sbr.rel (0) target = $region5
  $region4: #{_forward_impl.6} parent=0 // pred_region
    _
  $region5: #{_forward_impl.6} parent=0 // pred_fallthru
    _
  // Predicated region
  $region6: #{_forward_impl.6} parent=0 // pred_check
    _
  $region7: #{_forward_impl.6} parent=0 // pred_check_branch
    %11 = sbr.rel (0) target = $region9
  $region8: #{_forward_impl.6} parent=0 // pred_region
    _
  $region9: #{_forward_impl.6} parent=0 // pred_fallthru
    _
  // Predicated region
  $region10: #{_forward_impl.6} parent=0 // pred_check
    _
  $region11: #{_forward_impl.6} parent=0 // pred_check_branch
    %13 = sbr.rel (0) target = $region13
  $region12: #{_forward_impl.6} parent=0 // pred_region
    _
  $region13: #{_forward_impl.6} parent=0 // pred_fallthru
    _
  %v14 = vld [vmem:[%s0] sm:$0xff]
  %v15 = vld [vmem:[%s0 + $0x8] sm:$0xff]
  %v16 = vld [vmem:[%s0 + $0x10] sm:$0xff]
  %v17 = vld [vmem:[%s0 + $0x18] sm:$0xff]
  %v18 = vld [vmem:[%s0 + $0x20] sm:$0xff]
  %v19 = vld [vmem:[%s0 + $0x28] sm:$0xff]
  %v20 = vld [vmem:[%s0 + $0x30] sm:$0xff]
  %v21 = vld [vmem:[%s0 + $0x38] sm:$0xff]
  %v22 = vld [vmem:[%s0 + $0x40] sm:$0xff]
  %v23 = vld [vmem:[%s0 + $0x48] sm:$0xff]
  %v24 = vld [vmem:[%s0 + $0x50] sm:$0xff]
  %v25 = vld [vmem:[%s0 + $0x58] sm:$0xff]
  %v26 = vld [vmem:[%s0 + $0x60] sm:$0xff]
  %v27 = vld [vmem:[%s0 + $0x68] sm:$0xff]
  %v28 = vmul.f32 %v14, %v14
  %v29 = vmul.f32 %v15, %v15
  %v30 = vmul.f32 %v16, %v16
  %v31 = vmul.f32 %v17, %v17
  %v32 = vmul.f32 %v18, %v18
  %v33 = vmul.f32 %v19, %v19
  %v34 = vmul.f32 %v20, %v20
  %v35 = vmul.f32 %v21, %v21
  %v36 = vmul.f32 %v22, %v22
  %v37 = vmul.f32 %v23, %v23
  %v38 = vmul.f32 %v24, %v24
  %v39 = vmul.f32 %v25, %v25
  %v40 = vmul.f32 %v26, %v26
  %v41 = vmul.f32 %v27, %v27
  %vm42 = vcmask 261120
  %v43 = vsel %vm42, %v28, 0.0
  %44 = vadd.xlane.f32.xlu0 %v43
  %v45 = vpop.xlane.xlu0 %44
  %v46 = vsel %vm42, %v29, 0.0
  %47 = vadd.xlane.f32.xlu0 %v46
  %v48 = vpop.xlane.xlu0 %47
  %v49 = vsel %vm42, %v30, 0.0
  %50 = vadd.xlane.f32.xlu0 %v49
  %v51 = vpop.xlane.xlu0 %50
  %v52 = vsel %vm42, %v31, 0.0
  %53 = vadd.xlane.f32.xlu0 %v52
  %v54 = vpop.xlane.xlu0 %53
  %v55 = vsel %vm42, %v32, 0.0
  %56 = vadd.xlane.f32.xlu0 %v55
  %v57 = vpop.xlane.xlu0 %56
  %v58 = vsel %vm42, %v33, 0.0
  %59 = vadd.xlane.f32.xlu0 %v58
  %v60 = vpop.xlane.xlu0 %59
  %v61 = vsel %vm42, %v34, 0.0
  %62 = vadd.xlane.f32.xlu0 %v61
  %v63 = vpop.xlane.xlu0 %62
  %v64 = vsel %vm42, %v35, 0.0
  %65 = vadd.xlane.f32.xlu0 %v64
  %v66 = vpop.xlane.xlu0 %65
  %v67 = vsel %vm42, %v36, 0.0
  %68 = vadd.xlane.f32.xlu0 %v67
  %v69 = vpop.xlane.xlu0 %68
  %v70 = vsel %vm42, %v37, 0.0
  %71 = vadd.xlane.f32.xlu0 %v70
  %v72 = vpop.xlane.xlu0 %71
  %v73 = vsel %vm42, %v38, 0.0
  %74 = vadd.xlane.f32.xlu0 %v73
  %v75 = vpop.xlane.xlu0 %74
  %v76 = vsel %vm42, %v39, 0.0
  %77 = vadd.xlane.f32.xlu0 %v76
  %v78 = vpop.xlane.xlu0 %77
  %v79 = vsel %vm42, %v40, 0.0
  %80 = vadd.xlane.f32.xlu0 %v79
  %v81 = vpop.xlane.xlu0 %80
  %v82 = vsel %vm42, %v41, 0.0
  %83 = vadd.xlane.f32.xlu0 %v82
  %v84 = vpop.xlane.xlu0 %83
  %v85 = vmax.f32 %v45, 1e-07
  %v86 = vmax.f32 %v48, 1e-07
  %v87 = vmax.f32 %v51, 1e-07
  %v88 = vmax.f32 %v54, 1e-07
  %v89 = vmax.f32 %v57, 1e-07
  %v90 = vmax.f32 %v60, 1e-07
  %v91 = vmax.f32 %v63, 1e-07
  %v92 = vmax.f32 %v66, 1e-07
  %v93 = vmax.f32 %v69, 1e-07
  %v94 = vmax.f32 %v72, 1e-07
  %v95 = vmax.f32 %v75, 1e-07
  %v96 = vmax.f32 %v78, 1e-07
  %v97 = vmax.f32 %v81, 1e-07
  %v98 = vmax.f32 %v84, 1e-07
  %v99 = vrsqrt.pop %v85
  %v100 = vmul.f32 %v85, %v99
  %vm101 = vcmp.eq.f32.partialorder %v85, inf
  %v102 = vsel %vm101, %v85, %v100
  %vm103 = vcmp.eq.f32.partialorder %v85, 0.0
  %v104 = vand.u32 %v85, 2147483648
  %v105 = vsel %vm103, %v104, %v102
  %v106 = vrsqrt.pop %v86
  %v107 = vmul.f32 %v86, %v106
  %vm108 = vcmp.eq.f32.partialorder %v86, inf
  %v109 = vsel %vm108, %v86, %v107
  %vm110 = vcmp.eq.f32.partialorder %v86, 0.0
  %v111 = vand.u32 %v86, 2147483648
  %v112 = vsel %vm110, %v111, %v109
  %v113 = vrsqrt.pop %v87
  %v114 = vmul.f32 %v87, %v113
  %vm115 = vcmp.eq.f32.partialorder %v87, inf
  %v116 = vsel %vm115, %v87, %v114
  %vm117 = vcmp.eq.f32.partialorder %v87, 0.0
  %v118 = vand.u32 %v87, 2147483648
  %v119 = vsel %vm117, %v118, %v116
  %v120 = vrsqrt.pop %v88
  %v121 = vmul.f32 %v88, %v120
  %vm122 = vcmp.eq.f32.partialorder %v88, inf
  %v123 = vsel %vm122, %v88, %v121
  %vm124 = vcmp.eq.f32.partialorder %v88, 0.0
  %v125 = vand.u32 %v88, 2147483648
  %v126 = vsel %vm124, %v125, %v123
  %v127 = vrsqrt.pop %v89
  %v128 = vmul.f32 %v89, %v127
  %vm129 = vcmp.eq.f32.partialorder %v89, inf
  %v130 = vsel %vm129, %v89, %v128
  %vm131 = vcmp.eq.f32.partialorder %v89, 0.0
  %v132 = vand.u32 %v89, 2147483648
  %v133 = vsel %vm131, %v132, %v130
  %v134 = vrsqrt.pop %v90
  %v135 = vmul.f32 %v90, %v134
  %vm136 = vcmp.eq.f32.partialorder %v90, inf
  %v137 = vsel %vm136, %v90, %v135
  %vm138 = vcmp.eq.f32.partialorder %v90, 0.0
  %v139 = vand.u32 %v90, 2147483648
  %v140 = vsel %vm138, %v139, %v137
  %v141 = vrsqrt.pop %v91
  %v142 = vmul.f32 %v91, %v141
  %vm143 = vcmp.eq.f32.partialorder %v91, inf
  %v144 = vsel %vm143, %v91, %v142
  %vm145 = vcmp.eq.f32.partialorder %v91, 0.0
  %v146 = vand.u32 %v91, 2147483648
  %v147 = vsel %vm145, %v146, %v144
  %v148 = vrsqrt.pop %v92
  %v149 = vmul.f32 %v92, %v148
  %vm150 = vcmp.eq.f32.partialorder %v92, inf
  %v151 = vsel %vm150, %v92, %v149
  %vm152 = vcmp.eq.f32.partialorder %v92, 0.0
  %v153 = vand.u32 %v92, 2147483648
  %v154 = vsel %vm152, %v153, %v151
  %v155 = vrsqrt.pop %v93
  %v156 = vmul.f32 %v93, %v155
  %vm157 = vcmp.eq.f32.partialorder %v93, inf
  %v158 = vsel %vm157, %v93, %v156
  %vm159 = vcmp.eq.f32.partialorder %v93, 0.0
  %v160 = vand.u32 %v93, 2147483648
  %v161 = vsel %vm159, %v160, %v158
  %v162 = vrsqrt.pop %v94
  %v163 = vmul.f32 %v94, %v162
  %vm164 = vcmp.eq.f32.partialorder %v94, inf
  %v165 = vsel %vm164, %v94, %v163
  %vm166 = vcmp.eq.f32.partialorder %v94, 0.0
  %v167 = vand.u32 %v94, 2147483648
  %v168 = vsel %vm166, %v167, %v165
  %v169 = vrsqrt.pop %v95
  %v170 = vmul.f32 %v95, %v169
  %vm171 = vcmp.eq.f32.partialorder %v95, inf
  %v172 = vsel %vm171, %v95, %v170
  %vm173 = vcmp.eq.f32.partialorder %v95, 0.0
  %v174 = vand.u32 %v95, 2147483648
  %v175 = vsel %vm173, %v174, %v172
  %v176 = vrsqrt.pop %v96
  %v177 = vmul.f32 %v96, %v176
  %vm178 = vcmp.eq.f32.partialorder %v96, inf
  %v179 = vsel %vm178, %v96, %v177
  %vm180 = vcmp.eq.f32.partialorder %v96, 0.0
  %v181 = vand.u32 %v96, 2147483648
  %v182 = vsel %vm180, %v181, %v179
  %v183 = vrsqrt.pop %v97
  %v184 = vmul.f32 %v97, %v183
  %vm185 = vcmp.eq.f32.partialorder %v97, inf
  %v186 = vsel %vm185, %v97, %v184
  %vm187 = vcmp.eq.f32.partialorder %v97, 0.0
  %v188 = vand.u32 %v97, 2147483648
  %v189 = vsel %vm187, %v188, %v186
  %v190 = vrsqrt.pop %v98
  %v191 = vmul.f32 %v98, %v190
  %vm192 = vcmp.eq.f32.partialorder %v98, inf
  %v193 = vsel %vm192, %v98, %v191
  %vm194 = vcmp.eq.f32.partialorder %v98, 0.0
  %v195 = vand.u32 %v98, 2147483648
  %v196 = vsel %vm194, %v195, %v193
  %v197 = vmax.f32 %v105, 1e-07
  %v198 = vmax.f32 %v112, 1e-07
  %v199 = vmax.f32 %v119, 1e-07
  %v200 = vmax.f32 %v126, 1e-07
  %v201 = vmax.f32 %v133, 1e-07
  %v202 = vmax.f32 %v140, 1e-07
  %v203 = vmax.f32 %v147, 1e-07
  %v204 = vmax.f32 %v154, 1e-07
  %v205 = vmax.f32 %v161, 1e-07
  %v206 = vmax.f32 %v168, 1e-07
  %v207 = vmax.f32 %v175, 1e-07
  %v208 = vmax.f32 %v182, 1e-07
  %v209 = vmax.f32 %v189, 1e-07
  %v210 = vmax.f32 %v196, 1e-07
  %v211 = vmin.f32 %v197, 0.99999
  %v212 = vmin.f32 %v198, 0.99999
  %v213 = vmin.f32 %v199, 0.99999
  %v214 = vmin.f32 %v200, 0.99999
  %v215 = vmin.f32 %v201, 0.99999
  %v216 = vmin.f32 %v202, 0.99999
  %v217 = vmin.f32 %v203, 0.99999
  %v218 = vmin.f32 %v204, 0.99999
  %v219 = vmin.f32 %v205, 0.99999
  %v220 = vmin.f32 %v206, 0.99999
  %v221 = vmin.f32 %v207, 0.99999
  %v222 = vmin.f32 %v208, 0.99999
  %v223 = vmin.f32 %v209, 0.99999
  %v224 = vmin.f32 %v210, 0.99999
  %v225 = vadd.f32 %v211, 1.0
  %v226 = vlog2.pop %v225
  %v227 = vmul.f32 %v226, 0.6931472
  %v228 = vmul.f32 -0.5, %v211
  %v229 = vadd.f32 %v228, 1.0
  %v230 = vmul.f32 %v229, %v211
  %v231 = vand.u32 2147483647, %v211
  %vm232 = vcmp.lt.f32.partialorder %v231, 0.0004427343
  %v233 = vsel %vm232, %v230, %v227
  %v234 = vadd.f32 %v212, 1.0
  %v235 = vlog2.pop %v234
  %v236 = vmul.f32 %v235, 0.6931472
  %v237 = vmul.f32 -0.5, %v212
  %v238 = vadd.f32 %v237, 1.0
  %v239 = vmul.f32 %v238, %v212
  %v240 = vand.u32 2147483647, %v212
  %vm241 = vcmp.lt.f32.partialorder %v240, 0.0004427343
  %v242 = vsel %vm241, %v239, %v236
  %v243 = vadd.f32 %v213, 1.0
  %v244 = vlog2.pop %v243
  %v245 = vmul.f32 %v244, 0.6931472
  %v246 = vmul.f32 -0.5, %v213
  %v247 = vadd.f32 %v246, 1.0
  %v248 = vmul.f32 %v247, %v213
  %v249 = vand.u32 2147483647, %v213
  %vm250 = vcmp.lt.f32.partialorder %v249, 0.0004427343
  %v251 = vsel %vm250, %v248, %v245
  %v252 = vadd.f32 %v214, 1.0
  %v253 = vlog2.pop %v252
  %v254 = vmul.f32 %v253, 0.6931472
  %v255 = vmul.f32 -0.5, %v214
  %v256 = vadd.f32 %v255, 1.0
  %v257 = vmul.f32 %v256, %v214
  %v258 = vand.u32 2147483647, %v214
  %vm259 = vcmp.lt.f32.partialorder %v258, 0.0004427343
  %v260 = vsel %vm259, %v257, %v254
  %v261 = vadd.f32 %v215, 1.0
  %v262 = vlog2.pop %v261
  %v263 = vmul.f32 %v262, 0.6931472
  %v264 = vmul.f32 -0.5, %v215
  %v265 = vadd.f32 %v264, 1.0
  %v266 = vmul.f32 %v265, %v215
  %v267 = vand.u32 2147483647, %v215
  %vm268 = vcmp.lt.f32.partialorder %v267, 0.0004427343
  %v269 = vsel %vm268, %v266, %v263
  %v270 = vadd.f32 %v216, 1.0
  %v271 = vlog2.pop %v270
  %v272 = vmul.f32 %v271, 0.6931472
  %v273 = vmul.f32 -0.5, %v216
  %v274 = vadd.f32 %v273, 1.0
  %v275 = vmul.f32 %v274, %v216
  %v276 = vand.u32 2147483647, %v216
  %vm277 = vcmp.lt.f32.partialorder %v276, 0.0004427343
  %v278 = vsel %vm277, %v275, %v272
  %v279 = vadd.f32 %v217, 1.0
  %v280 = vlog2.pop %v279
  %v281 = vmul.f32 %v280, 0.6931472
  %v282 = vmul.f32 -0.5, %v217
  %v283 = vadd.f32 %v282, 1.0
  %v284 = vmul.f32 %v283, %v217
  %v285 = vand.u32 2147483647, %v217
  %vm286 = vcmp.lt.f32.partialorder %v285, 0.0004427343
  %v287 = vsel %vm286, %v284, %v281
  %v288 = vadd.f32 %v218, 1.0
  %v289 = vlog2.pop %v288
  %v290 = vmul.f32 %v289, 0.6931472
  %v291 = vmul.f32 -0.5, %v218
  %v292 = vadd.f32 %v291, 1.0
  %v293 = vmul.f32 %v292, %v218
  %v294 = vand.u32 2147483647, %v218
  %vm295 = vcmp.lt.f32.partialorder %v294, 0.0004427343
  %v296 = vsel %vm295, %v293, %v290
  %v297 = vadd.f32 %v219, 1.0
  %v298 = vlog2.pop %v297
  %v299 = vmul.f32 %v298, 0.6931472
  %v300 = vmul.f32 -0.5, %v219
  %v301 = vadd.f32 %v300, 1.0
  %v302 = vmul.f32 %v301, %v219
  %v303 = vand.u32 2147483647, %v219
  %vm304 = vcmp.lt.f32.partialorder %v303, 0.0004427343
  %v305 = vsel %vm304, %v302, %v299
  %v306 = vadd.f32 %v220, 1.0
  %v307 = vlog2.pop %v306
  %v308 = vmul.f32 %v307, 0.6931472
  %v309 = vmul.f32 -0.5, %v220
  %v310 = vadd.f32 %v309, 1.0
  %v311 = vmul.f32 %v310, %v220
  %v312 = vand.u32 2147483647, %v220
  %vm313 = vcmp.lt.f32.partialorder %v312, 0.0004427343
  %v314 = vsel %vm313, %v311, %v308
  %v315 = vadd.f32 %v221, 1.0
  %v316 = vlog2.pop %v315
  %v317 = vmul.f32 %v316, 0.6931472
  %v318 = vmul.f32 -0.5, %v221
  %v319 = vadd.f32 %v318, 1.0
  %v320 = vmul.f32 %v319, %v221
  %v321 = vand.u32 2147483647, %v221
  %vm322 = vcmp.lt.f32.partialorder %v321, 0.0004427343
  %v323 = vsel %vm322, %v320, %v317
  %v324 = vadd.f32 %v222, 1.0
  %v325 = vlog2.pop %v324
  %v326 = vmul.f32 %v325, 0.6931472
  %v327 = vmul.f32 -0.5, %v222
  %v328 = vadd.f32 %v327, 1.0
  %v329 = vmul.f32 %v328, %v222
  %v330 = vand.u32 2147483647, %v222
  %vm331 = vcmp.lt.f32.partialorder %v330, 0.0004427343
  %v332 = vsel %vm331, %v329, %v326
  %v333 = vadd.f32 %v223, 1.0
  %v334 = vlog2.pop %v333
  %v335 = vmul.f32 %v334, 0.6931472
  %v336 = vmul.f32 -0.5, %v223
  %v337 = vadd.f32 %v336, 1.0
  %v338 = vmul.f32 %v337, %v223
  %v339 = vand.u32 2147483647, %v223
  %vm340 = vcmp.lt.f32.partialorder %v339, 0.0004427343
  %v341 = vsel %vm340, %v338, %v335
  %v342 = vadd.f32 %v224, 1.0
  %v343 = vlog2.pop %v342
  %v344 = vmul.f32 %v343, 0.6931472
  %v345 = vmul.f32 -0.5, %v224
  %v346 = vadd.f32 %v345, 1.0
  %v347 = vmul.f32 %v346, %v224
  %v348 = vand.u32 2147483647, %v224
  %vm349 = vcmp.lt.f32.partialorder %v348, 0.0004427343
  %v350 = vsel %vm349, %v347, %v344
  %v351 = vsub.f32 0.0, %v211
  %v352 = vsub.f32 0.0, %v212
  %v353 = vsub.f32 0.0, %v213
  %v354 = vsub.f32 0.0, %v214
  %v355 = vsub.f32 0.0, %v215
  %v356 = vsub.f32 0.0, %v216
  %v357 = vsub.f32 0.0, %v217
  %v358 = vsub.f32 0.0, %v218
  %v359 = vsub.f32 0.0, %v219
  %v360 = vsub.f32 0.0, %v220
  %v361 = vsub.f32 0.0, %v221
  %v362 = vsub.f32 0.0, %v222
  %v363 = vsub.f32 0.0, %v223
  %v364 = vsub.f32 0.0, %v224
  %v365 = vadd.f32 %v351, 1.0
  %v366 = vlog2.pop %v365
  %v367 = vmul.f32 %v366, 0.6931472
  %v368 = vmul.f32 -0.5, %v351
  %v369 = vadd.f32 %v368, 1.0
  %v370 = vmul.f32 %v369, %v351
  %v371 = vand.u32 2147483647, %v351
  %vm372 = vcmp.lt.f32.partialorder %v371, 0.0004427343
  %v373 = vsel %vm372, %v370, %v367
  %v374 = vadd.f32 %v352, 1.0
  %v375 = vlog2.pop %v374
  %v376 = vmul.f32 %v375, 0.6931472
  %v377 = vmul.f32 -0.5, %v352
  %v378 = vadd.f32 %v377, 1.0
  %v379 = vmul.f32 %v378, %v352
  %v380 = vand.u32 2147483647, %v352
  %vm381 = vcmp.lt.f32.partialorder %v380, 0.0004427343
  %v382 = vsel %vm381, %v379, %v376
  %v383 = vadd.f32 %v353, 1.0
  %v384 = vlog2.pop %v383
  %v385 = vmul.f32 %v384, 0.6931472
  %v386 = vmul.f32 -0.5, %v353
  %v387 = vadd.f32 %v386, 1.0
  %v388 = vmul.f32 %v387, %v353
  %v389 = vand.u32 2147483647, %v353
  %vm390 = vcmp.lt.f32.partialorder %v389, 0.0004427343
  %v391 = vsel %vm390, %v388, %v385
  %v392 = vadd.f32 %v354, 1.0
  %v393 = vlog2.pop %v392
  %v394 = vmul.f32 %v393, 0.6931472
  %v395 = vmul.f32 -0.5, %v354
  %v396 = vadd.f32 %v395, 1.0
  %v397 = vmul.f32 %v396, %v354
  %v398 = vand.u32 2147483647, %v354
  %vm399 = vcmp.lt.f32.partialorder %v398, 0.0004427343
  %v400 = vsel %vm399, %v397, %v394
  %v401 = vadd.f32 %v355, 1.0
  %v402 = vlog2.pop %v401
  %v403 = vmul.f32 %v402, 0.6931472
  %v404 = vmul.f32 -0.5, %v355
  %v405 = vadd.f32 %v404, 1.0
  %v406 = vmul.f32 %v405, %v355
  %v407 = vand.u32 2147483647, %v355
  %vm408 = vcmp.lt.f32.partialorder %v407, 0.0004427343
  %v409 = vsel %vm408, %v406, %v403
  %v410 = vadd.f32 %v356, 1.0
  %v411 = vlog2.pop %v410
  %v412 = vmul.f32 %v411, 0.6931472
  %v413 = vmul.f32 -0.5, %v356
  %v414 = vadd.f32 %v413, 1.0
  %v415 = vmul.f32 %v414, %v356
  %v416 = vand.u32 2147483647, %v356
  %vm417 = vcmp.lt.f32.partialorder %v416, 0.0004427343
  %v418 = vsel %vm417, %v415, %v412
  %v419 = vadd.f32 %v357, 1.0
  %v420 = vlog2.pop %v419
  %v421 = vmul.f32 %v420, 0.6931472
  %v422 = vmul.f32 -0.5, %v357
  %v423 = vadd.f32 %v422, 1.0
  %v424 = vmul.f32 %v423, %v357
  %v425 = vand.u32 2147483647, %v357
  %vm426 = vcmp.lt.f32.partialorder %v425, 0.0004427343
  %v427 = vsel %vm426, %v424, %v421
  %v428 = vadd.f32 %v358, 1.0
  %v429 = vlog2.pop %v428
  %v430 = vmul.f32 %v429, 0.6931472
  %v431 = vmul.f32 -0.5, %v358
  %v432 = vadd.f32 %v431, 1.0
  %v433 = vmul.f32 %v432, %v358
  %v434 = vand.u32 2147483647, %v358
  %vm435 = vcmp.lt.f32.partialorder %v434, 0.0004427343
  %v436 = vsel %vm435, %v433, %v430
  %v437 = vadd.f32 %v359, 1.0
  %v438 = vlog2.pop %v437
  %v439 = vmul.f32 %v438, 0.6931472
  %v440 = vmul.f32 -0.5, %v359
  %v441 = vadd.f32 %v440, 1.0
  %v442 = vmul.f32 %v441, %v359
  %v443 = vand.u32 2147483647, %v359
  %vm444 = vcmp.lt.f32.partialorder %v443, 0.0004427343
  %v445 = vsel %vm444, %v442, %v439
  %v446 = vadd.f32 %v360, 1.0
  %v447 = vlog2.pop %v446
  %v448 = vmul.f32 %v447, 0.6931472
  %v449 = vmul.f32 -0.5, %v360
  %v450 = vadd.f32 %v449, 1.0
  %v451 = vmul.f32 %v450, %v360
  %v452 = vand.u32 2147483647, %v360
  %vm453 = vcmp.lt.f32.partialorder %v452, 0.0004427343
  %v454 = vsel %vm453, %v451, %v448
  %v455 = vadd.f32 %v361, 1.0
  %v456 = vlog2.pop %v455
  %v457 = vmul.f32 %v456, 0.6931472
  %v458 = vmul.f32 -0.5, %v361
  %v459 = vadd.f32 %v458, 1.0
  %v460 = vmul.f32 %v459, %v361
  %v461 = vand.u32 2147483647, %v361
  %vm462 = vcmp.lt.f32.partialorder %v461, 0.0004427343
  %v463 = vsel %vm462, %v460, %v457
  %v464 = vadd.f32 %v362, 1.0
  %v465 = vlog2.pop %v464
  %v466 = vmul.f32 %v465, 0.6931472
  %v467 = vmul.f32 -0.5, %v362
  %v468 = vadd.f32 %v467, 1.0
  %v469 = vmul.f32 %v468, %v362
  %v470 = vand.u32 2147483647, %v362
  %vm471 = vcmp.lt.f32.partialorder %v470, 0.0004427343
  %v472 = vsel %vm471, %v469, %v466
  %v473 = vadd.f32 %v363, 1.0
  %v474 = vlog2.pop %v473
  %v475 = vmul.f32 %v474, 0.6931472
  %v476 = vmul.f32 -0.5, %v363
  %v477 = vadd.f32 %v476, 1.0
  %v478 = vmul.f32 %v477, %v363
  %v479 = vand.u32 2147483647, %v363
  %vm480 = vcmp.lt.f32.partialorder %v479, 0.0004427343
  %v481 = vsel %vm480, %v478, %v475
  %v482 = vadd.f32 %v364, 1.0
  %v483 = vlog2.pop %v482
  %v484 = vmul.f32 %v483, 0.6931472
  %v485 = vmul.f32 -0.5, %v364
  %v486 = vadd.f32 %v485, 1.0
  %v487 = vmul.f32 %v486, %v364
  %v488 = vand.u32 2147483647, %v364
  %vm489 = vcmp.lt.f32.partialorder %v488, 0.0004427343
  %v490 = vsel %vm489, %v487, %v484
  %v491 = vsub.f32 %v233, %v373
  %v492 = vsub.f32 %v242, %v382
  %v493 = vsub.f32 %v251, %v391
  %v494 = vsub.f32 %v260, %v400
  %v495 = vsub.f32 %v269, %v409
  %v496 = vsub.f32 %v278, %v418
  %v497 = vsub.f32 %v287, %v427
  %v498 = vsub.f32 %v296, %v436
  %v499 = vsub.f32 %v305, %v445
  %v500 = vsub.f32 %v314, %v454
  %v501 = vsub.f32 %v323, %v463
  %v502 = vsub.f32 %v332, %v472
  %v503 = vsub.f32 %v341, %v481
  %v504 = vsub.f32 %v350, %v490
  %v505 = vmul.f32 %v491, 0.5
  %v506 = vmul.f32 %v492, 0.5
  %v507 = vmul.f32 %v493, 0.5
  %v508 = vmul.f32 %v494, 0.5
  %v509 = vmul.f32 %v495, 0.5
  %v510 = vmul.f32 %v496, 0.5
  %v511 = vmul.f32 %v497, 0.5
  %v512 = vmul.f32 %v498, 0.5
  %v513 = vmul.f32 %v499, 0.5
  %v514 = vmul.f32 %v500, 0.5
  %v515 = vmul.f32 %v501, 0.5
  %v516 = vmul.f32 %v502, 0.5
  %v517 = vmul.f32 %v503, 0.5
  %v518 = vmul.f32 %v504, 0.5
  %v519 = vrcp.pop %v105
  %v520 = vrcp.pop %v112
  %v521 = vrcp.pop %v119
  %v522 = vrcp.pop %v126
  %v523 = vrcp.pop %v133
  %v524 = vrcp.pop %v140
  %v525 = vrcp.pop %v147
  %v526 = vrcp.pop %v154
  %v527 = vrcp.pop %v161
  %v528 = vrcp.pop %v168
  %v529 = vrcp.pop %v175
  %v530 = vrcp.pop %v182
  %v531 = vrcp.pop %v189
  %v532 = vrcp.pop %v196
  %v533 = vmul.f32 %v505, %v519
  %v534 = vmul.f32 %v506, %v520
  %v535 = vmul.f32 %v507, %v521
  %v536 = vmul.f32 %v508, %v522
  %v537 = vmul.f32 %v509, %v523
  %v538 = vmul.f32 %v510, %v524
  %v539 = vmul.f32 %v511, %v525
  %v540 = vmul.f32 %v512, %v526
  %v541 = vmul.f32 %v513, %v527
  %v542 = vmul.f32 %v514, %v528
  %v543 = vmul.f32 %v515, %v529
  %v544 = vmul.f32 %v516, %v530
  %v545 = vmul.f32 %v517, %v531
  %v546 = vmul.f32 %v518, %v532
  %v547 = vmul.f32 %v14, %v533
  %v548 = vmul.f32 %v15, %v534
  %v549 = vmul.f32 %v16, %v535
  %v550 = vmul.f32 %v17, %v536
  %v551 = vmul.f32 %v18, %v537
  %v552 = vmul.f32 %v19, %v538
  %v553 = vmul.f32 %v20, %v539
  %v554 = vmul.f32 %v21, %v540
  %v555 = vmul.f32 %v22, %v541
  %v556 = vmul.f32 %v23, %v542
  %v557 = vmul.f32 %v24, %v543
  %v558 = vmul.f32 %v25, %v544
  %v559 = vmul.f32 %v26, %v545
  %v560 = vmul.f32 %v27, %v546
  %v561 = vld [vmem:[%s1] sm:$0xff]
  %v562 = vld [vmem:[%s1 + $0x8] sm:$0xff]
  %v563 = vld [vmem:[%s1 + $0x10] sm:$0xff]
  %v564 = vld [vmem:[%s1 + $0x18] sm:$0xff]
  %v565 = vld [vmem:[%s2] sm:$0x1]
  %v567 = vlaneseq
  %v568 = vshrl.u32 %v567, 7
  %v569 = vsub.s32 0, %v568
  %v570 = vrot.slane %v565, %v569
  %v573 = vsel %vm42, %v547, 0
  %v576 = vsel %vm42, %v548, 0
  %v579 = vsel %vm42, %v549, 0
  %v582 = vsel %vm42, %v550, 0
  %v585 = vsel %vm42, %v551, 0
  %v588 = vsel %vm42, %v552, 0
  %v591 = vsel %vm42, %v553, 0
  %v594 = vsel %vm42, %v554, 0
  %v597 = vsel %vm42, %v555, 0
  %v600 = vsel %vm42, %v556, 0
  %v603 = vsel %vm42, %v557, 0
  %v606 = vsel %vm42, %v558, 0
  %v609 = vsel %vm42, %v559, 0
  %v612 = vsel %vm42, %v560, 0
  %v615 = vsel %vm42, %v561, 0
  %v618 = vsel %vm42, %v562, 0
  %v621 = vsel %vm42, %v563, 0
  %v624 = vsel %vm42, %v564, 0
  %626 = vmatprep.subr.mxu0 0.0
  %627 = vmatpush1.xpose.msra.mxu0 %v615
  %628 = vmatprep.subr.mxu0 0.0
  %629 = vmatpush1.xpose.msra.mxu0 %v618
  %630 = vmatprep.subr.mxu0 0.0
  %631 = vmatpush1.xpose.msra.mxu0 %v621
  %632 = vmatprep.subr.mxu0 0.0
  %633 = vmatpush1.xpose.msra.mxu0 %v624
  %634 = vmatprep.subr.mxu0 0.0
  %635 = vmatpush1.xpose.msra.mxu0 0.0
  %636 = vmatprep.subr.mxu0 0.0
  %637 = vmatpush1.xpose.msra.mxu0 0.0
  %638 = vmatprep.subr.mxu0 0.0
  %639 = vmatpush1.xpose.msra.mxu0 0.0
  %640 = vmatprep.subr.mxu0 0.0
  %641 = vmatpush1.xpose.msra.mxu0 0.0
  %642 = vmatprep.subr.mxu0 0.0
  %643 = vmatpush1.xpose.msra.mxu0 0.0
  %644 = vmatprep.subr.mxu0 0.0
  %645 = vmatpush1.xpose.msra.mxu0 0.0
  %646 = vmatprep.subr.mxu0 0.0
  %647 = vmatpush1.xpose.msra.mxu0 0.0
  %648 = vmatprep.subr.mxu0 0.0
  %649 = vmatpush1.xpose.msra.mxu0 0.0
  %650 = vmatprep.subr.mxu0 0.0
  %651 = vmatpush1.xpose.msra.mxu0 0.0
  %652 = vmatprep.subr.mxu0 0.0
  %653 = vmatpush1.xpose.msra.mxu0 0.0
  %654 = vmatprep.subr.mxu0 0.0
  %655 = vmatpush1.xpose.msra.mxu0 0.0
  %656 = vmatprep.subr.mxu0 0.0
  %657 = vmatpush1.xpose.msra.mxu0 0.0
  %658 = vmatprep.subr.mxu0 0.0
  %659 = vmatpush1.xpose.msra.mxu0 0.0
  %660 = vmatprep.subr.mxu0 0.0
  %661 = vmatpush1.xpose.msra.mxu0 0.0
  %662 = vmatprep.subr.mxu0 0.0
  %663 = vmatpush1.xpose.msra.mxu0 0.0
  %664 = vmatprep.subr.mxu0 0.0
  %665 = vmatpush1.xpose.msra.mxu0 0.0
  %666 = vmatprep.subr.mxu0 0.0
  %667 = vmatpush1.xpose.msra.mxu0 0.0
  %668 = vmatprep.subr.mxu0 0.0
  %669 = vmatpush1.xpose.msra.mxu0 0.0
  %670 = vmatprep.subr.mxu0 0.0
  %671 = vmatpush1.xpose.msra.mxu0 0.0
  %672 = vmatprep.subr.mxu0 0.0
  %673 = vmatpush1.xpose.msra.mxu0 0.0
  %674 = vmatprep.subr.mxu0 0.0
  %675 = vmatpush1.xpose.msra.mxu0 0.0
  %676 = vmatprep.subr.mxu0 0.0
  %677 = vmatpush1.xpose.msra.mxu0 0.0
  %678 = vmatprep.subr.mxu0 0.0
  %679 = vmatpush1.xpose.msra.mxu0 0.0
  %680 = vmatprep.subr.mxu0 0.0
  %681 = vmatpush1.xpose.msra.mxu0 0.0
  %682 = vmatprep.subr.mxu0 0.0
  %683 = vmatpush1.xpose.msra.mxu0 0.0
  %684 = vmatprep.subr.mxu0 0.0
  %685 = vmatpush1.xpose.msra.mxu0 0.0
  %686 = vmatprep.subr.mxu0 0.0
  %687 = vmatpush1.xpose.msra.mxu0 0.0
  %688 = vmatprep.subr.mxu0 0.0
  %689 = vmatpush1.xpose.msra.mxu0 0.0
  %690 = vmatprep.mubr.f32.mxu0 0.0
  %691 = vmatmul.mubr.f32.gmra.mrb[0].mxu0 %v573
  %v692 = vpop.f32.mrb[0].mxu0
  %v693 = vadd.f32 %v570, %v692
  %v694 = vpop.f32.mrb[0].mxu0
  %695 = vmatprep.mubr.f32.mxu0 0.0
  %696 = vmatmul.mubr.f32.gmra.mrb[0].mxu0 %v576
  %v697 = vpop.f32.mrb[0].mxu0
  %v698 = vadd.f32 %v570, %v697
  %v699 = vpop.f32.mrb[0].mxu0
  %700 = vmatprep.mubr.f32.mxu0 0.0
  %701 = vmatmul.mubr.f32.gmra.mrb[0].mxu0 %v579
  %v702 = vpop.f32.mrb[0].mxu0
  %v703 = vadd.f32 %v570, %v702
  %v704 = vpop.f32.mrb[0].mxu0
  %705 = vmatprep.mubr.f32.mxu0 0.0
  %706 = vmatmul.mubr.f32.gmra.mrb[0].mxu0 %v582
  %v707 = vpop.f32.mrb[0].mxu0
  %v708 = vadd.f32 %v570, %v707
  %v709 = vpop.f32.mrb[0].mxu0
  %710 = vmatprep.mubr.f32.mxu0 0.0
  %711 = vmatmul.mubr.f32.gmra.mrb[0].mxu0 %v585
  %v712 = vpop.f32.mrb[0].mxu0
  %v713 = vadd.f32 %v570, %v712
  %v714 = vpop.f32.mrb[0].mxu0
  %715 = vmatprep.mubr.f32.mxu0 0.0
  %716 = vmatmul.mubr.f32.gmra.mrb[0].mxu0 %v588
  %v717 = vpop.f32.mrb[0].mxu0
  %v718 = vadd.f32 %v570, %v717
  %v719 = vpop.f32.mrb[0].mxu0
  %720 = vmatprep.mubr.f32.mxu0 0.0
  %721 = vmatmul.mubr.f32.gmra.mrb[0].mxu0 %v591
  %v722 = vpop.f32.mrb[0].mxu0
  %v723 = vadd.f32 %v570, %v722
  %v724 = vpop.f32.mrb[0].mxu0
  %725 = vmatprep.mubr.f32.mxu0 0.0
  %726 = vmatmul.mubr.f32.gmra.mrb[0].mxu0 %v594
  %v727 = vpop.f32.mrb[0].mxu0
  %v728 = vadd.f32 %v570, %v727
  %v729 = vpop.f32.mrb[0].mxu0
  %730 = vmatprep.mubr.f32.mxu0 0.0
  %731 = vmatmul.mubr.f32.gmra.mrb[0].mxu0 %v597
  %v732 = vpop.f32.mrb[0].mxu0
  %v733 = vadd.f32 %v570, %v732
  %v734 = vpop.f32.mrb[0].mxu0
  %735 = vmatprep.mubr.f32.mxu0 0.0
  %736 = vmatmul.mubr.f32.gmra.mrb[0].mxu0 %v600
  %v737 = vpop.f32.mrb[0].mxu0
  %v738 = vadd.f32 %v570, %v737
  %v739 = vpop.f32.mrb[0].mxu0
  %740 = vmatprep.mubr.f32.mxu0 0.0
  %741 = vmatmul.mubr.f32.gmra.mrb[0].mxu0 %v603
  %v742 = vpop.f32.mrb[0].mxu0
  %v743 = vadd.f32 %v570, %v742
  %v744 = vpop.f32.mrb[0].mxu0
  %745 = vmatprep.mubr.f32.mxu0 0.0
  %746 = vmatmul.mubr.f32.gmra.mrb[0].mxu0 %v606
  %v747 = vpop.f32.mrb[0].mxu0
  %v748 = vadd.f32 %v570, %v747
  %v749 = vpop.f32.mrb[0].mxu0
  %750 = vmatprep.mubr.f32.mxu0 0.0
  %751 = vmatmul.mubr.f32.gmra.mrb[0].mxu0 %v609
  %v752 = vpop.f32.mrb[0].mxu0
  %v753 = vadd.f32 %v570, %v752
  %v754 = vpop.f32.mrb[0].mxu0
  %755 = vmatprep.mubr.f32.mxu0 0.0
  %756 = vmatmul.mubr.f32.gmra.mrb[0].mxu0 %v612
  %v757 = vpop.f32.mrb[0].mxu0
  %v758 = vadd.f32 %v570, %v757
  %v759 = vpop.f32.mrb[0].mxu0
  %760 = vdwg.mxu0
  %v761 = vmul.f32 %v693, %v693
  %v762 = vmul.f32 %v698, %v698
  %v763 = vmul.f32 %v703, %v703
  %v764 = vmul.f32 %v708, %v708
  %v765 = vmul.f32 %v713, %v713
  %v766 = vmul.f32 %v718, %v718
  %v767 = vmul.f32 %v723, %v723
  %v768 = vmul.f32 %v728, %v728
  %v769 = vmul.f32 %v733, %v733
  %v770 = vmul.f32 %v738, %v738
  %v771 = vmul.f32 %v743, %v743
  %v772 = vmul.f32 %v748, %v748
  %v773 = vmul.f32 %v753, %v753
  %v774 = vmul.f32 %v758, %v758
  %v775 = vsel %vm42, %v761, 0.0
  %776 = vadd.xlane.f32.xlu0 %v775
  %v777 = vpop.xlane.xlu0 %776
  %v778 = vsel %vm42, %v762, 0.0
  %779 = vadd.xlane.f32.xlu0 %v778
  %v780 = vpop.xlane.xlu0 %779
  %v781 = vsel %vm42, %v763, 0.0
  %782 = vadd.xlane.f32.xlu0 %v781
  %v783 = vpop.xlane.xlu0 %782
  %v784 = vsel %vm42, %v764, 0.0
  %785 = vadd.xlane.f32.xlu0 %v784
  %v786 = vpop.xlane.xlu0 %785
  %v787 = vsel %vm42, %v765, 0.0
  %788 = vadd.xlane.f32.xlu0 %v787
  %v789 = vpop.xlane.xlu0 %788
  %v790 = vsel %vm42, %v766, 0.0
  %791 = vadd.xlane.f32.xlu0 %v790
  %v792 = vpop.xlane.xlu0 %791
  %v793 = vsel %vm42, %v767, 0.0
  %794 = vadd.xlane.f32.xlu0 %v793
  %v795 = vpop.xlane.xlu0 %794
  %v796 = vsel %vm42, %v768, 0.0
  %797 = vadd.xlane.f32.xlu0 %v796
  %v798 = vpop.xlane.xlu0 %797
  %v799 = vsel %vm42, %v769, 0.0
  %800 = vadd.xlane.f32.xlu0 %v799
  %v801 = vpop.xlane.xlu0 %800
  %v802 = vsel %vm42, %v770, 0.0
  %803 = vadd.xlane.f32.xlu0 %v802
  %v804 = vpop.xlane.xlu0 %803
  %v805 = vsel %vm42, %v771, 0.0
  %806 = vadd.xlane.f32.xlu0 %v805
  %v807 = vpop.xlane.xlu0 %806
  %v808 = vsel %vm42, %v772, 0.0
  %809 = vadd.xlane.f32.xlu0 %v808
  %v810 = vpop.xlane.xlu0 %809
  %v811 = vsel %vm42, %v773, 0.0
  %812 = vadd.xlane.f32.xlu0 %v811
  %v813 = vpop.xlane.xlu0 %812
  %v814 = vsel %vm42, %v774, 0.0
  %815 = vadd.xlane.f32.xlu0 %v814
  %v816 = vpop.xlane.xlu0 %815
  %v817 = vmax.f32 %v777, 1e-07
  %v818 = vmax.f32 %v780, 1e-07
  %v819 = vmax.f32 %v783, 1e-07
  %v820 = vmax.f32 %v786, 1e-07
  %v821 = vmax.f32 %v789, 1e-07
  %v822 = vmax.f32 %v792, 1e-07
  %v823 = vmax.f32 %v795, 1e-07
  %v824 = vmax.f32 %v798, 1e-07
  %v825 = vmax.f32 %v801, 1e-07
  %v826 = vmax.f32 %v804, 1e-07
  %v827 = vmax.f32 %v807, 1e-07
  %v828 = vmax.f32 %v810, 1e-07
  %v829 = vmax.f32 %v813, 1e-07
  %v830 = vmax.f32 %v816, 1e-07
  %v831 = vrsqrt.pop %v817
  %v832 = vmul.f32 %v817, %v831
  %vm833 = vcmp.eq.f32.partialorder %v817, inf
  %v834 = vsel %vm833, %v817, %v832
  %vm835 = vcmp.eq.f32.partialorder %v817, 0.0
  %v836 = vand.u32 %v817, 2147483648
  %v837 = vsel %vm835, %v836, %v834
  %v838 = vrsqrt.pop %v818
  %v839 = vmul.f32 %v818, %v838
  %vm840 = vcmp.eq.f32.partialorder %v818, inf
  %v841 = vsel %vm840, %v818, %v839
  %vm842 = vcmp.eq.f32.partialorder %v818, 0.0
  %v843 = vand.u32 %v818, 2147483648
  %v844 = vsel %vm842, %v843, %v841
  %v845 = vrsqrt.pop %v819
  %v846 = vmul.f32 %v819, %v845
  %vm847 = vcmp.eq.f32.partialorder %v819, inf
  %v848 = vsel %vm847, %v819, %v846
  %vm849 = vcmp.eq.f32.partialorder %v819, 0.0
  %v850 = vand.u32 %v819, 2147483648
  %v851 = vsel %vm849, %v850, %v848
  %v852 = vrsqrt.pop %v820
  %v853 = vmul.f32 %v820, %v852
  %vm854 = vcmp.eq.f32.partialorder %v820, inf
  %v855 = vsel %vm854, %v820, %v853
  %vm856 = vcmp.eq.f32.partialorder %v820, 0.0
  %v857 = vand.u32 %v820, 2147483648
  %v858 = vsel %vm856, %v857, %v855
  %v859 = vrsqrt.pop %v821
  %v860 = vmul.f32 %v821, %v859
  %vm861 = vcmp.eq.f32.partialorder %v821, inf
  %v862 = vsel %vm861, %v821, %v860
  %vm863 = vcmp.eq.f32.partialorder %v821, 0.0
  %v864 = vand.u32 %v821, 2147483648
  %v865 = vsel %vm863, %v864, %v862
  %v866 = vrsqrt.pop %v822
  %v867 = vmul.f32 %v822, %v866
  %vm868 = vcmp.eq.f32.partialorder %v822, inf
  %v869 = vsel %vm868, %v822, %v867
  %vm870 = vcmp.eq.f32.partialorder %v822, 0.0
  %v871 = vand.u32 %v822, 2147483648
  %v872 = vsel %vm870, %v871, %v869
  %v873 = vrsqrt.pop %v823
  %v874 = vmul.f32 %v823, %v873
  %vm875 = vcmp.eq.f32.partialorder %v823, inf
  %v876 = vsel %vm875, %v823, %v874
  %vm877 = vcmp.eq.f32.partialorder %v823, 0.0
  %v878 = vand.u32 %v823, 2147483648
  %v879 = vsel %vm877, %v878, %v876
  %v880 = vrsqrt.pop %v824
  %v881 = vmul.f32 %v824, %v880
  %vm882 = vcmp.eq.f32.partialorder %v824, inf
  %v883 = vsel %vm882, %v824, %v881
  %vm884 = vcmp.eq.f32.partialorder %v824, 0.0
  %v885 = vand.u32 %v824, 2147483648
  %v886 = vsel %vm884, %v885, %v883
  %v887 = vrsqrt.pop %v825
  %v888 = vmul.f32 %v825, %v887
  %vm889 = vcmp.eq.f32.partialorder %v825, inf
  %v890 = vsel %vm889, %v825, %v888
  %vm891 = vcmp.eq.f32.partialorder %v825, 0.0
  %v892 = vand.u32 %v825, 2147483648
  %v893 = vsel %vm891, %v892, %v890
  %v894 = vrsqrt.pop %v826
  %v895 = vmul.f32 %v826, %v894
  %vm896 = vcmp.eq.f32.partialorder %v826, inf
  %v897 = vsel %vm896, %v826, %v895
  %vm898 = vcmp.eq.f32.partialorder %v826, 0.0
  %v899 = vand.u32 %v826, 2147483648
  %v900 = vsel %vm898, %v899, %v897
  %v901 = vrsqrt.pop %v827
  %v902 = vmul.f32 %v827, %v901
  %vm903 = vcmp.eq.f32.partialorder %v827, inf
  %v904 = vsel %vm903, %v827, %v902
  %vm905 = vcmp.eq.f32.partialorder %v827, 0.0
  %v906 = vand.u32 %v827, 2147483648
  %v907 = vsel %vm905, %v906, %v904
  %v908 = vrsqrt.pop %v828
  %v909 = vmul.f32 %v828, %v908
  %vm910 = vcmp.eq.f32.partialorder %v828, inf
  %v911 = vsel %vm910, %v828, %v909
  %vm912 = vcmp.eq.f32.partialorder %v828, 0.0
  %v913 = vand.u32 %v828, 2147483648
  %v914 = vsel %vm912, %v913, %v911
  %v915 = vrsqrt.pop %v829
  %v916 = vmul.f32 %v829, %v915
  %vm917 = vcmp.eq.f32.partialorder %v829, inf
  %v918 = vsel %vm917, %v829, %v916
  %vm919 = vcmp.eq.f32.partialorder %v829, 0.0
  %v920 = vand.u32 %v829, 2147483648
  %v921 = vsel %vm919, %v920, %v918
  %v922 = vrsqrt.pop %v830
  %v923 = vmul.f32 %v830, %v922
  %vm924 = vcmp.eq.f32.partialorder %v830, inf
  %v925 = vsel %vm924, %v830, %v923
  %vm926 = vcmp.eq.f32.partialorder %v830, 0.0
  %v927 = vand.u32 %v830, 2147483648
  %v928 = vsel %vm926, %v927, %v925
  %v929 = vmul.f32 %v837, 0.70710677
  %v930 = vmul.f32 %v844, 0.70710677
  %v931 = vmul.f32 %v851, 0.70710677
  %v932 = vmul.f32 %v858, 0.70710677
  %v933 = vmul.f32 %v865, 0.70710677
  %v934 = vmul.f32 %v872, 0.70710677
  %v935 = vmul.f32 %v879, 0.70710677
  %v936 = vmul.f32 %v886, 0.70710677
  %v937 = vmul.f32 %v893, 0.70710677
  %v938 = vmul.f32 %v900, 0.70710677
  %v939 = vmul.f32 %v907, 0.70710677
  %v940 = vmul.f32 %v914, 0.70710677
  %v941 = vmul.f32 %v921, 0.70710677
  %v942 = vmul.f32 %v928, 0.70710677
  %v943 = vtanh.pop %v929
  %v944 = vtanh.pop %v930
  %v945 = vtanh.pop %v931
  %v946 = vtanh.pop %v932
  %v947 = vtanh.pop %v933
  %v948 = vtanh.pop %v934
  %v949 = vtanh.pop %v935
  %v950 = vtanh.pop %v936
  %v951 = vtanh.pop %v937
  %v952 = vtanh.pop %v938
  %v953 = vtanh.pop %v939
  %v954 = vtanh.pop %v940
  %v955 = vtanh.pop %v941
  %v956 = vtanh.pop %v942
  %v957 = vmul.f32 %v943, 1.4142135
  %v958 = vmul.f32 %v944, 1.4142135
  %v959 = vmul.f32 %v945, 1.4142135
  %v960 = vmul.f32 %v946, 1.4142135
  %v961 = vmul.f32 %v947, 1.4142135
  %v962 = vmul.f32 %v948, 1.4142135
  %v963 = vmul.f32 %v949, 1.4142135
  %v964 = vmul.f32 %v950, 1.4142135
  %v965 = vmul.f32 %v951, 1.4142135
  %v966 = vmul.f32 %v952, 1.4142135
  %v967 = vmul.f32 %v953, 1.4142135
  %v968 = vmul.f32 %v954, 1.4142135
  %v969 = vmul.f32 %v955, 1.4142135
  %v970 = vmul.f32 %v956, 1.4142135
  %v971 = vrcp.pop %v837
  %v972 = vrcp.pop %v844
  %v973 = vrcp.pop %v851
  %v974 = vrcp.pop %v858
  %v975 = vrcp.pop %v865
  %v976 = vrcp.pop %v872
  %v977 = vrcp.pop %v879
  %v978 = vrcp.pop %v886
  %v979 = vrcp.pop %v893
  %v980 = vrcp.pop %v900
  %v981 = vrcp.pop %v907
  %v982 = vrcp.pop %v914
  %v983 = vrcp.pop %v921
  %v984 = vrcp.pop %v928
  %v985 = vmul.f32 %v957, %v971
  %v986 = vmul.f32 %v958, %v972
  %v987 = vmul.f32 %v959, %v973
  %v988 = vmul.f32 %v960, %v974
  %v989 = vmul.f32 %v961, %v975
  %v990 = vmul.f32 %v962, %v976
  %v991 = vmul.f32 %v963, %v977
  %v992 = vmul.f32 %v964, %v978
  %v993 = vmul.f32 %v965, %v979
  %v994 = vmul.f32 %v966, %v980
  %v995 = vmul.f32 %v967, %v981
  %v996 = vmul.f32 %v968, %v982
  %v997 = vmul.f32 %v969, %v983
  %v998 = vmul.f32 %v970, %v984
  %v999 = vmul.f32 %v693, %v985
  %v1000 = vmul.f32 %v698, %v986
  %v1001 = vmul.f32 %v703, %v987
  %v1002 = vmul.f32 %v708, %v988
  %v1003 = vmul.f32 %v713, %v989
  %v1004 = vmul.f32 %v718, %v990
  %v1005 = vmul.f32 %v723, %v991
  %v1006 = vmul.f32 %v728, %v992
  %v1007 = vmul.f32 %v733, %v993
  %v1008 = vmul.f32 %v738, %v994
  %v1009 = vmul.f32 %v743, %v995
  %v1010 = vmul.f32 %v748, %v996
  %v1011 = vmul.f32 %v753, %v997
  %v1012 = vmul.f32 %v758, %v998
  %v1013 = vmul.f32 %v999, %v999
  %v1014 = vmul.f32 %v1000, %v1000
  %v1015 = vmul.f32 %v1001, %v1001
  %v1016 = vmul.f32 %v1002, %v1002
  %v1017 = vmul.f32 %v1003, %v1003
  %v1018 = vmul.f32 %v1004, %v1004
  %v1019 = vmul.f32 %v1005, %v1005
  %v1020 = vmul.f32 %v1006, %v1006
  %v1021 = vmul.f32 %v1007, %v1007
  %v1022 = vmul.f32 %v1008, %v1008
  %v1023 = vmul.f32 %v1009, %v1009
  %v1024 = vmul.f32 %v1010, %v1010
  %v1025 = vmul.f32 %v1011, %v1011
  %v1026 = vmul.f32 %v1012, %v1012
  %v1027 = vsel %vm42, %v1013, 0.0
  %1028 = vadd.xlane.f32.xlu0 %v1027
  %v1029 = vpop.xlane.xlu0 %1028
  %v1030 = vsel %vm42, %v1014, 0.0
  %1031 = vadd.xlane.f32.xlu0 %v1030
  %v1032 = vpop.xlane.xlu0 %1031
  %v1033 = vsel %vm42, %v1015, 0.0
  %1034 = vadd.xlane.f32.xlu0 %v1033
  %v1035 = vpop.xlane.xlu0 %1034
  %v1036 = vsel %vm42, %v1016, 0.0
  %1037 = vadd.xlane.f32.xlu0 %v1036
  %v1038 = vpop.xlane.xlu0 %1037
  %v1039 = vsel %vm42, %v1017, 0.0
  %1040 = vadd.xlane.f32.xlu0 %v1039
  %v1041 = vpop.xlane.xlu0 %1040
  %v1042 = vsel %vm42, %v1018, 0.0
  %1043 = vadd.xlane.f32.xlu0 %v1042
  %v1044 = vpop.xlane.xlu0 %1043
  %v1045 = vsel %vm42, %v1019, 0.0
  %1046 = vadd.xlane.f32.xlu0 %v1045
  %v1047 = vpop.xlane.xlu0 %1046
  %v1048 = vsel %vm42, %v1020, 0.0
  %1049 = vadd.xlane.f32.xlu0 %v1048
  %v1050 = vpop.xlane.xlu0 %1049
  %v1051 = vsel %vm42, %v1021, 0.0
  %1052 = vadd.xlane.f32.xlu0 %v1051
  %v1053 = vpop.xlane.xlu0 %1052
  %v1054 = vsel %vm42, %v1022, 0.0
  %1055 = vadd.xlane.f32.xlu0 %v1054
  %v1056 = vpop.xlane.xlu0 %1055
  %v1057 = vsel %vm42, %v1023, 0.0
  %1058 = vadd.xlane.f32.xlu0 %v1057
  %v1059 = vpop.xlane.xlu0 %1058
  %v1060 = vsel %vm42, %v1024, 0.0
  %1061 = vadd.xlane.f32.xlu0 %v1060
  %v1062 = vpop.xlane.xlu0 %1061
  %v1063 = vsel %vm42, %v1025, 0.0
  %1064 = vadd.xlane.f32.xlu0 %v1063
  %v1065 = vpop.xlane.xlu0 %1064
  %v1066 = vsel %vm42, %v1026, 0.0
  %1067 = vadd.xlane.f32.xlu0 %v1066
  %v1068 = vpop.xlane.xlu0 %1067
  %v1069 = vmax.f32 %v1029, 1e-07
  %v1070 = vmax.f32 %v1032, 1e-07
  %v1071 = vmax.f32 %v1035, 1e-07
  %v1072 = vmax.f32 %v1038, 1e-07
  %v1073 = vmax.f32 %v1041, 1e-07
  %v1074 = vmax.f32 %v1044, 1e-07
  %v1075 = vmax.f32 %v1047, 1e-07
  %v1076 = vmax.f32 %v1050, 1e-07
  %v1077 = vmax.f32 %v1053, 1e-07
  %v1078 = vmax.f32 %v1056, 1e-07
  %v1079 = vmax.f32 %v1059, 1e-07
  %v1080 = vmax.f32 %v1062, 1e-07
  %v1081 = vmax.f32 %v1065, 1e-07
  %v1082 = vmax.f32 %v1068, 1e-07
  %v1083 = vrsqrt.pop %v1069
  %v1084 = vmul.f32 %v1069, %v1083
  %vm1085 = vcmp.eq.f32.partialorder %v1069, inf
  %v1086 = vsel %vm1085, %v1069, %v1084
  %vm1087 = vcmp.eq.f32.partialorder %v1069, 0.0
  %v1088 = vand.u32 %v1069, 2147483648
  %v1089 = vsel %vm1087, %v1088, %v1086
  %v1090 = vrsqrt.pop %v1070
  %v1091 = vmul.f32 %v1070, %v1090
  %vm1092 = vcmp.eq.f32.partialorder %v1070, inf
  %v1093 = vsel %vm1092, %v1070, %v1091
  %vm1094 = vcmp.eq.f32.partialorder %v1070, 0.0
  %v1095 = vand.u32 %v1070, 2147483648
  %v1096 = vsel %vm1094, %v1095, %v1093
  %v1097 = vrsqrt.pop %v1071
  %v1098 = vmul.f32 %v1071, %v1097
  %vm1099 = vcmp.eq.f32.partialorder %v1071, inf
  %v1100 = vsel %vm1099, %v1071, %v1098
  %vm1101 = vcmp.eq.f32.partialorder %v1071, 0.0
  %v1102 = vand.u32 %v1071, 2147483648
  %v1103 = vsel %vm1101, %v1102, %v1100
  %v1104 = vrsqrt.pop %v1072
  %v1105 = vmul.f32 %v1072, %v1104
  %vm1106 = vcmp.eq.f32.partialorder %v1072, inf
  %v1107 = vsel %vm1106, %v1072, %v1105
  %vm1108 = vcmp.eq.f32.partialorder %v1072, 0.0
  %v1109 = vand.u32 %v1072, 2147483648
  %v1110 = vsel %vm1108, %v1109, %v1107
  %v1111 = vrsqrt.pop %v1073
  %v1112 = vmul.f32 %v1073, %v1111
  %vm1113 = vcmp.eq.f32.partialorder %v1073, inf
  %v1114 = vsel %vm1113, %v1073, %v1112
  %vm1115 = vcmp.eq.f32.partialorder %v1073, 0.0
  %v1116 = vand.u32 %v1073, 2147483648
  %v1117 = vsel %vm1115, %v1116, %v1114
  %v1118 = vrsqrt.pop %v1074
  %v1119 = vmul.f32 %v1074, %v1118
  %vm1120 = vcmp.eq.f32.partialorder %v1074, inf
  %v1121 = vsel %vm1120, %v1074, %v1119
  %vm1122 = vcmp.eq.f32.partialorder %v1074, 0.0
  %v1123 = vand.u32 %v1074, 2147483648
  %v1124 = vsel %vm1122, %v1123, %v1121
  %v1125 = vrsqrt.pop %v1075
  %v1126 = vmul.f32 %v1075, %v1125
  %vm1127 = vcmp.eq.f32.partialorder %v1075, inf
  %v1128 = vsel %vm1127, %v1075, %v1126
  %vm1129 = vcmp.eq.f32.partialorder %v1075, 0.0
  %v1130 = vand.u32 %v1075, 2147483648
  %v1131 = vsel %vm1129, %v1130, %v1128
  %v1132 = vrsqrt.pop %v1076
  %v1133 = vmul.f32 %v1076, %v1132
  %vm1134 = vcmp.eq.f32.partialorder %v1076, inf
  %v1135 = vsel %vm1134, %v1076, %v1133
  %vm1136 = vcmp.eq.f32.partialorder %v1076, 0.0
  %v1137 = vand.u32 %v1076, 2147483648
  %v1138 = vsel %vm1136, %v1137, %v1135
  %v1139 = vrsqrt.pop %v1077
  %v1140 = vmul.f32 %v1077, %v1139
  %vm1141 = vcmp.eq.f32.partialorder %v1077, inf
  %v1142 = vsel %vm1141, %v1077, %v1140
  %vm1143 = vcmp.eq.f32.partialorder %v1077, 0.0
  %v1144 = vand.u32 %v1077, 2147483648
  %v1145 = vsel %vm1143, %v1144, %v1142
  %v1146 = vrsqrt.pop %v1078
  %v1147 = vmul.f32 %v1078, %v1146
  %vm1148 = vcmp.eq.f32.partialorder %v1078, inf
  %v1149 = vsel %vm1148, %v1078, %v1147
  %vm1150 = vcmp.eq.f32.partialorder %v1078, 0.0
  %v1151 = vand.u32 %v1078, 2147483648
  %v1152 = vsel %vm1150, %v1151, %v1149
  %v1153 = vrsqrt.pop %v1079
  %v1154 = vmul.f32 %v1079, %v1153
  %vm1155 = vcmp.eq.f32.partialorder %v1079, inf
  %v1156 = vsel %vm1155, %v1079, %v1154
  %vm1157 = vcmp.eq.f32.partialorder %v1079, 0.0
  %v1158 = vand.u32 %v1079, 2147483648
  %v1159 = vsel %vm1157, %v1158, %v1156
  %v1160 = vrsqrt.pop %v1080
  %v1161 = vmul.f32 %v1080, %v1160
  %vm1162 = vcmp.eq.f32.partialorder %v1080, inf
  %v1163 = vsel %vm1162, %v1080, %v1161
  %vm1164 = vcmp.eq.f32.partialorder %v1080, 0.0
  %v1165 = vand.u32 %v1080, 2147483648
  %v1166 = vsel %vm1164, %v1165, %v1163
  %v1167 = vrsqrt.pop %v1081
  %v1168 = vmul.f32 %v1081, %v1167
  %vm1169 = vcmp.eq.f32.partialorder %v1081, inf
  %v1170 = vsel %vm1169, %v1081, %v1168
  %vm1171 = vcmp.eq.f32.partialorder %v1081, 0.0
  %v1172 = vand.u32 %v1081, 2147483648
  %v1173 = vsel %vm1171, %v1172, %v1170
  %v1174 = vrsqrt.pop %v1082
  %v1175 = vmul.f32 %v1082, %v1174
  %vm1176 = vcmp.eq.f32.partialorder %v1082, inf
  %v1177 = vsel %vm1176, %v1082, %v1175
  %vm1178 = vcmp.eq.f32.partialorder %v1082, 0.0
  %v1179 = vand.u32 %v1082, 2147483648
  %v1180 = vsel %vm1178, %v1179, %v1177
  %vm1181 = vcmp.gt.f32.partialorder %v1089, 1.4141995
  %vm1182 = vcmp.gt.f32.partialorder %v1096, 1.4141995
  %vm1183 = vcmp.gt.f32.partialorder %v1103, 1.4141995
  %vm1184 = vcmp.gt.f32.partialorder %v1110, 1.4141995
  %vm1185 = vcmp.gt.f32.partialorder %v1117, 1.4141995
  %vm1186 = vcmp.gt.f32.partialorder %v1124, 1.4141995
  %vm1187 = vcmp.gt.f32.partialorder %v1131, 1.4141995
  %vm1188 = vcmp.gt.f32.partialorder %v1138, 1.4141995
  %vm1189 = vcmp.gt.f32.partialorder %v1145, 1.4141995
  %vm1190 = vcmp.gt.f32.partialorder %v1152, 1.4141995
  %vm1191 = vcmp.gt.f32.partialorder %v1159, 1.4141995
  %vm1192 = vcmp.gt.f32.partialorder %v1166, 1.4141995
  %vm1193 = vcmp.gt.f32.partialorder %v1173, 1.4141995
  %vm1194 = vcmp.gt.f32.partialorder %v1180, 1.4141995
  %v1195 = vrcp.pop %v1089
  %v1196 = vrcp.pop %v1096
  %v1197 = vrcp.pop %v1103
  %v1198 = vrcp.pop %v1110
  %v1199 = vrcp.pop %v1117
  %v1200 = vrcp.pop %v1124
  %v1201 = vrcp.pop %v1131
  %v1202 = vrcp.pop %v1138
  %v1203 = vrcp.pop %v1145
  %v1204 = vrcp.pop %v1152
  %v1205 = vrcp.pop %v1159
  %v1206 = vrcp.pop %v1166
  %v1207 = vrcp.pop %v1173
  %v1208 = vrcp.pop %v1180
  %v1209 = vmul.f32 %v1195, 1.4141995
  %v1210 = vmul.f32 %v1196, 1.4141995
  %v1211 = vmul.f32 %v1197, 1.4141995
  %v1212 = vmul.f32 %v1198, 1.4141995
  %v1213 = vmul.f32 %v1199, 1.4141995
  %v1214 = vmul.f32 %v1200, 1.4141995
  %v1215 = vmul.f32 %v1201, 1.4141995
  %v1216 = vmul.f32 %v1202, 1.4141995
  %v1217 = vmul.f32 %v1203, 1.4141995
  %v1218 = vmul.f32 %v1204, 1.4141995
  %v1219 = vmul.f32 %v1205, 1.4141995
  %v1220 = vmul.f32 %v1206, 1.4141995
  %v1221 = vmul.f32 %v1207, 1.4141995
  %v1222 = vmul.f32 %v1208, 1.4141995
  %v1223 = vmul.f32 %v999, %v1209
  %v1224 = vmul.f32 %v1000, %v1210
  %v1225 = vmul.f32 %v1001, %v1211
  %v1226 = vmul.f32 %v1002, %v1212
  %v1227 = vmul.f32 %v1003, %v1213
  %v1228 = vmul.f32 %v1004, %v1214
  %v1229 = vmul.f32 %v1005, %v1215
  %v1230 = vmul.f32 %v1006, %v1216
  %v1231 = vmul.f32 %v1007, %v1217
  %v1232 = vmul.f32 %v1008, %v1218
  %v1233 = vmul.f32 %v1009, %v1219
  %v1234 = vmul.f32 %v1010, %v1220
  %v1235 = vmul.f32 %v1011, %v1221
  %v1236 = vmul.f32 %v1012, %v1222
  %v1237 = vsel %vm1181, 1, 0
  %v1238 = vsel %vm1182, 1, 0
  %v1239 = vsel %vm1183, 1, 0
  %v1240 = vsel %vm1184, 1, 0
  %v1241 = vsel %vm1185, 1, 0
  %v1242 = vsel %vm1186, 1, 0
  %v1243 = vsel %vm1187, 1, 0
  %v1244 = vsel %vm1188, 1, 0
  %v1245 = vsel %vm1189, 1, 0
  %v1246 = vsel %vm1190, 1, 0
  %v1247 = vsel %vm1191, 1, 0
  %v1248 = vsel %vm1192, 1, 0
  %v1249 = vsel %vm1193, 1, 0
  %v1250 = vsel %vm1194, 1, 0
  %vm1251 = vcmp.eq.s32.totalorder %v1237, 1
  %vm1252 = vcmp.eq.s32.totalorder %v1238, 1
  %vm1253 = vcmp.eq.s32.totalorder %v1239, 1
  %vm1254 = vcmp.eq.s32.totalorder %v1240, 1
  %vm1255 = vcmp.eq.s32.totalorder %v1241, 1
  %vm1256 = vcmp.eq.s32.totalorder %v1242, 1
  %vm1257 = vcmp.eq.s32.totalorder %v1243, 1
  %vm1258 = vcmp.eq.s32.totalorder %v1244, 1
  %vm1259 = vcmp.eq.s32.totalorder %v1245, 1
  %vm1260 = vcmp.eq.s32.totalorder %v1246, 1
  %vm1261 = vcmp.eq.s32.totalorder %v1247, 1
  %vm1262 = vcmp.eq.s32.totalorder %v1248, 1
  %vm1263 = vcmp.eq.s32.totalorder %v1249, 1
  %vm1264 = vcmp.eq.s32.totalorder %v1250, 1
  %v1265 = vsel %vm1251, %v1223, %v999
  %v1266 = vsel %vm1252, %v1224, %v1000
  %v1267 = vsel %vm1253, %v1225, %v1001
  %v1268 = vsel %vm1254, %v1226, %v1002
  %v1269 = vsel %vm1255, %v1227, %v1003
  %v1270 = vsel %vm1256, %v1228, %v1004
  %v1271 = vsel %vm1257, %v1229, %v1005
  %v1272 = vsel %vm1258, %v1230, %v1006
  %v1273 = vsel %vm1259, %v1231, %v1007
  %v1274 = vsel %vm1260, %v1232, %v1008
  %v1275 = vsel %vm1261, %v1233, %v1009
  %v1276 = vsel %vm1262, %v1234, %v1010
  %v1277 = vsel %vm1263, %v1235, %v1011
  %v1278 = vsel %vm1264, %v1236, %v1012
  %1279 = vst.msk [vmem:[%s3] sm:$0xff] %vm42, %v1265
  %1280 = vst.msk [vmem:[%s3 + $0x8] sm:$0xff] %vm42, %v1266
  %1281 = vst.msk [vmem:[%s3 + $0x10] sm:$0xff] %vm42, %v1267
  %1282 = vst.msk [vmem:[%s3 + $0x18] sm:$0xff] %vm42, %v1268
  %1283 = vst.msk [vmem:[%s3 + $0x20] sm:$0xff] %vm42, %v1269
  %1284 = vst.msk [vmem:[%s3 + $0x28] sm:$0xff] %vm42, %v1270
  %1285 = vst.msk [vmem:[%s3 + $0x30] sm:$0xff] %vm42, %v1271
  %1286 = vst.msk [vmem:[%s3 + $0x38] sm:$0xff] %vm42, %v1272
  %1287 = vst.msk [vmem:[%s3 + $0x40] sm:$0xff] %vm42, %v1273
  %1288 = vst.msk [vmem:[%s3 + $0x48] sm:$0xff] %vm42, %v1274
  %1289 = vst.msk [vmem:[%s3 + $0x50] sm:$0xff] %vm42, %v1275
  %1290 = vst.msk [vmem:[%s3 + $0x58] sm:$0xff] %vm42, %v1276
  %1291 = vst.msk [vmem:[%s3 + $0x60] sm:$0xff] %vm42, %v1277
  %1292 = vst.msk [vmem:[%s3 + $0x68] sm:$0xff] %vm42, %v1278
  // Predicated region
  $region14: #{_forward_impl.6} parent=0 // pred_check
    _
  $region15: #{_forward_impl.6} parent=0 // pred_check_branch
    %1294 = sbr.rel (0) target = $region17
  $region16: #{_forward_impl.6} parent=0 // pred_region
    _
  $region17: #{_forward_impl.6} parent=0 // pred_fallthru
    _
  // Predicated region
  $region18: #{_forward_impl.6} parent=0 // pred_check
    _
  $region19: #{_forward_impl.6} parent=0 // pred_check_branch
    %1296 = sbr.rel (0) target = $region21
  $region20: #{_forward_impl.6} parent=0 // pred_region
    _
  $region21: #{_forward_impl.6} parent=0 // pred_fallthru
    _

// kernel: _forward_impl.10
$region0: #{_forward_impl.10}
  #allocation0 [shape = 'u32[]', space=smem, size = 0x4, offset = 0x4, fixed_abs, tag = 'smem constant byte address 0x4 - core index']
  #allocation1 [shape = 'u32[144,128]{1,0:T(1,128)}', space=vmem, size = 0x12000, scoped, tag = 'internal scratch']
  %s0 = inlined_call_operand.vmem [shape: f32[2,9,32], index: 0, kind: input, shape index: {}]
  %s1 = inlined_call_operand.vmem [shape: f32[2,9,32], index: 1, kind: input, shape index: {}]
  %s2 = inlined_call_operand.vmem [shape: f32[2,1,9], index: 2, kind: input, shape index: {}]
  %s3 = inlined_call_operand.vmem [shape: f32[2,9,9], index: 3, kind: output, shape index: {}]
  %s4 = sld [smem:[#allocation0]]
  $region45: #{_forward_impl.10} parent=0
    _
  %s6 = ssub.s32 1, %s4
  %s7 = scalar_select 0, %s6, %s4
  loop: start=0, step=1, limit=4
  $region2: #{_forward_impl.10} parent=0 // loop_pre_header
    _
  $region3: #{_forward_impl.10} parent=0 // loop_header
    %s9 = sphi 0, %s13
    %p10 = scmp.ge.s32.totalorder %s9, 4
    %s16 = sphi 0, %s35
    %s17 = sphi 0, %s31
    %s18 = sphi 0, %s27
    %s19 = sphi 0, %s16
    %s20 = sphi 0, %s17
    %s21 = sphi 0, %s18
    %s22 = sphi 0, %s19
    %s23 = sphi 0, %s20
    %s24 = sphi 0, %s21
    %s40 = sphi 0, %s42
    %s43 = sphi 0, %s40
    %s44 = sphi 0, %s43
    %s60 = sphi 0, %s44
    %s68 = sphi 0, %s70
    %s71 = sphi 0, %s68
    %s72 = sphi 0, %s71
    %s88 = sphi 0, %s72
    %s96 = sphi 0, %s98
    %s99 = sphi 0, %s96
    %s100 = sphi 0, %s99
    %s116 = sphi 0, %s100
    %s126 = sphi 0, %s128
    %s129 = sphi 0, %s126
    %s130 = sphi 0, %s129
    %s146 = sphi 0, %s130
  $region4: #{_forward_impl.10} parent=0 // loop_header_branch
    %12 = sbr.rel (%p10) target = $region8
  $region5: #{_forward_impl.10} parent=0 // loop_body
    %s14 = ssub.s32 %s9, 1
    %s15 = ssub.s32 %s9, 2
    %s25 = sadd.s32 1, %s18
    %p26 = scmp.ge.s32.totalorder %s25, 1
    %s27 = scalar_select %p26, 0, %s25
    %s28 = sadd.s32 1, %s17
    %s29 = scalar_select %p26, %s28, %s17
    %p30 = scmp.ge.s32.totalorder %s29, 1
    %s31 = scalar_select %p30, 0, %s29
    %s32 = sadd.s32 1, %s16
    %s33 = scalar_select %p30, %s32, %s16
    %p34 = scmp.ge.s32.totalorder %s33, 2
    %s35 = scalar_select %p34, 0, %s33
    %s36 = ssub.s32 %s16, %s35
    %s37 = ssub.s32 %s17, %s31
    %s38 = sor.u32 %s36, %s37
    %p39 = scmp.eq.s32.totalorder %s38, 0
    %s41 = sadd.s32 %s40, 1
    %s42 = scalar_select %p39, %s40, %s41
    %p45 = pneg %p39
    %p46 = scmp.eq.s32.totalorder %s9, 1
    %p47 = por %p45, %p46
    %p48 = scmp.ne.s32.totalorder %s40, %s43
    %p49 = scmp.eq.s32.totalorder %s9, 0
    %p50 = por %p48, %p49
    %p51 = scmp.ne.s32.totalorder %s40, %s43
    %p52 = scmp.eq.s32.totalorder %s14, 1
    %p53 = por %p51, %p52
    %p54 = scmp.ne.s32.totalorder %s43, %s44
    %p55 = scmp.eq.s32.totalorder %s14, 0
    %p56 = por %p54, %p55
    %p57 = scmp.ne.s32.totalorder %s43, %s44
    %p58 = scmp.eq.s32.totalorder %s15, 1
    %p59 = por %p57, %p58
    %p61 = scmp.ne.s32.totalorder %s44, %s60
    %p62 = scmp.eq.s32.totalorder %s15, 0
    %p63 = por %p61, %p62
    %s64 = ssub.s32 %s16, %s35
    %s65 = ssub.s32 %s18, %s27
    %s66 = sor.u32 %s64, %s65
    %p67 = scmp.eq.s32.totalorder %s66, 0
    %s69 = sadd.s32 %s68, 1
    %s70 = scalar_select %p67, %s68, %s69
    %p73 = pneg %p67
    %p74 = scmp.eq.s32.totalorder %s9, 1
    %p75 = por %p73, %p74
    %p76 = scmp.ne.s32.totalorder %s68, %s71
    %p77 = scmp.eq.s32.totalorder %s9, 0
    %p78 = por %p76, %p77
    %p79 = scmp.ne.s32.totalorder %s68, %s71
    %p80 = scmp.eq.s32.totalorder %s14, 1
    %p81 = por %p79, %p80
    %p82 = scmp.ne.s32.totalorder %s71, %s72
    %p83 = scmp.eq.s32.totalorder %s14, 0
    %p84 = por %p82, %p83
    %p85 = scmp.ne.s32.totalorder %s71, %s72
    %p86 = scmp.eq.s32.totalorder %s15, 1
    %p87 = por %p85, %p86
    %p89 = scmp.ne.s32.totalorder %s72, %s88
    %p90 = scmp.eq.s32.totalorder %s15, 0
    %p91 = por %p89, %p90
    %s92 = ssub.s32 %s16, %s35
    %s93 = ssub.s32 %s18, %s27
    %s94 = sor.u32 %s92, %s93
    %p95 = scmp.eq.s32.totalorder %s94, 0
    %s97 = sadd.s32 %s96, 1
    %s98 = scalar_select %p95, %s96, %s97
    %p101 = pneg %p95
    %p102 = scmp.eq.s32.totalorder %s9, 1
    %p103 = por %p101, %p102
    %p104 = scmp.ne.s32.totalorder %s96, %s99
    %p105 = scmp.eq.s32.totalorder %s9, 0
    %p106 = por %p104, %p105
    %p107 = scmp.ne.s32.totalorder %s96, %s99
    %p108 = scmp.eq.s32.totalorder %s14, 1
    %p109 = por %p107, %p108
    %p110 = scmp.ne.s32.totalorder %s99, %s100
    %p111 = scmp.eq.s32.totalorder %s14, 0
    %p112 = por %p110, %p111
    %p113 = scmp.ne.s32.totalorder %s99, %s100
    %p114 = scmp.eq.s32.totalorder %s15, 1
    %p115 = por %p113, %p114
    %p117 = scmp.ne.s32.totalorder %s100, %s116
    %p118 = scmp.eq.s32.totalorder %s15, 0
    %p119 = por %p117, %p118
    %s120 = ssub.s32 %s16, %s35
    %s121 = ssub.s32 %s17, %s31
    %s122 = sor.u32 %s120, %s121
    %s123 = ssub.s32 %s18, %s27
    %s124 = sor.u32 %s122, %s123
    %p125 = scmp.eq.s32.totalorder %s124, 0
    %s127 = sadd.s32 %s126, 1
    %s128 = scalar_select %p125, %s126, %s127
    %p131 = pneg %p125
    %p132 = scmp.eq.s32.totalorder %s9, 1
    %p133 = por %p131, %p132
    %p134 = scmp.ne.s32.totalorder %s126, %s129
    %p135 = scmp.eq.s32.totalorder %s9, 0
    %p136 = por %p134, %p135
    %p137 = scmp.ne.s32.totalorder %s126, %s129
    %p138 = scmp.eq.s32.totalorder %s14, 1
    %p139 = por %p137, %p138
    %p140 = scmp.ne.s32.totalorder %s129, %s130
    %p141 = scmp.eq.s32.totalorder %s14, 0
    %p142 = por %p140, %p141
    %p143 = scmp.ne.s32.totalorder %s129, %s130
    %p144 = scmp.eq.s32.totalorder %s15, 1
    %p145 = por %p143, %p144
    %p147 = scmp.ne.s32.totalorder %s130, %s146
    %p148 = scmp.eq.s32.totalorder %s15, 0
    %p149 = por %p147, %p148
    %p150 = scmp.le.s32.totalorder 1, %s9
    %p151 = scmp.lt.s32.totalorder %s9, 3
    %p152 = pnand %p150, %p151
    %p153 = pneg %p152
    // Predicated region
    $region9: #{_forward_impl.10} parent=5 // pred_check
      _
    $region10: #{_forward_impl.10} parent=5 // pred_check_branch
      %155 = sbr.rel (%p152) target = $region12
    $region11: #{_forward_impl.10} parent=5 // pred_region
      %s156 = ssub.s32 %s9, 1
    $region12: #{_forward_impl.10} parent=5 // pred_fallthru
      _
    %p157 = scmp.lt.s32.totalorder %s9, 2
    // Predicated region
    $region13: #{_forward_impl.10} parent=5 // pred_check
      %p158 = pneg %p157
    $region14: #{_forward_impl.10} parent=5 // pred_check_branch
      %160 = sbr.rel (%p158) target = $region16
    $region15: #{_forward_impl.10} parent=5 // pred_region
      // Predicated region
      $region17: #{_forward_impl.10} parent=15 // pred_check
        %p161 = pneg %p50
      $region18: #{_forward_impl.10} parent=15 // pred_check_branch
        %163 = sbr.rel (%p161) target = $region20
      $region19: #{_forward_impl.10} parent=15 // pred_region
        %s164 = smul.u32 2, %s17
        %p165 = scmp.lt.s32.totalorder %s16, 1
        %s166 = scalar_select %p165, %s16, 1
        %p167 = scmp.lt.s32.totalorder %s164, 1
        %s168 = scalar_select %p167, %s164, 1
        %s169 = smul.addr %s166, 2
        %s170 = sadd.s32 %s168, %s169
        %s171 = smul.addr %s170, 8
        %s172 = scalar_lea.vmem %s0, %s171
        %s173 = smul.u32 2, %s17
      $region20: #{_forward_impl.10} parent=15 // pred_fallthru
        _
      // Predicated region
      $region21: #{_forward_impl.10} parent=15 // pred_check
        %p174 = pneg %p78
      $region22: #{_forward_impl.10} parent=15 // pred_check_branch
        %176 = sbr.rel (%p174) target = $region24
      $region23: #{_forward_impl.10} parent=15 // pred_region
        %s177 = smul.u32 2, %s18
        %p178 = scmp.lt.s32.totalorder %s16, 1
        %s179 = scalar_select %p178, %s16, 1
        %p180 = scmp.lt.s32.totalorder %s177, 1
        %s181 = scalar_select %p180, %s177, 1
        %s182 = smul.addr %s179, 2
        %s183 = sadd.s32 %s181, %s182
        %s184 = smul.addr %s183, 8
        %s185 = scalar_lea.vmem %s1, %s184
        %s186 = smul.u32 2, %s18
      $region24: #{_forward_impl.10} parent=15 // pred_fallthru
        _
      // Predicated region
      $region25: #{_forward_impl.10} parent=15 // pred_check
        %p187 = pneg %p106
      $region26: #{_forward_impl.10} parent=15 // pred_check_branch
        %189 = sbr.rel (%p187) target = $region28
      $region27: #{_forward_impl.10} parent=15 // pred_region
        %p190 = scmp.lt.s32.totalorder %s16, 1
        %s191 = scalar_select %p190, %s16, 1
        %p192 = scmp.lt.s32.totalorder %s18, 0
        %s193 = scalar_select %p192, %s18, 0
        %s194 = sadd.s32 %s193, %s191
        %s195 = scalar_lea.vmem %s2, %s194
      $region28: #{_forward_impl.10} parent=15 // pred_fallthru
        _
    $region16: #{_forward_impl.10} parent=5 // pred_fallthru
      _
    %p196 = scmp.le.s32.totalorder 1, %s9
    %p197 = scmp.lt.s32.totalorder %s9, 3
    %p198 = pnand %p196, %p197
    %p199 = pneg %p198
    // Predicated region
    $region29: #{_forward_impl.10} parent=5 // pred_check
      _
    $region30: #{_forward_impl.10} parent=5 // pred_check_branch
      %201 = sbr.rel (%p198) target = $region32
    $region31: #{_forward_impl.10} parent=5 // pred_region
      %s202 = ssub.s32 %s9, 1
      %s203 = smul.u32 2, %s20
      %p204 = scmp.lt.s32.totalorder %s19, 1
      %s205 = scalar_select %p204, %s19, 1
      %p206 = scmp.lt.s32.totalorder %s203, 1
      %s207 = scalar_select %p206, %s203, 1
      %s208 = smul.addr %s205, 2
      %s209 = sadd.s32 %s207, %s208
      %s210 = smul.addr %s209, 8
      %s211 = scalar_lea.vmem %s0, %s210
      %p212 = pneg %p56
      %p213 = pneg %p53
      %s214 = smul.u32 2, %s21
      %p215 = scmp.lt.s32.totalorder %s19, 1
      %s216 = scalar_select %p215, %s19, 1
      %p217 = scmp.lt.s32.totalorder %s214, 1
      %s218 = scalar_select %p217, %s214, 1
      %s219 = smul.addr %s216, 2
      %s220 = sadd.s32 %s218, %s219
      %s221 = smul.addr %s220, 8
      %s222 = scalar_lea.vmem %s1, %s221
      %p223 = pneg %p84
      %p224 = pneg %p81
      %p225 = scmp.lt.s32.totalorder %s19, 1
      %s226 = scalar_select %p225, %s19, 1
      %p227 = scmp.lt.s32.totalorder %s21, 0
      %s228 = scalar_select %p227, %s21, 0
      %s229 = sadd.s32 %s228, %s226
      %s230 = scalar_lea.vmem %s2, %s229
      %p231 = pneg %p112
      %p232 = pneg %p109
      %p233 = pneg %p142
      %p234 = pneg %p139
      %s235 = smul.u32 2, %s20
      %p236 = scmp.lt.s32.totalorder %s19, 1
      %s237 = scalar_select %p236, %s19, 1
      %p238 = scmp.lt.s32.totalorder %s235, 1
      %s239 = scalar_select %p238, %s235, 1
      %p240 = scmp.lt.s32.totalorder %s21, 0
      %s241 = scalar_select %p240, %s21, 0
      %s242 = sadd.s32 %s241, %s239
      %s243 = smul.addr %s237, 2
      %s244 = sadd.s32 %s242, %s243
      %s245 = smul.addr %s244, 8
      %s246 = scalar_lea.vmem %s3, %s245
      %s247 = smul.u32 2, %s20
      %p248 = scmp.lt.s32.totalorder %s19, 1
      %s249 = scalar_select %p248, %s19, 1
      %p250 = scmp.lt.s32.totalorder %s247, 1
      %s251 = scalar_select %p250, %s247, 1
      %s252 = smul.addr %s249, 2
      %s253 = sadd.s32 %s251, %s252
      %s254 = smul.addr %s253, 8
      %s255 = scalar_lea.vmem %s0, %s254
      %s256 = smul.u32 2, %s20
      %s257 = smul.u32 2, %s21
      %p258 = scmp.lt.s32.totalorder %s19, 1
      %s259 = scalar_select %p258, %s19, 1
      %p260 = scmp.lt.s32.totalorder %s257, 1
      %s261 = scalar_select %p260, %s257, 1
      %s262 = smul.addr %s259, 2
      %s263 = sadd.s32 %s261, %s262
      %s264 = smul.addr %s263, 8
      %s265 = scalar_lea.vmem %s1, %s264
      %s266 = smul.u32 2, %s21
      %p267 = scmp.lt.s32.totalorder %s19, 1
      %s268 = scalar_select %p267, %s19, 1
      %p269 = scmp.lt.s32.totalorder %s21, 0
      %s270 = scalar_select %p269, %s21, 0
      %s271 = sadd.s32 %s270, %s268
      %s272 = scalar_lea.vmem %s2, %s271
      %s273 = smul.u32 2, %s20
      %p274 = scmp.lt.s32.totalorder %s19, 1
      %s275 = scalar_select %p274, %s19, 1
      %p276 = scmp.lt.s32.totalorder %s273, 1
      %s277 = scalar_select %p276, %s273, 1
      %p278 = scmp.lt.s32.totalorder %s21, 0
      %s279 = scalar_select %p278, %s21, 0
      %s280 = sadd.s32 %s279, %s277
      %s281 = smul.addr %s275, 2
      %s282 = sadd.s32 %s280, %s281
      %s283 = smul.addr %s282, 8
      %s284 = scalar_lea.vmem %s3, %s283
      %s285 = smul.u32 2, %s20
      %p286 = scmp.eq.s32.totalorder %s19, 1
      %s287 = scalar_select %p286, 1.0, 0.5
      %s288 = smax.f32 %s287, 1e-07
      %v289 = vstv %s288
      %v290 = vrsqrt.pop %v289
      %s291 = vtos %v290
      %v292 = vld [vmem:[%s255] sm:$0xff]
      %v293 = vld [vmem:[%s255 + $0x8] sm:$0x1]
      %v294 = vld [vmem:[%s265] sm:$0xff]
      %v295 = vld [vmem:[%s265 + $0x8] sm:$0x1]
      %v296 = vld [vmem:[%s272] sm:$0x1]
      %v297 = vmul.f32 %v292, %v292
      %v298 = vmul.f32 %v293, %v293
      %vm299 = vcmask 261120
      %v300 = vsel %vm299, %v297, 0.0
      %301 = vadd.xlane.f32.xlu0 %v300
      %v302 = vpop.xlane.xlu0 %301
      %vm303 = vcmask 253952
      %v304 = vsel %vm303, %v298, 0.0
      %305 = vadd.xlane.f32.xlu0 %v304
      %v306 = vpop.xlane.xlu0 %305
      %v308 = vsel %vm299, %v292, 0
      %v311 = vsel %vm299, %v293, 0
      %v314 = vsel %vm299, %v294, 0
      %v317 = vsel %vm299, %v295, 0
      %319 = vmatprep.subr.mxu0 0.0
      %320 = vmatpush1.xpose.msra.mxu0 %v314
      %321 = vmatprep.subr.mxu0 0.0
      %322 = vmatpush1.xpose.msra.mxu0 %v317
      %323 = vmatprep.subr.mxu0 0.0
      %324 = vmatpush1.xpose.msra.mxu0 0.0
      %325 = vmatprep.subr.mxu0 0.0
      %326 = vmatpush1.xpose.msra.mxu0 0.0
      %327 = vmatprep.subr.mxu0 0.0
      %328 = vmatpush1.xpose.msra.mxu0 0.0
      %329 = vmatprep.subr.mxu0 0.0
      %330 = vmatpush1.xpose.msra.mxu0 0.0
      %331 = vmatprep.subr.mxu0 0.0
      %332 = vmatpush1.xpose.msra.mxu0 0.0
      %333 = vmatprep.subr.mxu0 0.0
      %334 = vmatpush1.xpose.msra.mxu0 0.0
      %335 = vmatprep.subr.mxu0 0.0
      %336 = vmatpush1.xpose.msra.mxu0 0.0
      %337 = vmatprep.subr.mxu0 0.0
      %338 = vmatpush1.xpose.msra.mxu0 0.0
      %339 = vmatprep.subr.mxu0 0.0
      %340 = vmatpush1.xpose.msra.mxu0 0.0
      %341 = vmatprep.subr.mxu0 0.0
      %342 = vmatpush1.xpose.msra.mxu0 0.0
      %343 = vmatprep.subr.mxu0 0.0
      %344 = vmatpush1.xpose.msra.mxu0 0.0
      %345 = vmatprep.subr.mxu0 0.0
      %346 = vmatpush1.xpose.msra.mxu0 0.0
      %347 = vmatprep.subr.mxu0 0.0
      %348 = vmatpush1.xpose.msra.mxu0 0.0
      %349 = vmatprep.subr.mxu0 0.0
      %350 = vmatpush1.xpose.msra.mxu0 0.0
      %351 = vmatprep.subr.mxu0 0.0
      %352 = vmatpush1.xpose.msra.mxu0 0.0
      %353 = vmatprep.subr.mxu0 0.0
      %354 = vmatpush1.xpose.msra.mxu0 0.0
      %355 = vmatprep.subr.mxu0 0.0
      %356 = vmatpush1.xpose.msra.mxu0 0.0
      %357 = vmatprep.subr.mxu0 0.0
      %358 = vmatpush1.xpose.msra.mxu0 0.0
      %359 = vmatprep.subr.mxu0 0.0
      %360 = vmatpush1.xpose.msra.mxu0 0.0
      %361 = vmatprep.subr.mxu0 0.0
      %362 = vmatpush1.xpose.msra.mxu0 0.0
      %363 = vmatprep.subr.mxu0 0.0
      %364 = vmatpush1.xpose.msra.mxu0 0.0
      %365 = vmatprep.subr.mxu0 0.0
      %366 = vmatpush1.xpose.msra.mxu0 0.0
      %367 = vmatprep.subr.mxu0 0.0
      %368 = vmatpush1.xpose.msra.mxu0 0.0
      %369 = vmatprep.subr.mxu0 0.0
      %370 = vmatpush1.xpose.msra.mxu0 0.0
      %371 = vmatprep.subr.mxu0 0.0
      %372 = vmatpush1.xpose.msra.mxu0 0.0
      %373 = vmatprep.subr.mxu0 0.0
      %374 = vmatpush1.xpose.msra.mxu0 0.0
      %375 = vmatprep.subr.mxu0 0.0
      %376 = vmatpush1.xpose.msra.mxu0 0.0
      %377 = vmatprep.subr.mxu0 0.0
      %378 = vmatpush1.xpose.msra.mxu0 0.0
      %379 = vmatprep.subr.mxu0 0.0
      %380 = vmatpush1.xpose.msra.mxu0 0.0
      %381 = vmatprep.subr.mxu0 0.0
      %382 = vmatpush1.xpose.msra.mxu0 0.0
      %383 = vmatprep.mubr.f32.mxu0 0.0
      %384 = vmatmul.mubr.f32.gmra.mrb[0].mxu0 %v308
      %v385 = vpop.f32.mrb[0].mxu0
      %v386 = vadd.f32 0.0, %v385
      %v387 = vpop.f32.mrb[0].mxu0
      %388 = vmatprep.mubr.f32.mxu0 0.0
      %389 = vmatmul.mubr.f32.gmra.mrb[0].mxu0 %v311
      %v390 = vpop.f32.mrb[0].mxu0
      %v391 = vadd.f32 0.0, %v390
      %v392 = vpop.f32.mrb[0].mxu0
      %393 = vdwg.mxu0
      %v395 = vlaneseq
      %v396 = vshrl.u32 %v395, 7
      %v397 = vsub.s32 0, %v396
      %v398 = vrot.slane %v296, %v397
      %v400 = vadd.f32 %v302, %v398
      %v401 = vadd.f32 %v306, %v398
      %v402 = vmul.f32 %v386, 2.0
      %v403 = vmul.f32 %v391, 2.0
      %v404 = vsub.f32 %v400, %v402
      %v405 = vsub.f32 %v401, %v403
      %v406 = vmax.f32 %v404, 0.0
      %v407 = vmax.f32 %v405, 0.0
      %v408 = vstv %s287
      %v409 = vmul.f32 %v408, %v302
      %v410 = vmul.f32 %v408, %v306
      %v411 = vsub.f32 1.0, %v409
      %v412 = vsub.f32 1.0, %v410
      %v413 = vmul.f32 %v408, %v296
      %v414 = vsub.f32 1.0, %v413
      %v416 = vlaneseq
      %v417 = vshrl.u32 %v416, 7
      %v418 = vsub.s32 0, %v417
      %v419 = vrot.slane %v414, %v418
      %v421 = vmul.f32 %v411, %v419
      %v422 = vmul.f32 %v412, %v419
      %v423 = vmax.f32 %v421, 1e-07
      %v424 = vmax.f32 %v422, 1e-07
      %s425 = smul.f32 %s287, 2.0
      %v426 = vstv %s425
      %v427 = vmul.f32 %v426, %v406
      %v428 = vmul.f32 %v426, %v407
      %v429 = vrcp.pop %v423
      %v430 = vrcp.pop %v424
      %v431 = vmul.f32 %v427, %v429
      %v432 = vmul.f32 %v428, %v430
      %v433 = vmax.f32 %v431, 1e-07
      %v434 = vmax.f32 %v432, 1e-07
      %v435 = vadd.f32 %v433, 2.0
      %v436 = vadd.f32 %v434, 2.0
      %v437 = vmul.f32 %v433, %v435
      %v438 = vmul.f32 %v434, %v436
      %v439 = vrsqrt.pop %v437
      %v440 = vmul.f32 %v437, %v439
      %vm441 = vcmp.eq.f32.partialorder %v437, inf
      %v442 = vsel %vm441, %v437, %v440
      %vm443 = vcmp.eq.f32.partialorder %v437, 0.0
      %v444 = vand.u32 %v437, 2147483648
      %v445 = vsel %vm443, %v444, %v442
      %v446 = vrsqrt.pop %v438
      %v447 = vmul.f32 %v438, %v446
      %vm448 = vcmp.eq.f32.partialorder %v438, inf
      %v449 = vsel %vm448, %v438, %v447
      %vm450 = vcmp.eq.f32.partialorder %v438, 0.0
      %v451 = vand.u32 %v438, 2147483648
      %v452 = vsel %vm450, %v451, %v449
      %v453 = vadd.f32 %v433, %v445
      %v454 = vadd.f32 %v434, %v452
      %v455 = vadd.f32 %v453, 1.0
      %v456 = vlog2.pop %v455
      %v457 = vmul.f32 %v456, 0.6931472
      %v458 = vmul.f32 -0.5, %v453
      %v459 = vadd.f32 %v458, 1.0
      %v460 = vmul.f32 %v459, %v453
      %v461 = vand.u32 2147483647, %v453
      %vm462 = vcmp.lt.f32.partialorder %v461, 0.0004427343
      %v463 = vsel %vm462, %v460, %v457
      %v464 = vadd.f32 %v454, 1.0
      %v465 = vlog2.pop %v464
      %v466 = vmul.f32 %v465, 0.6931472
      %v467 = vmul.f32 -0.5, %v454
      %v468 = vadd.f32 %v467, 1.0
      %v469 = vmul.f32 %v468, %v454
      %v470 = vand.u32 2147483647, %v454
      %vm471 = vcmp.lt.f32.partialorder %v470, 0.0004427343
      %v472 = vsel %vm471, %v469, %v466
      %v473 = vstv %s291
      %v474 = vmul.f32 %v463, %v473
      %v475 = vmul.f32 %v472, %v473
      %v476 = vmul.f32 %v474, %v474
      %v477 = vmul.f32 %v475, %v475
      %v478 = vsub.f32 0.0, %v476
      %v479 = vsub.f32 0.0, %v477
      %v480 = vmul.f32 %v478, 2.0
      %v481 = vmul.f32 %v479, 2.0
      %v482 = vxor.u32 %v480, 2147483648
      %v483 = vxor.u32 %v481, 2147483648
      %v484 = vmul.f32 %v482, 1.442695
      %v485 = vpow.pop %v484
      %v486 = vmul.f32 %v483, 1.442695
      %v487 = vpow.pop %v486
      %v488 = vadd.f32 %v485, 1.0
      %v489 = vadd.f32 %v487, 1.0
      %v490 = vrcp.pop %v488
      %v491 = vmul.f32 1.0, %v490
      %v492 = vrcp.pop %v489
      %v493 = vmul.f32 1.0, %v492
      %v494 = vmul.f32 %v491, 2.0
      %v495 = vmul.f32 %v493, 2.0
      %vm496 = vcmask 72704
      %497 = vst.msk [vmem:[%s284] sm:$0xff] %vm496, %v494
      %vm498 = vcmask 65536
      %499 = vst.msk [vmem:[%s284 + $0x8] sm:$0x1] %vm498, %v495
      %s500 = smul.u32 2, %s20
      %p501 = scmp.lt.s32.totalorder %s19, 1
      %s502 = scalar_select %p501, %s19, 1
      %p503 = scmp.lt.s32.totalorder %s500, 1
      %s504 = scalar_select %p503, %s500, 1
      %p505 = scmp.lt.s32.totalorder %s21, 0
      %s506 = scalar_select %p505, %s21, 0
      %s507 = sadd.s32 %s506, %s504
      %s508 = smul.addr %s502, 2
      %s509 = sadd.s32 %s507, %s508
      %s510 = smul.addr %s509, 8
      %s511 = scalar_lea.vmem %s3, %s510
      // Predicated region
      $region33: #{_forward_impl.10} parent=31 // pred_check
        %p512 = pneg %p139
      $region34: #{_forward_impl.10} parent=31 // pred_check_branch
        %514 = sbr.rel (%p512) target = $region36
      $region35: #{_forward_impl.10} parent=31 // pred_region
        %s515 = smul.u32 2, %s20
      $region36: #{_forward_impl.10} parent=31 // pred_fallthru
        _
    $region32: #{_forward_impl.10} parent=5 // pred_fallthru
      _
    %p516 = scmp.le.s32.totalorder 2, %s9
    // Predicated region
    $region37: #{_forward_impl.10} parent=5 // pred_check
      %p517 = pneg %p516
    $region38: #{_forward_impl.10} parent=5 // pred_check_branch
      %519 = sbr.rel (%p517) target = $region40
    $region39: #{_forward_impl.10} parent=5 // pred_region
      %s520 = ssub.s32 %s9, 2
      // Predicated region
      $region41: #{_forward_impl.10} parent=39 // pred_check
        %p521 = pneg %p145
      $region42: #{_forward_impl.10} parent=39 // pred_check_branch
        %523 = sbr.rel (%p521) target = $region44
      $region43: #{_forward_impl.10} parent=39 // pred_region
        %s524 = smul.u32 2, %s23
        %p525 = scmp.lt.s32.totalorder %s22, 1
        %s526 = scalar_select %p525, %s22, 1
        %p527 = scmp.lt.s32.totalorder %s524, 1
        %s528 = scalar_select %p527, %s524, 1
        %p529 = scmp.lt.s32.totalorder %s24, 0
        %s530 = scalar_select %p529, %s24, 0
        %s531 = sadd.s32 %s530, %s528
        %s532 = smul.addr %s526, 2
        %s533 = sadd.s32 %s531, %s532
        %s534 = smul.addr %s533, 8
        %s535 = scalar_lea.vmem %s3, %s534
      $region44: #{_forward_impl.10} parent=39 // pred_fallthru
        _
    $region40: #{_forward_impl.10} parent=5 // pred_fallthru
      _
  $region6: #{_forward_impl.10} parent=0 // loop_footer
    %s13 = sadd.s32 1, %s9
  $region7: #{_forward_impl.10} parent=0 // loop_footer_branch
    %8 = sbr.rel target = $region3
  $region8: #{_forward_impl.10} parent=0 // loop_exit
    _

// kernel: _forward_impl.8
$region0: #{_forward_impl.8}
  #allocation0 [shape = 'u32[]', space=smem, size = 0x4, offset = 0x4, fixed_abs, tag = 'smem constant byte address 0x4 - core index']
  #allocation1 [shape = 'u32[144,128]{1,0:T(1,128)}', space=vmem, size = 0x12000, scoped, tag = 'internal scratch']
  %s0 = inlined_call_operand.vmem [shape: f32[112,32], index: 0, kind: input, shape index: {}]
  %s1 = inlined_call_operand.vmem [shape: f32[32,32], index: 1, kind: input, shape index: {}]
  %s2 = inlined_call_operand.vmem [shape: f32[1,32], index: 2, kind: input, shape index: {}]
  %s3 = inlined_call_operand.vmem [shape: f32[112,32], index: 3, kind: output, shape index: {}]
  %s4 = sld [smem:[#allocation0]]
  $region22: #{_forward_impl.8} parent=0
    _
  %s6 = ssub.s32 1, %s4
  %s7 = scalar_select 0, %s6, %s4
  // Predicated region
  $region2: #{_forward_impl.8} parent=0 // pred_check
    _
  $region3: #{_forward_impl.8} parent=0 // pred_check_branch
    %9 = sbr.rel (0) target = $region5
  $region4: #{_forward_impl.8} parent=0 // pred_region
    _
  $region5: #{_forward_impl.8} parent=0 // pred_fallthru
    _
  // Predicated region
  $region6: #{_forward_impl.8} parent=0 // pred_check
    _
  $region7: #{_forward_impl.8} parent=0 // pred_check_branch
    %11 = sbr.rel (0) target = $region9
  $region8: #{_forward_impl.8} parent=0 // pred_region
    _
  $region9: #{_forward_impl.8} parent=0 // pred_fallthru
    _
  // Predicated region
  $region10: #{_forward_impl.8} parent=0 // pred_check
    _
  $region11: #{_forward_impl.8} parent=0 // pred_check_branch
    %13 = sbr.rel (0) target = $region13
  $region12: #{_forward_impl.8} parent=0 // pred_region
    _
  $region13: #{_forward_impl.8} parent=0 // pred_fallthru
    _
  %v14 = vld [vmem:[%s0] sm:$0xff]
  %v15 = vld [vmem:[%s0 + $0x8] sm:$0xff]
  %v16 = vld [vmem:[%s0 + $0x10] sm:$0xff]
  %v17 = vld [vmem:[%s0 + $0x18] sm:$0xff]
  %v18 = vld [vmem:[%s0 + $0x20] sm:$0xff]
  %v19 = vld [vmem:[%s0 + $0x28] sm:$0xff]
  %v20 = vld [vmem:[%s0 + $0x30] sm:$0xff]
  %v21 = vld [vmem:[%s0 + $0x38] sm:$0xff]
  %v22 = vld [vmem:[%s0 + $0x40] sm:$0xff]
  %v23 = vld [vmem:[%s0 + $0x48] sm:$0xff]
  %v24 = vld [vmem:[%s0 + $0x50] sm:$0xff]
  %v25 = vld [vmem:[%s0 + $0x58] sm:$0xff]
  %v26 = vld [vmem:[%s0 + $0x60] sm:$0xff]
  %v27 = vld [vmem:[%s0 + $0x68] sm:$0xff]
  %v28 = vmul.f32 %v14, %v14
  %v29 = vmul.f32 %v15, %v15
  %v30 = vmul.f32 %v16, %v16
  %v31 = vmul.f32 %v17, %v17
  %v32 = vmul.f32 %v18, %v18
  %v33 = vmul.f32 %v19, %v19
  %v34 = vmul.f32 %v20, %v20
  %v35 = vmul.f32 %v21, %v21
  %v36 = vmul.f32 %v22, %v22
  %v37 = vmul.f32 %v23, %v23
  %v38 = vmul.f32 %v24, %v24
  %v39 = vmul.f32 %v25, %v25
  %v40 = vmul.f32 %v26, %v26
  %v41 = vmul.f32 %v27, %v27
  %vm42 = vcmask 261120
  %v43 = vsel %vm42, %v28, 0.0
  %44 = vadd.xlane.f32.xlu0 %v43
  %v45 = vpop.xlane.xlu0 %44
  %v46 = vsel %vm42, %v29, 0.0
  %47 = vadd.xlane.f32.xlu0 %v46
  %v48 = vpop.xlane.xlu0 %47
  %v49 = vsel %vm42, %v30, 0.0
  %50 = vadd.xlane.f32.xlu0 %v49
  %v51 = vpop.xlane.xlu0 %50
  %v52 = vsel %vm42, %v31, 0.0
  %53 = vadd.xlane.f32.xlu0 %v52
  %v54 = vpop.xlane.xlu0 %53
  %v55 = vsel %vm42, %v32, 0.0
  %56 = vadd.xlane.f32.xlu0 %v55
  %v57 = vpop.xlane.xlu0 %56
  %v58 = vsel %vm42, %v33, 0.0
  %59 = vadd.xlane.f32.xlu0 %v58
  %v60 = vpop.xlane.xlu0 %59
  %v61 = vsel %vm42, %v34, 0.0
  %62 = vadd.xlane.f32.xlu0 %v61
  %v63 = vpop.xlane.xlu0 %62
  %v64 = vsel %vm42, %v35, 0.0
  %65 = vadd.xlane.f32.xlu0 %v64
  %v66 = vpop.xlane.xlu0 %65
  %v67 = vsel %vm42, %v36, 0.0
  %68 = vadd.xlane.f32.xlu0 %v67
  %v69 = vpop.xlane.xlu0 %68
  %v70 = vsel %vm42, %v37, 0.0
  %71 = vadd.xlane.f32.xlu0 %v70
  %v72 = vpop.xlane.xlu0 %71
  %v73 = vsel %vm42, %v38, 0.0
  %74 = vadd.xlane.f32.xlu0 %v73
  %v75 = vpop.xlane.xlu0 %74
  %v76 = vsel %vm42, %v39, 0.0
  %77 = vadd.xlane.f32.xlu0 %v76
  %v78 = vpop.xlane.xlu0 %77
  %v79 = vsel %vm42, %v40, 0.0
  %80 = vadd.xlane.f32.xlu0 %v79
  %v81 = vpop.xlane.xlu0 %80
  %v82 = vsel %vm42, %v41, 0.0
  %83 = vadd.xlane.f32.xlu0 %v82
  %v84 = vpop.xlane.xlu0 %83
  %v85 = vmax.f32 %v45, 1e-07
  %v86 = vmax.f32 %v48, 1e-07
  %v87 = vmax.f32 %v51, 1e-07
  %v88 = vmax.f32 %v54, 1e-07
  %v89 = vmax.f32 %v57, 1e-07
  %v90 = vmax.f32 %v60, 1e-07
  %v91 = vmax.f32 %v63, 1e-07
  %v92 = vmax.f32 %v66, 1e-07
  %v93 = vmax.f32 %v69, 1e-07
  %v94 = vmax.f32 %v72, 1e-07
  %v95 = vmax.f32 %v75, 1e-07
  %v96 = vmax.f32 %v78, 1e-07
  %v97 = vmax.f32 %v81, 1e-07
  %v98 = vmax.f32 %v84, 1e-07
  %v99 = vrsqrt.pop %v85
  %v100 = vmul.f32 %v85, %v99
  %vm101 = vcmp.eq.f32.partialorder %v85, inf
  %v102 = vsel %vm101, %v85, %v100
  %vm103 = vcmp.eq.f32.partialorder %v85, 0.0
  %v104 = vand.u32 %v85, 2147483648
  %v105 = vsel %vm103, %v104, %v102
  %v106 = vrsqrt.pop %v86
  %v107 = vmul.f32 %v86, %v106
  %vm108 = vcmp.eq.f32.partialorder %v86, inf
  %v109 = vsel %vm108, %v86, %v107
  %vm110 = vcmp.eq.f32.partialorder %v86, 0.0
  %v111 = vand.u32 %v86, 2147483648
  %v112 = vsel %vm110, %v111, %v109
  %v113 = vrsqrt.pop %v87
  %v114 = vmul.f32 %v87, %v113
  %vm115 = vcmp.eq.f32.partialorder %v87, inf
  %v116 = vsel %vm115, %v87, %v114
  %vm117 = vcmp.eq.f32.partialorder %v87, 0.0
  %v118 = vand.u32 %v87, 2147483648
  %v119 = vsel %vm117, %v118, %v116
  %v120 = vrsqrt.pop %v88
  %v121 = vmul.f32 %v88, %v120
  %vm122 = vcmp.eq.f32.partialorder %v88, inf
  %v123 = vsel %vm122, %v88, %v121
  %vm124 = vcmp.eq.f32.partialorder %v88, 0.0
  %v125 = vand.u32 %v88, 2147483648
  %v126 = vsel %vm124, %v125, %v123
  %v127 = vrsqrt.pop %v89
  %v128 = vmul.f32 %v89, %v127
  %vm129 = vcmp.eq.f32.partialorder %v89, inf
  %v130 = vsel %vm129, %v89, %v128
  %vm131 = vcmp.eq.f32.partialorder %v89, 0.0
  %v132 = vand.u32 %v89, 2147483648
  %v133 = vsel %vm131, %v132, %v130
  %v134 = vrsqrt.pop %v90
  %v135 = vmul.f32 %v90, %v134
  %vm136 = vcmp.eq.f32.partialorder %v90, inf
  %v137 = vsel %vm136, %v90, %v135
  %vm138 = vcmp.eq.f32.partialorder %v90, 0.0
  %v139 = vand.u32 %v90, 2147483648
  %v140 = vsel %vm138, %v139, %v137
  %v141 = vrsqrt.pop %v91
  %v142 = vmul.f32 %v91, %v141
  %vm143 = vcmp.eq.f32.partialorder %v91, inf
  %v144 = vsel %vm143, %v91, %v142
  %vm145 = vcmp.eq.f32.partialorder %v91, 0.0
  %v146 = vand.u32 %v91, 2147483648
  %v147 = vsel %vm145, %v146, %v144
  %v148 = vrsqrt.pop %v92
  %v149 = vmul.f32 %v92, %v148
  %vm150 = vcmp.eq.f32.partialorder %v92, inf
  %v151 = vsel %vm150, %v92, %v149
  %vm152 = vcmp.eq.f32.partialorder %v92, 0.0
  %v153 = vand.u32 %v92, 2147483648
  %v154 = vsel %vm152, %v153, %v151
  %v155 = vrsqrt.pop %v93
  %v156 = vmul.f32 %v93, %v155
  %vm157 = vcmp.eq.f32.partialorder %v93, inf
  %v158 = vsel %vm157, %v93, %v156
  %vm159 = vcmp.eq.f32.partialorder %v93, 0.0
  %v160 = vand.u32 %v93, 2147483648
  %v161 = vsel %vm159, %v160, %v158
  %v162 = vrsqrt.pop %v94
  %v163 = vmul.f32 %v94, %v162
  %vm164 = vcmp.eq.f32.partialorder %v94, inf
  %v165 = vsel %vm164, %v94, %v163
  %vm166 = vcmp.eq.f32.partialorder %v94, 0.0
  %v167 = vand.u32 %v94, 2147483648
  %v168 = vsel %vm166, %v167, %v165
  %v169 = vrsqrt.pop %v95
  %v170 = vmul.f32 %v95, %v169
  %vm171 = vcmp.eq.f32.partialorder %v95, inf
  %v172 = vsel %vm171, %v95, %v170
  %vm173 = vcmp.eq.f32.partialorder %v95, 0.0
  %v174 = vand.u32 %v95, 2147483648
  %v175 = vsel %vm173, %v174, %v172
  %v176 = vrsqrt.pop %v96
  %v177 = vmul.f32 %v96, %v176
  %vm178 = vcmp.eq.f32.partialorder %v96, inf
  %v179 = vsel %vm178, %v96, %v177
  %vm180 = vcmp.eq.f32.partialorder %v96, 0.0
  %v181 = vand.u32 %v96, 2147483648
  %v182 = vsel %vm180, %v181, %v179
  %v183 = vrsqrt.pop %v97
  %v184 = vmul.f32 %v97, %v183
  %vm185 = vcmp.eq.f32.partialorder %v97, inf
  %v186 = vsel %vm185, %v97, %v184
  %vm187 = vcmp.eq.f32.partialorder %v97, 0.0
  %v188 = vand.u32 %v97, 2147483648
  %v189 = vsel %vm187, %v188, %v186
  %v190 = vrsqrt.pop %v98
  %v191 = vmul.f32 %v98, %v190
  %vm192 = vcmp.eq.f32.partialorder %v98, inf
  %v193 = vsel %vm192, %v98, %v191
  %vm194 = vcmp.eq.f32.partialorder %v98, 0.0
  %v195 = vand.u32 %v98, 2147483648
  %v196 = vsel %vm194, %v195, %v193
  %v197 = vmul.f32 %v105, 0.70710677
  %v198 = vmul.f32 %v112, 0.70710677
  %v199 = vmul.f32 %v119, 0.70710677
  %v200 = vmul.f32 %v126, 0.70710677
  %v201 = vmul.f32 %v133, 0.70710677
  %v202 = vmul.f32 %v140, 0.70710677
  %v203 = vmul.f32 %v147, 0.70710677
  %v204 = vmul.f32 %v154, 0.70710677
  %v205 = vmul.f32 %v161, 0.70710677
  %v206 = vmul.f32 %v168, 0.70710677
  %v207 = vmul.f32 %v175, 0.70710677
  %v208 = vmul.f32 %v182, 0.70710677
  %v209 = vmul.f32 %v189, 0.70710677
  %v210 = vmul.f32 %v196, 0.70710677
  %v211 = vmax.f32 %v197, 1e-07
  %v212 = vmax.f32 %v198, 1e-07
  %v213 = vmax.f32 %v199, 1e-07
  %v214 = vmax.f32 %v200, 1e-07
  %v215 = vmax.f32 %v201, 1e-07
  %v216 = vmax.f32 %v202, 1e-07
  %v217 = vmax.f32 %v203, 1e-07
  %v218 = vmax.f32 %v204, 1e-07
  %v219 = vmax.f32 %v205, 1e-07
  %v220 = vmax.f32 %v206, 1e-07
  %v221 = vmax.f32 %v207, 1e-07
  %v222 = vmax.f32 %v208, 1e-07
  %v223 = vmax.f32 %v209, 1e-07
  %v224 = vmax.f32 %v210, 1e-07
  %v225 = vmin.f32 %v211, 0.99999
  %v226 = vmin.f32 %v212, 0.99999
  %v227 = vmin.f32 %v213, 0.99999
  %v228 = vmin.f32 %v214, 0.99999
  %v229 = vmin.f32 %v215, 0.99999
  %v230 = vmin.f32 %v216, 0.99999
  %v231 = vmin.f32 %v217, 0.99999
  %v232 = vmin.f32 %v218, 0.99999
  %v233 = vmin.f32 %v219, 0.99999
  %v234 = vmin.f32 %v220, 0.99999
  %v235 = vmin.f32 %v221, 0.99999
  %v236 = vmin.f32 %v222, 0.99999
  %v237 = vmin.f32 %v223, 0.99999
  %v238 = vmin.f32 %v224, 0.99999
  %v239 = vadd.f32 %v225, 1.0
  %v240 = vlog2.pop %v239
  %v241 = vmul.f32 %v240, 0.6931472
  %v242 = vmul.f32 -0.5, %v225
  %v243 = vadd.f32 %v242, 1.0
  %v244 = vmul.f32 %v243, %v225
  %v245 = vand.u32 2147483647, %v225
  %vm246 = vcmp.lt.f32.partialorder %v245, 0.0004427343
  %v247 = vsel %vm246, %v244, %v241
  %v248 = vadd.f32 %v226, 1.0
  %v249 = vlog2.pop %v248
  %v250 = vmul.f32 %v249, 0.6931472
  %v251 = vmul.f32 -0.5, %v226
  %v252 = vadd.f32 %v251, 1.0
  %v253 = vmul.f32 %v252, %v226
  %v254 = vand.u32 2147483647, %v226
  %vm255 = vcmp.lt.f32.partialorder %v254, 0.0004427343
  %v256 = vsel %vm255, %v253, %v250
  %v257 = vadd.f32 %v227, 1.0
  %v258 = vlog2.pop %v257
  %v259 = vmul.f32 %v258, 0.6931472
  %v260 = vmul.f32 -0.5, %v227
  %v261 = vadd.f32 %v260, 1.0
  %v262 = vmul.f32 %v261, %v227
  %v263 = vand.u32 2147483647, %v227
  %vm264 = vcmp.lt.f32.partialorder %v263, 0.0004427343
  %v265 = vsel %vm264, %v262, %v259
  %v266 = vadd.f32 %v228, 1.0
  %v267 = vlog2.pop %v266
  %v268 = vmul.f32 %v267, 0.6931472
  %v269 = vmul.f32 -0.5, %v228
  %v270 = vadd.f32 %v269, 1.0
  %v271 = vmul.f32 %v270, %v228
  %v272 = vand.u32 2147483647, %v228
  %vm273 = vcmp.lt.f32.partialorder %v272, 0.0004427343
  %v274 = vsel %vm273, %v271, %v268
  %v275 = vadd.f32 %v229, 1.0
  %v276 = vlog2.pop %v275
  %v277 = vmul.f32 %v276, 0.6931472
  %v278 = vmul.f32 -0.5, %v229
  %v279 = vadd.f32 %v278, 1.0
  %v280 = vmul.f32 %v279, %v229
  %v281 = vand.u32 2147483647, %v229
  %vm282 = vcmp.lt.f32.partialorder %v281, 0.0004427343
  %v283 = vsel %vm282, %v280, %v277
  %v284 = vadd.f32 %v230, 1.0
  %v285 = vlog2.pop %v284
  %v286 = vmul.f32 %v285, 0.6931472
  %v287 = vmul.f32 -0.5, %v230
  %v288 = vadd.f32 %v287, 1.0
  %v289 = vmul.f32 %v288, %v230
  %v290 = vand.u32 2147483647, %v230
  %vm291 = vcmp.lt.f32.partialorder %v290, 0.0004427343
  %v292 = vsel %vm291, %v289, %v286
  %v293 = vadd.f32 %v231, 1.0
  %v294 = vlog2.pop %v293
  %v295 = vmul.f32 %v294, 0.6931472
  %v296 = vmul.f32 -0.5, %v231
  %v297 = vadd.f32 %v296, 1.0
  %v298 = vmul.f32 %v297, %v231
  %v299 = vand.u32 2147483647, %v231
  %vm300 = vcmp.lt.f32.partialorder %v299, 0.0004427343
  %v301 = vsel %vm300, %v298, %v295
  %v302 = vadd.f32 %v232, 1.0
  %v303 = vlog2.pop %v302
  %v304 = vmul.f32 %v303, 0.6931472
  %v305 = vmul.f32 -0.5, %v232
  %v306 = vadd.f32 %v305, 1.0
  %v307 = vmul.f32 %v306, %v232
  %v308 = vand.u32 2147483647, %v232
  %vm309 = vcmp.lt.f32.partialorder %v308, 0.0004427343
  %v310 = vsel %vm309, %v307, %v304
  %v311 = vadd.f32 %v233, 1.0
  %v312 = vlog2.pop %v311
  %v313 = vmul.f32 %v312, 0.6931472
  %v314 = vmul.f32 -0.5, %v233
  %v315 = vadd.f32 %v314, 1.0
  %v316 = vmul.f32 %v315, %v233
  %v317 = vand.u32 2147483647, %v233
  %vm318 = vcmp.lt.f32.partialorder %v317, 0.0004427343
  %v319 = vsel %vm318, %v316, %v313
  %v320 = vadd.f32 %v234, 1.0
  %v321 = vlog2.pop %v320
  %v322 = vmul.f32 %v321, 0.6931472
  %v323 = vmul.f32 -0.5, %v234
  %v324 = vadd.f32 %v323, 1.0
  %v325 = vmul.f32 %v324, %v234
  %v326 = vand.u32 2147483647, %v234
  %vm327 = vcmp.lt.f32.partialorder %v326, 0.0004427343
  %v328 = vsel %vm327, %v325, %v322
  %v329 = vadd.f32 %v235, 1.0
  %v330 = vlog2.pop %v329
  %v331 = vmul.f32 %v330, 0.6931472
  %v332 = vmul.f32 -0.5, %v235
  %v333 = vadd.f32 %v332, 1.0
  %v334 = vmul.f32 %v333, %v235
  %v335 = vand.u32 2147483647, %v235
  %vm336 = vcmp.lt.f32.partialorder %v335, 0.0004427343
  %v337 = vsel %vm336, %v334, %v331
  %v338 = vadd.f32 %v236, 1.0
  %v339 = vlog2.pop %v338
  %v340 = vmul.f32 %v339, 0.6931472
  %v341 = vmul.f32 -0.5, %v236
  %v342 = vadd.f32 %v341, 1.0
  %v343 = vmul.f32 %v342, %v236
  %v344 = vand.u32 2147483647, %v236
  %vm345 = vcmp.lt.f32.partialorder %v344, 0.0004427343
  %v346 = vsel %vm345, %v343, %v340
  %v347 = vadd.f32 %v237, 1.0
  %v348 = vlog2.pop %v347
  %v349 = vmul.f32 %v348, 0.6931472
  %v350 = vmul.f32 -0.5, %v237
  %v351 = vadd.f32 %v350, 1.0
  %v352 = vmul.f32 %v351, %v237
  %v353 = vand.u32 2147483647, %v237
  %vm354 = vcmp.lt.f32.partialorder %v353, 0.0004427343
  %v355 = vsel %vm354, %v352, %v349
  %v356 = vadd.f32 %v238, 1.0
  %v357 = vlog2.pop %v356
  %v358 = vmul.f32 %v357, 0.6931472
  %v359 = vmul.f32 -0.5, %v238
  %v360 = vadd.f32 %v359, 1.0
  %v361 = vmul.f32 %v360, %v238
  %v362 = vand.u32 2147483647, %v238
  %vm363 = vcmp.lt.f32.partialorder %v362, 0.0004427343
  %v364 = vsel %vm363, %v361, %v358
  %v365 = vsub.f32 0.0, %v225
  %v366 = vsub.f32 0.0, %v226
  %v367 = vsub.f32 0.0, %v227
  %v368 = vsub.f32 0.0, %v228
  %v369 = vsub.f32 0.0, %v229
  %v370 = vsub.f32 0.0, %v230
  %v371 = vsub.f32 0.0, %v231
  %v372 = vsub.f32 0.0, %v232
  %v373 = vsub.f32 0.0, %v233
  %v374 = vsub.f32 0.0, %v234
  %v375 = vsub.f32 0.0, %v235
  %v376 = vsub.f32 0.0, %v236
  %v377 = vsub.f32 0.0, %v237
  %v378 = vsub.f32 0.0, %v238
  %v379 = vadd.f32 %v365, 1.0
  %v380 = vlog2.pop %v379
  %v381 = vmul.f32 %v380, 0.6931472
  %v382 = vmul.f32 -0.5, %v365
  %v383 = vadd.f32 %v382, 1.0
  %v384 = vmul.f32 %v383, %v365
  %v385 = vand.u32 2147483647, %v365
  %vm386 = vcmp.lt.f32.partialorder %v385, 0.0004427343
  %v387 = vsel %vm386, %v384, %v381
  %v388 = vadd.f32 %v366, 1.0
  %v389 = vlog2.pop %v388
  %v390 = vmul.f32 %v389, 0.6931472
  %v391 = vmul.f32 -0.5, %v366
  %v392 = vadd.f32 %v391, 1.0
  %v393 = vmul.f32 %v392, %v366
  %v394 = vand.u32 2147483647, %v366
  %vm395 = vcmp.lt.f32.partialorder %v394, 0.0004427343
  %v396 = vsel %vm395, %v393, %v390
  %v397 = vadd.f32 %v367, 1.0
  %v398 = vlog2.pop %v397
  %v399 = vmul.f32 %v398, 0.6931472
  %v400 = vmul.f32 -0.5, %v367
  %v401 = vadd.f32 %v400, 1.0
  %v402 = vmul.f32 %v401, %v367
  %v403 = vand.u32 2147483647, %v367
  %vm404 = vcmp.lt.f32.partialorder %v403, 0.0004427343
  %v405 = vsel %vm404, %v402, %v399
  %v406 = vadd.f32 %v368, 1.0
  %v407 = vlog2.pop %v406
  %v408 = vmul.f32 %v407, 0.6931472
  %v409 = vmul.f32 -0.5, %v368
  %v410 = vadd.f32 %v409, 1.0
  %v411 = vmul.f32 %v410, %v368
  %v412 = vand.u32 2147483647, %v368
  %vm413 = vcmp.lt.f32.partialorder %v412, 0.0004427343
  %v414 = vsel %vm413, %v411, %v408
  %v415 = vadd.f32 %v369, 1.0
  %v416 = vlog2.pop %v415
  %v417 = vmul.f32 %v416, 0.6931472
  %v418 = vmul.f32 -0.5, %v369
  %v419 = vadd.f32 %v418, 1.0
  %v420 = vmul.f32 %v419, %v369
  %v421 = vand.u32 2147483647, %v369
  %vm422 = vcmp.lt.f32.partialorder %v421, 0.0004427343
  %v423 = vsel %vm422, %v420, %v417
  %v424 = vadd.f32 %v370, 1.0
  %v425 = vlog2.pop %v424
  %v426 = vmul.f32 %v425, 0.6931472
  %v427 = vmul.f32 -0.5, %v370
  %v428 = vadd.f32 %v427, 1.0
  %v429 = vmul.f32 %v428, %v370
  %v430 = vand.u32 2147483647, %v370
  %vm431 = vcmp.lt.f32.partialorder %v430, 0.0004427343
  %v432 = vsel %vm431, %v429, %v426
  %v433 = vadd.f32 %v371, 1.0
  %v434 = vlog2.pop %v433
  %v435 = vmul.f32 %v434, 0.6931472
  %v436 = vmul.f32 -0.5, %v371
  %v437 = vadd.f32 %v436, 1.0
  %v438 = vmul.f32 %v437, %v371
  %v439 = vand.u32 2147483647, %v371
  %vm440 = vcmp.lt.f32.partialorder %v439, 0.0004427343
  %v441 = vsel %vm440, %v438, %v435
  %v442 = vadd.f32 %v372, 1.0
  %v443 = vlog2.pop %v442
  %v444 = vmul.f32 %v443, 0.6931472
  %v445 = vmul.f32 -0.5, %v372
  %v446 = vadd.f32 %v445, 1.0
  %v447 = vmul.f32 %v446, %v372
  %v448 = vand.u32 2147483647, %v372
  %vm449 = vcmp.lt.f32.partialorder %v448, 0.0004427343
  %v450 = vsel %vm449, %v447, %v444
  %v451 = vadd.f32 %v373, 1.0
  %v452 = vlog2.pop %v451
  %v453 = vmul.f32 %v452, 0.6931472
  %v454 = vmul.f32 -0.5, %v373
  %v455 = vadd.f32 %v454, 1.0
  %v456 = vmul.f32 %v455, %v373
  %v457 = vand.u32 2147483647, %v373
  %vm458 = vcmp.lt.f32.partialorder %v457, 0.0004427343
  %v459 = vsel %vm458, %v456, %v453
  %v460 = vadd.f32 %v374, 1.0
  %v461 = vlog2.pop %v460
  %v462 = vmul.f32 %v461, 0.6931472
  %v463 = vmul.f32 -0.5, %v374
  %v464 = vadd.f32 %v463, 1.0
  %v465 = vmul.f32 %v464, %v374
  %v466 = vand.u32 2147483647, %v374
  %vm467 = vcmp.lt.f32.partialorder %v466, 0.0004427343
  %v468 = vsel %vm467, %v465, %v462
  %v469 = vadd.f32 %v375, 1.0
  %v470 = vlog2.pop %v469
  %v471 = vmul.f32 %v470, 0.6931472
  %v472 = vmul.f32 -0.5, %v375
  %v473 = vadd.f32 %v472, 1.0
  %v474 = vmul.f32 %v473, %v375
  %v475 = vand.u32 2147483647, %v375
  %vm476 = vcmp.lt.f32.partialorder %v475, 0.0004427343
  %v477 = vsel %vm476, %v474, %v471
  %v478 = vadd.f32 %v376, 1.0
  %v479 = vlog2.pop %v478
  %v480 = vmul.f32 %v479, 0.6931472
  %v481 = vmul.f32 -0.5, %v376
  %v482 = vadd.f32 %v481, 1.0
  %v483 = vmul.f32 %v482, %v376
  %v484 = vand.u32 2147483647, %v376
  %vm485 = vcmp.lt.f32.partialorder %v484, 0.0004427343
  %v486 = vsel %vm485, %v483, %v480
  %v487 = vadd.f32 %v377, 1.0
  %v488 = vlog2.pop %v487
  %v489 = vmul.f32 %v488, 0.6931472
  %v490 = vmul.f32 -0.5, %v377
  %v491 = vadd.f32 %v490, 1.0
  %v492 = vmul.f32 %v491, %v377
  %v493 = vand.u32 2147483647, %v377
  %vm494 = vcmp.lt.f32.partialorder %v493, 0.0004427343
  %v495 = vsel %vm494, %v492, %v489
  %v496 = vadd.f32 %v378, 1.0
  %v497 = vlog2.pop %v496
  %v498 = vmul.f32 %v497, 0.6931472
  %v499 = vmul.f32 -0.5, %v378
  %v500 = vadd.f32 %v499, 1.0
  %v501 = vmul.f32 %v500, %v378
  %v502 = vand.u32 2147483647, %v378
  %vm503 = vcmp.lt.f32.partialorder %v502, 0.0004427343
  %v504 = vsel %vm503, %v501, %v498
  %v505 = vsub.f32 %v247, %v387
  %v506 = vsub.f32 %v256, %v396
  %v507 = vsub.f32 %v265, %v405
  %v508 = vsub.f32 %v274, %v414
  %v509 = vsub.f32 %v283, %v423
  %v510 = vsub.f32 %v292, %v432
  %v511 = vsub.f32 %v301, %v441
  %v512 = vsub.f32 %v310, %v450
  %v513 = vsub.f32 %v319, %v459
  %v514 = vsub.f32 %v328, %v468
  %v515 = vsub.f32 %v337, %v477
  %v516 = vsub.f32 %v346, %v486
  %v517 = vsub.f32 %v355, %v495
  %v518 = vsub.f32 %v364, %v504
  %v519 = vmul.f32 %v505, 0.5
  %v520 = vmul.f32 %v506, 0.5
  %v521 = vmul.f32 %v507, 0.5
  %v522 = vmul.f32 %v508, 0.5
  %v523 = vmul.f32 %v509, 0.5
  %v524 = vmul.f32 %v510, 0.5
  %v525 = vmul.f32 %v511, 0.5
  %v526 = vmul.f32 %v512, 0.5
  %v527 = vmul.f32 %v513, 0.5
  %v528 = vmul.f32 %v514, 0.5
  %v529 = vmul.f32 %v515, 0.5
  %v530 = vmul.f32 %v516, 0.5
  %v531 = vmul.f32 %v517, 0.5
  %v532 = vmul.f32 %v518, 0.5
  %v533 = vmul.f32 %v519, 1.4142135
  %v534 = vmul.f32 %v520, 1.4142135
  %v535 = vmul.f32 %v521, 1.4142135
  %v536 = vmul.f32 %v522, 1.4142135
  %v537 = vmul.f32 %v523, 1.4142135
  %v538 = vmul.f32 %v524, 1.4142135
  %v539 = vmul.f32 %v525, 1.4142135
  %v540 = vmul.f32 %v526, 1.4142135
  %v541 = vmul.f32 %v527, 1.4142135
  %v542 = vmul.f32 %v528, 1.4142135
  %v543 = vmul.f32 %v529, 1.4142135
  %v544 = vmul.f32 %v530, 1.4142135
  %v545 = vmul.f32 %v531, 1.4142135
  %v546 = vmul.f32 %v532, 1.4142135
  %v547 = vrcp.pop %v105
  %v548 = vrcp.pop %v112
  %v549 = vrcp.pop %v119
  %v550 = vrcp.pop %v126
  %v551 = vrcp.pop %v133
  %v552 = vrcp.pop %v140
  %v553 = vrcp.pop %v147
  %v554 = vrcp.pop %v154
  %v555 = vrcp.pop %v161
  %v556 = vrcp.pop %v168
  %v557 = vrcp.pop %v175
  %v558 = vrcp.pop %v182
  %v559 = vrcp.pop %v189
  %v560 = vrcp.pop %v196
  %v561 = vmul.f32 %v533, %v547
  %v562 = vmul.f32 %v534, %v548
  %v563 = vmul.f32 %v535, %v549
  %v564 = vmul.f32 %v536, %v550
  %v565 = vmul.f32 %v537, %v551
  %v566 = vmul.f32 %v538, %v552
  %v567 = vmul.f32 %v539, %v553
  %v568 = vmul.f32 %v540, %v554
  %v569 = vmul.f32 %v541, %v555
  %v570 = vmul.f32 %v542, %v556
  %v571 = vmul.f32 %v543, %v557
  %v572 = vmul.f32 %v544, %v558
  %v573 = vmul.f32 %v545, %v559
  %v574 = vmul.f32 %v546, %v560
  %v575 = vmul.f32 %v14, %v561
  %v576 = vmul.f32 %v15, %v562
  %v577 = vmul.f32 %v16, %v563
  %v578 = vmul.f32 %v17, %v564
  %v579 = vmul.f32 %v18, %v565
  %v580 = vmul.f32 %v19, %v566
  %v581 = vmul.f32 %v20, %v567
  %v582 = vmul.f32 %v21, %v568
  %v583 = vmul.f32 %v22, %v569
  %v584 = vmul.f32 %v23, %v570
  %v585 = vmul.f32 %v24, %v571
  %v586 = vmul.f32 %v25, %v572
  %v587 = vmul.f32 %v26, %v573
  %v588 = vmul.f32 %v27, %v574
  %v589 = vld [vmem:[%s1] sm:$0xff]
  %v590 = vld [vmem:[%s1 + $0x8] sm:$0xff]
  %v591 = vld [vmem:[%s1 + $0x10] sm:$0xff]
  %v592 = vld [vmem:[%s1 + $0x18] sm:$0xff]
  %v593 = vld [vmem:[%s2] sm:$0x1]
  %v595 = vlaneseq
  %v596 = vshrl.u32 %v595, 7
  %v597 = vsub.s32 0, %v596
  %v598 = vrot.slane %v593, %v597
  %v601 = vsel %vm42, %v575, 0
  %v604 = vsel %vm42, %v576, 0
  %v607 = vsel %vm42, %v577, 0
  %v610 = vsel %vm42, %v578, 0
  %v613 = vsel %vm42, %v579, 0
  %v616 = vsel %vm42, %v580, 0
  %v619 = vsel %vm42, %v581, 0
  %v622 = vsel %vm42, %v582, 0
  %v625 = vsel %vm42, %v583, 0
  %v628 = vsel %vm42, %v584, 0
  %v631 = vsel %vm42, %v585, 0
  %v634 = vsel %vm42, %v586, 0
  %v637 = vsel %vm42, %v587, 0
  %v640 = vsel %vm42, %v588, 0
  %v643 = vsel %vm42, %v589, 0
  %v646 = vsel %vm42, %v590, 0
  %v649 = vsel %vm42, %v591, 0
  %v652 = vsel %vm42, %v592, 0
  %654 = vmatprep.subr.mxu0 0.0
  %655 = vmatpush1.xpose.msra.mxu0 %v643
  %656 = vmatprep.subr.mxu0 0.0
  %657 = vmatpush1.xpose.msra.mxu0 %v646
  %658 = vmatprep.subr.mxu0 0.0
  %659 = vmatpush1.xpose.msra.mxu0 %v649
  %660 = vmatprep.subr.mxu0 0.0
  %661 = vmatpush1.xpose.msra.mxu0 %v652
  %662 = vmatprep.subr.mxu0 0.0
  %663 = vmatpush1.xpose.msra.mxu0 0.0
  %664 = vmatprep.subr.mxu0 0.0
  %665 = vmatpush1.xpose.msra.mxu0 0.0
  %666 = vmatprep.subr.mxu0 0.0
  %667 = vmatpush1.xpose.msra.mxu0 0.0
  %668 = vmatprep.subr.mxu0 0.0
  %669 = vmatpush1.xpose.msra.mxu0 0.0
  %670 = vmatprep.subr.mxu0 0.0
  %671 = vmatpush1.xpose.msra.mxu0 0.0
  %672 = vmatprep.subr.mxu0 0.0
  %673 = vmatpush1.xpose.msra.mxu0 0.0
  %674 = vmatprep.subr.mxu0 0.0
  %675 = vmatpush1.xpose.msra.mxu0 0.0
  %676 = vmatprep.subr.mxu0 0.0
  %677 = vmatpush1.xpose.msra.mxu0 0.0
  %678 = vmatprep.subr.mxu0 0.0
  %679 = vmatpush1.xpose.msra.mxu0 0.0
  %680 = vmatprep.subr.mxu0 0.0
  %681 = vmatpush1.xpose.msra.mxu0 0.0
  %682 = vmatprep.subr.mxu0 0.0
  %683 = vmatpush1.xpose.msra.mxu0 0.0
  %684 = vmatprep.subr.mxu0 0.0
  %685 = vmatpush1.xpose.msra.mxu0 0.0
  %686 = vmatprep.subr.mxu0 0.0
  %687 = vmatpush1.xpose.msra.mxu0 0.0
  %688 = vmatprep.subr.mxu0 0.0
  %689 = vmatpush1.xpose.msra.mxu0 0.0
  %690 = vmatprep.subr.mxu0 0.0
  %691 = vmatpush1.xpose.msra.mxu0 0.0
  %692 = vmatprep.subr.mxu0 0.0
  %693 = vmatpush1.xpose.msra.mxu0 0.0
  %694 = vmatprep.subr.mxu0 0.0
  %695 = vmatpush1.xpose.msra.mxu0 0.0
  %696 = vmatprep.subr.mxu0 0.0
  %697 = vmatpush1.xpose.msra.mxu0 0.0
  %698 = vmatprep.subr.mxu0 0.0
  %699 = vmatpush1.xpose.msra.mxu0 0.0
  %700 = vmatprep.subr.mxu0 0.0
  %701 = vmatpush1.xpose.msra.mxu0 0.0
  %702 = vmatprep.subr.mxu0 0.0
  %703 = vmatpush1.xpose.msra.mxu0 0.0
  %704 = vmatprep.subr.mxu0 0.0
  %705 = vmatpush1.xpose.msra.mxu0 0.0
  %706 = vmatprep.subr.mxu0 0.0
  %707 = vmatpush1.xpose.msra.mxu0 0.0
  %708 = vmatprep.subr.mxu0 0.0
  %709 = vmatpush1.xpose.msra.mxu0 0.0
  %710 = vmatprep.subr.mxu0 0.0
  %711 = vmatpush1.xpose.msra.mxu0 0.0
  %712 = vmatprep.subr.mxu0 0.0
  %713 = vmatpush1.xpose.msra.mxu0 0.0
  %714 = vmatprep.subr.mxu0 0.0
  %715 = vmatpush1.xpose.msra.mxu0 0.0
  %716 = vmatprep.subr.mxu0 0.0
  %717 = vmatpush1.xpose.msra.mxu0 0.0
  %718 = vmatprep.mubr.f32.mxu0 0.0
  %719 = vmatmul.mubr.f32.gmra.mrb[0].mxu0 %v601
  %v720 = vpop.f32.mrb[0].mxu0
  %v721 = vadd.f32 %v598, %v720
  %v722 = vpop.f32.mrb[0].mxu0
  %723 = vmatprep.mubr.f32.mxu0 0.0
  %724 = vmatmul.mubr.f32.gmra.mrb[0].mxu0 %v604
  %v725 = vpop.f32.mrb[0].mxu0
  %v726 = vadd.f32 %v598, %v725
  %v727 = vpop.f32.mrb[0].mxu0
  %728 = vmatprep.mubr.f32.mxu0 0.0
  %729 = vmatmul.mubr.f32.gmra.mrb[0].mxu0 %v607
  %v730 = vpop.f32.mrb[0].mxu0
  %v731 = vadd.f32 %v598, %v730
  %v732 = vpop.f32.mrb[0].mxu0
  %733 = vmatprep.mubr.f32.mxu0 0.0
  %734 = vmatmul.mubr.f32.gmra.mrb[0].mxu0 %v610
  %v735 = vpop.f32.mrb[0].mxu0
  %v736 = vadd.f32 %v598, %v735
  %v737 = vpop.f32.mrb[0].mxu0
  %738 = vmatprep.mubr.f32.mxu0 0.0
  %739 = vmatmul.mubr.f32.gmra.mrb[0].mxu0 %v613
  %v740 = vpop.f32.mrb[0].mxu0
  %v741 = vadd.f32 %v598, %v740
  %v742 = vpop.f32.mrb[0].mxu0
  %743 = vmatprep.mubr.f32.mxu0 0.0
  %744 = vmatmul.mubr.f32.gmra.mrb[0].mxu0 %v616
  %v745 = vpop.f32.mrb[0].mxu0
  %v746 = vadd.f32 %v598, %v745
  %v747 = vpop.f32.mrb[0].mxu0
  %748 = vmatprep.mubr.f32.mxu0 0.0
  %749 = vmatmul.mubr.f32.gmra.mrb[0].mxu0 %v619
  %v750 = vpop.f32.mrb[0].mxu0
  %v751 = vadd.f32 %v598, %v750
  %v752 = vpop.f32.mrb[0].mxu0
  %753 = vmatprep.mubr.f32.mxu0 0.0
  %754 = vmatmul.mubr.f32.gmra.mrb[0].mxu0 %v622
  %v755 = vpop.f32.mrb[0].mxu0
  %v756 = vadd.f32 %v598, %v755
  %v757 = vpop.f32.mrb[0].mxu0
  %758 = vmatprep.mubr.f32.mxu0 0.0
  %759 = vmatmul.mubr.f32.gmra.mrb[0].mxu0 %v625
  %v760 = vpop.f32.mrb[0].mxu0
  %v761 = vadd.f32 %v598, %v760
  %v762 = vpop.f32.mrb[0].mxu0
  %763 = vmatprep.mubr.f32.mxu0 0.0
  %764 = vmatmul.mubr.f32.gmra.mrb[0].mxu0 %v628
  %v765 = vpop.f32.mrb[0].mxu0
  %v766 = vadd.f32 %v598, %v765
  %v767 = vpop.f32.mrb[0].mxu0
  %768 = vmatprep.mubr.f32.mxu0 0.0
  %769 = vmatmul.mubr.f32.gmra.mrb[0].mxu0 %v631
  %v770 = vpop.f32.mrb[0].mxu0
  %v771 = vadd.f32 %v598, %v770
  %v772 = vpop.f32.mrb[0].mxu0
  %773 = vmatprep.mubr.f32.mxu0 0.0
  %774 = vmatmul.mubr.f32.gmra.mrb[0].mxu0 %v634
  %v775 = vpop.f32.mrb[0].mxu0
  %v776 = vadd.f32 %v598, %v775
  %v777 = vpop.f32.mrb[0].mxu0
  %778 = vmatprep.mubr.f32.mxu0 0.0
  %779 = vmatmul.mubr.f32.gmra.mrb[0].mxu0 %v637
  %v780 = vpop.f32.mrb[0].mxu0
  %v781 = vadd.f32 %v598, %v780
  %v782 = vpop.f32.mrb[0].mxu0
  %783 = vmatprep.mubr.f32.mxu0 0.0
  %784 = vmatmul.mubr.f32.gmra.mrb[0].mxu0 %v640
  %v785 = vpop.f32.mrb[0].mxu0
  %v786 = vadd.f32 %v598, %v785
  %v787 = vpop.f32.mrb[0].mxu0
  %788 = vdwg.mxu0
  %v789 = vmul.f32 %v721, %v721
  %v790 = vmul.f32 %v726, %v726
  %v791 = vmul.f32 %v731, %v731
  %v792 = vmul.f32 %v736, %v736
  %v793 = vmul.f32 %v741, %v741
  %v794 = vmul.f32 %v746, %v746
  %v795 = vmul.f32 %v751, %v751
  %v796 = vmul.f32 %v756, %v756
  %v797 = vmul.f32 %v761, %v761
  %v798 = vmul.f32 %v766, %v766
  %v799 = vmul.f32 %v771, %v771
  %v800 = vmul.f32 %v776, %v776
  %v801 = vmul.f32 %v781, %v781
  %v802 = vmul.f32 %v786, %v786
  %v803 = vsel %vm42, %v789, 0.0
  %804 = vadd.xlane.f32.xlu0 %v803
  %v805 = vpop.xlane.xlu0 %804
  %v806 = vsel %vm42, %v790, 0.0
  %807 = vadd.xlane.f32.xlu0 %v806
  %v808 = vpop.xlane.xlu0 %807
  %v809 = vsel %vm42, %v791, 0.0
  %810 = vadd.xlane.f32.xlu0 %v809
  %v811 = vpop.xlane.xlu0 %810
  %v812 = vsel %vm42, %v792, 0.0
  %813 = vadd.xlane.f32.xlu0 %v812
  %v814 = vpop.xlane.xlu0 %813
  %v815 = vsel %vm42, %v793, 0.0
  %816 = vadd.xlane.f32.xlu0 %v815
  %v817 = vpop.xlane.xlu0 %816
  %v818 = vsel %vm42, %v794, 0.0
  %819 = vadd.xlane.f32.xlu0 %v818
  %v820 = vpop.xlane.xlu0 %819
  %v821 = vsel %vm42, %v795, 0.0
  %822 = vadd.xlane.f32.xlu0 %v821
  %v823 = vpop.xlane.xlu0 %822
  %v824 = vsel %vm42, %v796, 0.0
  %825 = vadd.xlane.f32.xlu0 %v824
  %v826 = vpop.xlane.xlu0 %825
  %v827 = vsel %vm42, %v797, 0.0
  %828 = vadd.xlane.f32.xlu0 %v827
  %v829 = vpop.xlane.xlu0 %828
  %v830 = vsel %vm42, %v798, 0.0
  %831 = vadd.xlane.f32.xlu0 %v830
  %v832 = vpop.xlane.xlu0 %831
  %v833 = vsel %vm42, %v799, 0.0
  %834 = vadd.xlane.f32.xlu0 %v833
  %v835 = vpop.xlane.xlu0 %834
  %v836 = vsel %vm42, %v800, 0.0
  %837 = vadd.xlane.f32.xlu0 %v836
  %v838 = vpop.xlane.xlu0 %837
  %v839 = vsel %vm42, %v801, 0.0
  %840 = vadd.xlane.f32.xlu0 %v839
  %v841 = vpop.xlane.xlu0 %840
  %v842 = vsel %vm42, %v802, 0.0
  %843 = vadd.xlane.f32.xlu0 %v842
  %v844 = vpop.xlane.xlu0 %843
  %v845 = vmax.f32 %v805, 1e-07
  %v846 = vmax.f32 %v808, 1e-07
  %v847 = vmax.f32 %v811, 1e-07
  %v848 = vmax.f32 %v814, 1e-07
  %v849 = vmax.f32 %v817, 1e-07
  %v850 = vmax.f32 %v820, 1e-07
  %v851 = vmax.f32 %v823, 1e-07
  %v852 = vmax.f32 %v826, 1e-07
  %v853 = vmax.f32 %v829, 1e-07
  %v854 = vmax.f32 %v832, 1e-07
  %v855 = vmax.f32 %v835, 1e-07
  %v856 = vmax.f32 %v838, 1e-07
  %v857 = vmax.f32 %v841, 1e-07
  %v858 = vmax.f32 %v844, 1e-07
  %v859 = vrsqrt.pop %v845
  %v860 = vmul.f32 %v845, %v859
  %vm861 = vcmp.eq.f32.partialorder %v845, inf
  %v862 = vsel %vm861, %v845, %v860
  %vm863 = vcmp.eq.f32.partialorder %v845, 0.0
  %v864 = vand.u32 %v845, 2147483648
  %v865 = vsel %vm863, %v864, %v862
  %v866 = vrsqrt.pop %v846
  %v867 = vmul.f32 %v846, %v866
  %vm868 = vcmp.eq.f32.partialorder %v846, inf
  %v869 = vsel %vm868, %v846, %v867
  %vm870 = vcmp.eq.f32.partialorder %v846, 0.0
  %v871 = vand.u32 %v846, 2147483648
  %v872 = vsel %vm870, %v871, %v869
  %v873 = vrsqrt.pop %v847
  %v874 = vmul.f32 %v847, %v873
  %vm875 = vcmp.eq.f32.partialorder %v847, inf
  %v876 = vsel %vm875, %v847, %v874
  %vm877 = vcmp.eq.f32.partialorder %v847, 0.0
  %v878 = vand.u32 %v847, 2147483648
  %v879 = vsel %vm877, %v878, %v876
  %v880 = vrsqrt.pop %v848
  %v881 = vmul.f32 %v848, %v880
  %vm882 = vcmp.eq.f32.partialorder %v848, inf
  %v883 = vsel %vm882, %v848, %v881
  %vm884 = vcmp.eq.f32.partialorder %v848, 0.0
  %v885 = vand.u32 %v848, 2147483648
  %v886 = vsel %vm884, %v885, %v883
  %v887 = vrsqrt.pop %v849
  %v888 = vmul.f32 %v849, %v887
  %vm889 = vcmp.eq.f32.partialorder %v849, inf
  %v890 = vsel %vm889, %v849, %v888
  %vm891 = vcmp.eq.f32.partialorder %v849, 0.0
  %v892 = vand.u32 %v849, 2147483648
  %v893 = vsel %vm891, %v892, %v890
  %v894 = vrsqrt.pop %v850
  %v895 = vmul.f32 %v850, %v894
  %vm896 = vcmp.eq.f32.partialorder %v850, inf
  %v897 = vsel %vm896, %v850, %v895
  %vm898 = vcmp.eq.f32.partialorder %v850, 0.0
  %v899 = vand.u32 %v850, 2147483648
  %v900 = vsel %vm898, %v899, %v897
  %v901 = vrsqrt.pop %v851
  %v902 = vmul.f32 %v851, %v901
  %vm903 = vcmp.eq.f32.partialorder %v851, inf
  %v904 = vsel %vm903, %v851, %v902
  %vm905 = vcmp.eq.f32.partialorder %v851, 0.0
  %v906 = vand.u32 %v851, 2147483648
  %v907 = vsel %vm905, %v906, %v904
  %v908 = vrsqrt.pop %v852
  %v909 = vmul.f32 %v852, %v908
  %vm910 = vcmp.eq.f32.partialorder %v852, inf
  %v911 = vsel %vm910, %v852, %v909
  %vm912 = vcmp.eq.f32.partialorder %v852, 0.0
  %v913 = vand.u32 %v852, 2147483648
  %v914 = vsel %vm912, %v913, %v911
  %v915 = vrsqrt.pop %v853
  %v916 = vmul.f32 %v853, %v915
  %vm917 = vcmp.eq.f32.partialorder %v853, inf
  %v918 = vsel %vm917, %v853, %v916
  %vm919 = vcmp.eq.f32.partialorder %v853, 0.0
  %v920 = vand.u32 %v853, 2147483648
  %v921 = vsel %vm919, %v920, %v918
  %v922 = vrsqrt.pop %v854
  %v923 = vmul.f32 %v854, %v922
  %vm924 = vcmp.eq.f32.partialorder %v854, inf
  %v925 = vsel %vm924, %v854, %v923
  %vm926 = vcmp.eq.f32.partialorder %v854, 0.0
  %v927 = vand.u32 %v854, 2147483648
  %v928 = vsel %vm926, %v927, %v925
  %v929 = vrsqrt.pop %v855
  %v930 = vmul.f32 %v855, %v929
  %vm931 = vcmp.eq.f32.partialorder %v855, inf
  %v932 = vsel %vm931, %v855, %v930
  %vm933 = vcmp.eq.f32.partialorder %v855, 0.0
  %v934 = vand.u32 %v855, 2147483648
  %v935 = vsel %vm933, %v934, %v932
  %v936 = vrsqrt.pop %v856
  %v937 = vmul.f32 %v856, %v936
  %vm938 = vcmp.eq.f32.partialorder %v856, inf
  %v939 = vsel %vm938, %v856, %v937
  %vm940 = vcmp.eq.f32.partialorder %v856, 0.0
  %v941 = vand.u32 %v856, 2147483648
  %v942 = vsel %vm940, %v941, %v939
  %v943 = vrsqrt.pop %v857
  %v944 = vmul.f32 %v857, %v943
  %vm945 = vcmp.eq.f32.partialorder %v857, inf
  %v946 = vsel %vm945, %v857, %v944
  %vm947 = vcmp.eq.f32.partialorder %v857, 0.0
  %v948 = vand.u32 %v857, 2147483648
  %v949 = vsel %vm947, %v948, %v946
  %v950 = vrsqrt.pop %v858
  %v951 = vmul.f32 %v858, %v950
  %vm952 = vcmp.eq.f32.partialorder %v858, inf
  %v953 = vsel %vm952, %v858, %v951
  %vm954 = vcmp.eq.f32.partialorder %v858, 0.0
  %v955 = vand.u32 %v858, 2147483648
  %v956 = vsel %vm954, %v955, %v953
  %v957 = vmul.f32 %v865, 0.70710677
  %v958 = vmul.f32 %v872, 0.70710677
  %v959 = vmul.f32 %v879, 0.70710677
  %v960 = vmul.f32 %v886, 0.70710677
  %v961 = vmul.f32 %v893, 0.70710677
  %v962 = vmul.f32 %v900, 0.70710677
  %v963 = vmul.f32 %v907, 0.70710677
  %v964 = vmul.f32 %v914, 0.70710677
  %v965 = vmul.f32 %v921, 0.70710677
  %v966 = vmul.f32 %v928, 0.70710677
  %v967 = vmul.f32 %v935, 0.70710677
  %v968 = vmul.f32 %v942, 0.70710677
  %v969 = vmul.f32 %v949, 0.70710677
  %v970 = vmul.f32 %v956, 0.70710677
  %v971 = vtanh.pop %v957
  %v972 = vtanh.pop %v958
  %v973 = vtanh.pop %v959
  %v974 = vtanh.pop %v960
  %v975 = vtanh.pop %v961
  %v976 = vtanh.pop %v962
  %v977 = vtanh.pop %v963
  %v978 = vtanh.pop %v964
  %v979 = vtanh.pop %v965
  %v980 = vtanh.pop %v966
  %v981 = vtanh.pop %v967
  %v982 = vtanh.pop %v968
  %v983 = vtanh.pop %v969
  %v984 = vtanh.pop %v970
  %v985 = vmul.f32 %v971, 1.4142135
  %v986 = vmul.f32 %v972, 1.4142135
  %v987 = vmul.f32 %v973, 1.4142135
  %v988 = vmul.f32 %v974, 1.4142135
  %v989 = vmul.f32 %v975, 1.4142135
  %v990 = vmul.f32 %v976, 1.4142135
  %v991 = vmul.f32 %v977, 1.4142135
  %v992 = vmul.f32 %v978, 1.4142135
  %v993 = vmul.f32 %v979, 1.4142135
  %v994 = vmul.f32 %v980, 1.4142135
  %v995 = vmul.f32 %v981, 1.4142135
  %v996 = vmul.f32 %v982, 1.4142135
  %v997 = vmul.f32 %v983, 1.4142135
  %v998 = vmul.f32 %v984, 1.4142135
  %v999 = vrcp.pop %v865
  %v1000 = vrcp.pop %v872
  %v1001 = vrcp.pop %v879
  %v1002 = vrcp.pop %v886
  %v1003 = vrcp.pop %v893
  %v1004 = vrcp.pop %v900
  %v1005 = vrcp.pop %v907
  %v1006 = vrcp.pop %v914
  %v1007 = vrcp.pop %v921
  %v1008 = vrcp.pop %v928
  %v1009 = vrcp.pop %v935
  %v1010 = vrcp.pop %v942
  %v1011 = vrcp.pop %v949
  %v1012 = vrcp.pop %v956
  %v1013 = vmul.f32 %v985, %v999
  %v1014 = vmul.f32 %v986, %v1000
  %v1015 = vmul.f32 %v987, %v1001
  %v1016 = vmul.f32 %v988, %v1002
  %v1017 = vmul.f32 %v989, %v1003
  %v1018 = vmul.f32 %v990, %v1004
  %v1019 = vmul.f32 %v991, %v1005
  %v1020 = vmul.f32 %v992, %v1006
  %v1021 = vmul.f32 %v993, %v1007
  %v1022 = vmul.f32 %v994, %v1008
  %v1023 = vmul.f32 %v995, %v1009
  %v1024 = vmul.f32 %v996, %v1010
  %v1025 = vmul.f32 %v997, %v1011
  %v1026 = vmul.f32 %v998, %v1012
  %v1027 = vmul.f32 %v721, %v1013
  %v1028 = vmul.f32 %v726, %v1014
  %v1029 = vmul.f32 %v731, %v1015
  %v1030 = vmul.f32 %v736, %v1016
  %v1031 = vmul.f32 %v741, %v1017
  %v1032 = vmul.f32 %v746, %v1018
  %v1033 = vmul.f32 %v751, %v1019
  %v1034 = vmul.f32 %v756, %v1020
  %v1035 = vmul.f32 %v761, %v1021
  %v1036 = vmul.f32 %v766, %v1022
  %v1037 = vmul.f32 %v771, %v1023
  %v1038 = vmul.f32 %v776, %v1024
  %v1039 = vmul.f32 %v781, %v1025
  %v1040 = vmul.f32 %v786, %v1026
  %v1041 = vmul.f32 %v1027, %v1027
  %v1042 = vmul.f32 %v1028, %v1028
  %v1043 = vmul.f32 %v1029, %v1029
  %v1044 = vmul.f32 %v1030, %v1030
  %v1045 = vmul.f32 %v1031, %v1031
  %v1046 = vmul.f32 %v1032, %v1032
  %v1047 = vmul.f32 %v1033, %v1033
  %v1048 = vmul.f32 %v1034, %v1034
  %v1049 = vmul.f32 %v1035, %v1035
  %v1050 = vmul.f32 %v1036, %v1036
  %v1051 = vmul.f32 %v1037, %v1037
  %v1052 = vmul.f32 %v1038, %v1038
  %v1053 = vmul.f32 %v1039, %v1039
  %v1054 = vmul.f32 %v1040, %v1040
  %v1055 = vsel %vm42, %v1041, 0.0
  %1056 = vadd.xlane.f32.xlu0 %v1055
  %v1057 = vpop.xlane.xlu0 %1056
  %v1058 = vsel %vm42, %v1042, 0.0
  %1059 = vadd.xlane.f32.xlu0 %v1058
  %v1060 = vpop.xlane.xlu0 %1059
  %v1061 = vsel %vm42, %v1043, 0.0
  %1062 = vadd.xlane.f32.xlu0 %v1061
  %v1063 = vpop.xlane.xlu0 %1062
  %v1064 = vsel %vm42, %v1044, 0.0
  %1065 = vadd.xlane.f32.xlu0 %v1064
  %v1066 = vpop.xlane.xlu0 %1065
  %v1067 = vsel %vm42, %v1045, 0.0
  %1068 = vadd.xlane.f32.xlu0 %v1067
  %v1069 = vpop.xlane.xlu0 %1068
  %v1070 = vsel %vm42, %v1046, 0.0
  %1071 = vadd.xlane.f32.xlu0 %v1070
  %v1072 = vpop.xlane.xlu0 %1071
  %v1073 = vsel %vm42, %v1047, 0.0
  %1074 = vadd.xlane.f32.xlu0 %v1073
  %v1075 = vpop.xlane.xlu0 %1074
  %v1076 = vsel %vm42, %v1048, 0.0
  %1077 = vadd.xlane.f32.xlu0 %v1076
  %v1078 = vpop.xlane.xlu0 %1077
  %v1079 = vsel %vm42, %v1049, 0.0
  %1080 = vadd.xlane.f32.xlu0 %v1079
  %v1081 = vpop.xlane.xlu0 %1080
  %v1082 = vsel %vm42, %v1050, 0.0
  %1083 = vadd.xlane.f32.xlu0 %v1082
  %v1084 = vpop.xlane.xlu0 %1083
  %v1085 = vsel %vm42, %v1051, 0.0
  %1086 = vadd.xlane.f32.xlu0 %v1085
  %v1087 = vpop.xlane.xlu0 %1086
  %v1088 = vsel %vm42, %v1052, 0.0
  %1089 = vadd.xlane.f32.xlu0 %v1088
  %v1090 = vpop.xlane.xlu0 %1089
  %v1091 = vsel %vm42, %v1053, 0.0
  %1092 = vadd.xlane.f32.xlu0 %v1091
  %v1093 = vpop.xlane.xlu0 %1092
  %v1094 = vsel %vm42, %v1054, 0.0
  %1095 = vadd.xlane.f32.xlu0 %v1094
  %v1096 = vpop.xlane.xlu0 %1095
  %v1097 = vmax.f32 %v1057, 1e-07
  %v1098 = vmax.f32 %v1060, 1e-07
  %v1099 = vmax.f32 %v1063, 1e-07
  %v1100 = vmax.f32 %v1066, 1e-07
  %v1101 = vmax.f32 %v1069, 1e-07
  %v1102 = vmax.f32 %v1072, 1e-07
  %v1103 = vmax.f32 %v1075, 1e-07
  %v1104 = vmax.f32 %v1078, 1e-07
  %v1105 = vmax.f32 %v1081, 1e-07
  %v1106 = vmax.f32 %v1084, 1e-07
  %v1107 = vmax.f32 %v1087, 1e-07
  %v1108 = vmax.f32 %v1090, 1e-07
  %v1109 = vmax.f32 %v1093, 1e-07
  %v1110 = vmax.f32 %v1096, 1e-07
  %v1111 = vrsqrt.pop %v1097
  %v1112 = vmul.f32 %v1097, %v1111
  %vm1113 = vcmp.eq.f32.partialorder %v1097, inf
  %v1114 = vsel %vm1113, %v1097, %v1112
  %vm1115 = vcmp.eq.f32.partialorder %v1097, 0.0
  %v1116 = vand.u32 %v1097, 2147483648
  %v1117 = vsel %vm1115, %v1116, %v1114
  %v1118 = vrsqrt.pop %v1098
  %v1119 = vmul.f32 %v1098, %v1118
  %vm1120 = vcmp.eq.f32.partialorder %v1098, inf
  %v1121 = vsel %vm1120, %v1098, %v1119
  %vm1122 = vcmp.eq.f32.partialorder %v1098, 0.0
  %v1123 = vand.u32 %v1098, 2147483648
  %v1124 = vsel %vm1122, %v1123, %v1121
  %v1125 = vrsqrt.pop %v1099
  %v1126 = vmul.f32 %v1099, %v1125
  %vm1127 = vcmp.eq.f32.partialorder %v1099, inf
  %v1128 = vsel %vm1127, %v1099, %v1126
  %vm1129 = vcmp.eq.f32.partialorder %v1099, 0.0
  %v1130 = vand.u32 %v1099, 2147483648
  %v1131 = vsel %vm1129, %v1130, %v1128
  %v1132 = vrsqrt.pop %v1100
  %v1133 = vmul.f32 %v1100, %v1132
  %vm1134 = vcmp.eq.f32.partialorder %v1100, inf
  %v1135 = vsel %vm1134, %v1100, %v1133
  %vm1136 = vcmp.eq.f32.partialorder %v1100, 0.0
  %v1137 = vand.u32 %v1100, 2147483648
  %v1138 = vsel %vm1136, %v1137, %v1135
  %v1139 = vrsqrt.pop %v1101
  %v1140 = vmul.f32 %v1101, %v1139
  %vm1141 = vcmp.eq.f32.partialorder %v1101, inf
  %v1142 = vsel %vm1141, %v1101, %v1140
  %vm1143 = vcmp.eq.f32.partialorder %v1101, 0.0
  %v1144 = vand.u32 %v1101, 2147483648
  %v1145 = vsel %vm1143, %v1144, %v1142
  %v1146 = vrsqrt.pop %v1102
  %v1147 = vmul.f32 %v1102, %v1146
  %vm1148 = vcmp.eq.f32.partialorder %v1102, inf
  %v1149 = vsel %vm1148, %v1102, %v1147
  %vm1150 = vcmp.eq.f32.partialorder %v1102, 0.0
  %v1151 = vand.u32 %v1102, 2147483648
  %v1152 = vsel %vm1150, %v1151, %v1149
  %v1153 = vrsqrt.pop %v1103
  %v1154 = vmul.f32 %v1103, %v1153
  %vm1155 = vcmp.eq.f32.partialorder %v1103, inf
  %v1156 = vsel %vm1155, %v1103, %v1154
  %vm1157 = vcmp.eq.f32.partialorder %v1103, 0.0
  %v1158 = vand.u32 %v1103, 2147483648
  %v1159 = vsel %vm1157, %v1158, %v1156
  %v1160 = vrsqrt.pop %v1104
  %v1161 = vmul.f32 %v1104, %v1160
  %vm1162 = vcmp.eq.f32.partialorder %v1104, inf
  %v1163 = vsel %vm1162, %v1104, %v1161
  %vm1164 = vcmp.eq.f32.partialorder %v1104, 0.0
  %v1165 = vand.u32 %v1104, 2147483648
  %v1166 = vsel %vm1164, %v1165, %v1163
  %v1167 = vrsqrt.pop %v1105
  %v1168 = vmul.f32 %v1105, %v1167
  %vm1169 = vcmp.eq.f32.partialorder %v1105, inf
  %v1170 = vsel %vm1169, %v1105, %v1168
  %vm1171 = vcmp.eq.f32.partialorder %v1105, 0.0
  %v1172 = vand.u32 %v1105, 2147483648
  %v1173 = vsel %vm1171, %v1172, %v1170
  %v1174 = vrsqrt.pop %v1106
  %v1175 = vmul.f32 %v1106, %v1174
  %vm1176 = vcmp.eq.f32.partialorder %v1106, inf
  %v1177 = vsel %vm1176, %v1106, %v1175
  %vm1178 = vcmp.eq.f32.partialorder %v1106, 0.0
  %v1179 = vand.u32 %v1106, 2147483648
  %v1180 = vsel %vm1178, %v1179, %v1177
  %v1181 = vrsqrt.pop %v1107
  %v1182 = vmul.f32 %v1107, %v1181
  %vm1183 = vcmp.eq.f32.partialorder %v1107, inf
  %v1184 = vsel %vm1183, %v1107, %v1182
  %vm1185 = vcmp.eq.f32.partialorder %v1107, 0.0
  %v1186 = vand.u32 %v1107, 2147483648
  %v1187 = vsel %vm1185, %v1186, %v1184
  %v1188 = vrsqrt.pop %v1108
  %v1189 = vmul.f32 %v1108, %v1188
  %vm1190 = vcmp.eq.f32.partialorder %v1108, inf
  %v1191 = vsel %vm1190, %v1108, %v1189
  %vm1192 = vcmp.eq.f32.partialorder %v1108, 0.0
  %v1193 = vand.u32 %v1108, 2147483648
  %v1194 = vsel %vm1192, %v1193, %v1191
  %v1195 = vrsqrt.pop %v1109
  %v1196 = vmul.f32 %v1109, %v1195
  %vm1197 = vcmp.eq.f32.partialorder %v1109, inf
  %v1198 = vsel %vm1197, %v1109, %v1196
  %vm1199 = vcmp.eq.f32.partialorder %v1109, 0.0
  %v1200 = vand.u32 %v1109, 2147483648
  %v1201 = vsel %vm1199, %v1200, %v1198
  %v1202 = vrsqrt.pop %v1110
  %v1203 = vmul.f32 %v1110, %v1202
  %vm1204 = vcmp.eq.f32.partialorder %v1110, inf
  %v1205 = vsel %vm1204, %v1110, %v1203
  %vm1206 = vcmp.eq.f32.partialorder %v1110, 0.0
  %v1207 = vand.u32 %v1110, 2147483648
  %v1208 = vsel %vm1206, %v1207, %v1205
  %vm1209 = vcmp.gt.f32.partialorder %v1117, 1.4141995
  %vm1210 = vcmp.gt.f32.partialorder %v1124, 1.4141995
  %vm1211 = vcmp.gt.f32.partialorder %v1131, 1.4141995
  %vm1212 = vcmp.gt.f32.partialorder %v1138, 1.4141995
  %vm1213 = vcmp.gt.f32.partialorder %v1145, 1.4141995
  %vm1214 = vcmp.gt.f32.partialorder %v1152, 1.4141995
  %vm1215 = vcmp.gt.f32.partialorder %v1159, 1.4141995
  %vm1216 = vcmp.gt.f32.partialorder %v1166, 1.4141995
  %vm1217 = vcmp.gt.f32.partialorder %v1173, 1.4141995
  %vm1218 = vcmp.gt.f32.partialorder %v1180, 1.4141995
  %vm1219 = vcmp.gt.f32.partialorder %v1187, 1.4141995
  %vm1220 = vcmp.gt.f32.partialorder %v1194, 1.4141995
  %vm1221 = vcmp.gt.f32.partialorder %v1201, 1.4141995
  %vm1222 = vcmp.gt.f32.partialorder %v1208, 1.4141995
  %v1223 = vrcp.pop %v1117
  %v1224 = vrcp.pop %v1124
  %v1225 = vrcp.pop %v1131
  %v1226 = vrcp.pop %v1138
  %v1227 = vrcp.pop %v1145
  %v1228 = vrcp.pop %v1152
  %v1229 = vrcp.pop %v1159
  %v1230 = vrcp.pop %v1166
  %v1231 = vrcp.pop %v1173
  %v1232 = vrcp.pop %v1180
  %v1233 = vrcp.pop %v1187
  %v1234 = vrcp.pop %v1194
  %v1235 = vrcp.pop %v1201
  %v1236 = vrcp.pop %v1208
  %v1237 = vmul.f32 %v1223, 1.4141995
  %v1238 = vmul.f32 %v1224, 1.4141995
  %v1239 = vmul.f32 %v1225, 1.4141995
  %v1240 = vmul.f32 %v1226, 1.4141995
  %v1241 = vmul.f32 %v1227, 1.4141995
  %v1242 = vmul.f32 %v1228, 1.4141995
  %v1243 = vmul.f32 %v1229, 1.4141995
  %v1244 = vmul.f32 %v1230, 1.4141995
  %v1245 = vmul.f32 %v1231, 1.4141995
  %v1246 = vmul.f32 %v1232, 1.4141995
  %v1247 = vmul.f32 %v1233, 1.4141995
  %v1248 = vmul.f32 %v1234, 1.4141995
  %v1249 = vmul.f32 %v1235, 1.4141995
  %v1250 = vmul.f32 %v1236, 1.4141995
  %v1251 = vmul.f32 %v1027, %v1237
  %v1252 = vmul.f32 %v1028, %v1238
  %v1253 = vmul.f32 %v1029, %v1239
  %v1254 = vmul.f32 %v1030, %v1240
  %v1255 = vmul.f32 %v1031, %v1241
  %v1256 = vmul.f32 %v1032, %v1242
  %v1257 = vmul.f32 %v1033, %v1243
  %v1258 = vmul.f32 %v1034, %v1244
  %v1259 = vmul.f32 %v1035, %v1245
  %v1260 = vmul.f32 %v1036, %v1246
  %v1261 = vmul.f32 %v1037, %v1247
  %v1262 = vmul.f32 %v1038, %v1248
  %v1263 = vmul.f32 %v1039, %v1249
  %v1264 = vmul.f32 %v1040, %v1250
  %v1265 = vsel %vm1209, 1, 0
  %v1266 = vsel %vm1210, 1, 0
  %v1267 = vsel %vm1211, 1, 0
  %v1268 = vsel %vm1212, 1, 0
  %v1269 = vsel %vm1213, 1, 0
  %v1270 = vsel %vm1214, 1, 0
  %v1271 = vsel %vm1215, 1, 0
  %v1272 = vsel %vm1216, 1, 0
  %v1273 = vsel %vm1217, 1, 0
  %v1274 = vsel %vm1218, 1, 0
  %v1275 = vsel %vm1219, 1, 0
  %v1276 = vsel %vm1220, 1, 0
  %v1277 = vsel %vm1221, 1, 0
  %v1278 = vsel %vm1222, 1, 0
  %vm1279 = vcmp.eq.s32.totalorder %v1265, 1
  %vm1280 = vcmp.eq.s32.totalorder %v1266, 1
  %vm1281 = vcmp.eq.s32.totalorder %v1267, 1
  %vm1282 = vcmp.eq.s32.totalorder %v1268, 1
  %vm1283 = vcmp.eq.s32.totalorder %v1269, 1
  %vm1284 = vcmp.eq.s32.totalorder %v1270, 1
  %vm1285 = vcmp.eq.s32.totalorder %v1271, 1
  %vm1286 = vcmp.eq.s32.totalorder %v1272, 1
  %vm1287 = vcmp.eq.s32.totalorder %v1273, 1
  %vm1288 = vcmp.eq.s32.totalorder %v1274, 1
  %vm1289 = vcmp.eq.s32.totalorder %v1275, 1
  %vm1290 = vcmp.eq.s32.totalorder %v1276, 1
  %vm1291 = vcmp.eq.s32.totalorder %v1277, 1
  %vm1292 = vcmp.eq.s32.totalorder %v1278, 1
  %v1293 = vsel %vm1279, %v1251, %v1027
  %v1294 = vsel %vm1280, %v1252, %v1028
  %v1295 = vsel %vm1281, %v1253, %v1029
  %v1296 = vsel %vm1282, %v1254, %v1030
  %v1297 = vsel %vm1283, %v1255, %v1031
  %v1298 = vsel %vm1284, %v1256, %v1032
  %v1299 = vsel %vm1285, %v1257, %v1033
  %v1300 = vsel %vm1286, %v1258, %v1034
  %v1301 = vsel %vm1287, %v1259, %v1035
  %v1302 = vsel %vm1288, %v1260, %v1036
  %v1303 = vsel %vm1289, %v1261, %v1037
  %v1304 = vsel %vm1290, %v1262, %v1038
  %v1305 = vsel %vm1291, %v1263, %v1039
  %v1306 = vsel %vm1292, %v1264, %v1040
  %1307 = vst.msk [vmem:[%s3] sm:$0xff] %vm42, %v1293
  %1308 = vst.msk [vmem:[%s3 + $0x8] sm:$0xff] %vm42, %v1294
  %1309 = vst.msk [vmem:[%s3 + $0x10] sm:$0xff] %vm42, %v1295
  %1310 = vst.msk [vmem:[%s3 + $0x18] sm:$0xff] %vm42, %v1296
  %1311 = vst.msk [vmem:[%s3 + $0x20] sm:$0xff] %vm42, %v1297
  %1312 = vst.msk [vmem:[%s3 + $0x28] sm:$0xff] %vm42, %v1298
  %1313 = vst.msk [vmem:[%s3 + $0x30] sm:$0xff] %vm42, %v1299
  %1314 = vst.msk [vmem:[%s3 + $0x38] sm:$0xff] %vm42, %v1300
  %1315 = vst.msk [vmem:[%s3 + $0x40] sm:$0xff] %vm42, %v1301
  %1316 = vst.msk [vmem:[%s3 + $0x48] sm:$0xff] %vm42, %v1302
  %1317 = vst.msk [vmem:[%s3 + $0x50] sm:$0xff] %vm42, %v1303
  %1318 = vst.msk [vmem:[%s3 + $0x58] sm:$0xff] %vm42, %v1304
  %1319 = vst.msk [vmem:[%s3 + $0x60] sm:$0xff] %vm42, %v1305
  %1320 = vst.msk [vmem:[%s3 + $0x68] sm:$0xff] %vm42, %v1306
  // Predicated region
  $region14: #{_forward_impl.8} parent=0 // pred_check
    _
  $region15: #{_forward_impl.8} parent=0 // pred_check_branch
    %1322 = sbr.rel (0) target = $region17
  $region16: #{_forward_impl.8} parent=0 // pred_region
    _
  $region17: #{_forward_impl.8} parent=0 // pred_fallthru
    _
  // Predicated region
  $region18: #{_forward_impl.8} parent=0 // pred_check
    _
  $region19: #{_forward_impl.8} parent=0 // pred_check_branch
    %1324 = sbr.rel (0) target = $region21
  $region20: #{_forward_impl.8} parent=0 // pred_region
    _
  $region21: #{_forward_impl.8} parent=0 // pred_fallthru
    _

// kernel: _forward_impl.11
$region0: #{_forward_impl.11}
  #allocation0 [shape = 'u32[]', space=smem, size = 0x4, offset = 0x4, fixed_abs, tag = 'smem constant byte address 0x4 - core index']
  #allocation1 [shape = 'u32[144,128]{1,0:T(1,128)}', space=vmem, size = 0x12000, scoped, tag = 'internal scratch']
  %s0 = inlined_call_operand.vmem [shape: f32[32,270], index: 0, kind: input, shape index: {}]
  %s1 = inlined_call_operand.vmem [shape: f32[32,270], index: 1, kind: input, shape index: {}]
  %s2 = inlined_call_operand.vmem [shape: f32[1,270], index: 2, kind: input, shape index: {}]
  %s3 = inlined_call_operand.vmem [shape: f32[1,270], index: 3, kind: output, shape index: {}]
  %s4 = sld [smem:[#allocation0]]
  $region22: #{_forward_impl.11} parent=0
    _
  %s6 = ssub.s32 1, %s4
  %s7 = scalar_select 0, %s6, %s4
  // Predicated region
  $region2: #{_forward_impl.11} parent=0 // pred_check
    _
  $region3: #{_forward_impl.11} parent=0 // pred_check_branch
    %9 = sbr.rel (0) target = $region5
  $region4: #{_forward_impl.11} parent=0 // pred_region
    _
  $region5: #{_forward_impl.11} parent=0 // pred_fallthru
    _
  // Predicated region
  $region6: #{_forward_impl.11} parent=0 // pred_check
    _
  $region7: #{_forward_impl.11} parent=0 // pred_check_branch
    %11 = sbr.rel (0) target = $region9
  $region8: #{_forward_impl.11} parent=0 // pred_region
    _
  $region9: #{_forward_impl.11} parent=0 // pred_fallthru
    _
  // Predicated region
  $region10: #{_forward_impl.11} parent=0 // pred_check
    _
  $region11: #{_forward_impl.11} parent=0 // pred_check_branch
    %13 = sbr.rel (0) target = $region13
  $region12: #{_forward_impl.11} parent=0 // pred_region
    _
  $region13: #{_forward_impl.11} parent=0 // pred_fallthru
    _
  %v14 = vld [vmem:[%s0] sm:$0xff]
  %v15 = vld [vmem:[%s0 + $0x8] sm:$0xff]
  %v16 = vld [vmem:[%s0 + $0x10] sm:$0xff]
  %v17 = vld [vmem:[%s0 + $0x18] sm:$0xff]
  %v18 = vld [vmem:[%s0 + $0x20] sm:$0xff]
  %v19 = vld [vmem:[%s0 + $0x28] sm:$0xff]
  %v20 = vld [vmem:[%s0 + $0x30] sm:$0xff]
  %v21 = vld [vmem:[%s0 + $0x38] sm:$0xff]
  %v22 = vld [vmem:[%s0 + $0x40] sm:$0xff]
  %v23 = vld [vmem:[%s0 + $0x48] sm:$0xff]
  %v24 = vld [vmem:[%s0 + $0x50] sm:$0xff]
  %v25 = vld [vmem:[%s0 + $0x58] sm:$0xff]
  %v26 = vld [vmem:[%s1] sm:$0xff]
  %v27 = vld [vmem:[%s1 + $0x8] sm:$0xff]
  %v28 = vld [vmem:[%s1 + $0x10] sm:$0xff]
  %v29 = vld [vmem:[%s1 + $0x18] sm:$0xff]
  %v30 = vld [vmem:[%s1 + $0x20] sm:$0xff]
  %v31 = vld [vmem:[%s1 + $0x28] sm:$0xff]
  %v32 = vld [vmem:[%s1 + $0x30] sm:$0xff]
  %v33 = vld [vmem:[%s1 + $0x38] sm:$0xff]
  %v34 = vld [vmem:[%s1 + $0x40] sm:$0xff]
  %v35 = vld [vmem:[%s1 + $0x48] sm:$0xff]
  %v36 = vld [vmem:[%s1 + $0x50] sm:$0xff]
  %v37 = vld [vmem:[%s1 + $0x58] sm:$0xff]
  %v38 = vld [vmem:[%s2] sm:$0x7]
  %v39 = vmul.f32 %v14, %v14
  %v40 = vmul.f32 %v15, %v15
  %v41 = vmul.f32 %v16, %v16
  %v42 = vmul.f32 %v17, %v17
  %v43 = vmul.f32 %v18, %v18
  %v44 = vmul.f32 %v19, %v19
  %v45 = vmul.f32 %v20, %v20
  %v46 = vmul.f32 %v21, %v21
  %v47 = vmul.f32 %v22, %v22
  %v48 = vmul.f32 %v23, %v23
  %v49 = vmul.f32 %v24, %v24
  %v50 = vmul.f32 %v25, %v25
  %v51 = vadd.f32 %v39, %v42
  %v52 = vadd.f32 %v51, %v45
  %v53 = vadd.f32 %v52, %v48
  %v54 = vrot.slane %v53, 4
  %v55 = vadd.f32 %v53, %v54
  %v56 = vrot.slane %v55, 2
  %v57 = vadd.f32 %v55, %v56
  %v58 = vrot.slane %v57, 1
  %v59 = vadd.f32 %v57, %v58
  %v60 = vadd.f32 %v40, %v43
  %v61 = vadd.f32 %v60, %v46
  %v62 = vadd.f32 %v61, %v49
  %v63 = vrot.slane %v62, 4
  %v64 = vadd.f32 %v62, %v63
  %v65 = vrot.slane %v64, 2
  %v66 = vadd.f32 %v64, %v65
  %v67 = vrot.slane %v66, 1
  %v68 = vadd.f32 %v66, %v67
  %vm69 = vcmask 113664
  %v70 = vsel %vm69, %v41, 0.0
  %v71 = vsel %vm69, %v44, 0.0
  %v72 = vadd.f32 %v70, %v71
  %v73 = vsel %vm69, %v47, 0.0
  %v74 = vadd.f32 %v72, %v73
  %v75 = vsel %vm69, %v50, 0.0
  %v76 = vadd.f32 %v74, %v75
  %v77 = vrot.slane %v76, 4
  %v78 = vadd.f32 %v76, %v77
  %v79 = vrot.slane %v78, 2
  %v80 = vadd.f32 %v78, %v79
  %v81 = vrot.slane %v80, 1
  %v82 = vadd.f32 %v80, %v81
  %v83 = vmul.f32 %v26, %v26
  %v84 = vmul.f32 %v27, %v27
  %v85 = vmul.f32 %v28, %v28
  %v86 = vmul.f32 %v29, %v29
  %v87 = vmul.f32 %v30, %v30
  %v88 = vmul.f32 %v31, %v31
  %v89 = vmul.f32 %v32, %v32
  %v90 = vmul.f32 %v33, %v33
  %v91 = vmul.f32 %v34, %v34
  %v92 = vmul.f32 %v35, %v35
  %v93 = vmul.f32 %v36, %v36
  %v94 = vmul.f32 %v37, %v37
  %v95 = vadd.f32 %v83, %v86
  %v96 = vadd.f32 %v95, %v89
  %v97 = vadd.f32 %v96, %v92
  %v98 = vrot.slane %v97, 4
  %v99 = vadd.f32 %v97, %v98
  %v100 = vrot.slane %v99, 2
  %v101 = vadd.f32 %v99, %v100
  %v102 = vrot.slane %v101, 1
  %v103 = vadd.f32 %v101, %v102
  %v104 = vadd.f32 %v84, %v87
  %v105 = vadd.f32 %v104, %v90
  %v106 = vadd.f32 %v105, %v93
  %v107 = vrot.slane %v106, 4
  %v108 = vadd.f32 %v106, %v107
  %v109 = vrot.slane %v108, 2
  %v110 = vadd.f32 %v108, %v109
  %v111 = vrot.slane %v110, 1
  %v112 = vadd.f32 %v110, %v111
  %v113 = vsel %vm69, %v85, 0.0
  %v114 = vsel %vm69, %v88, 0.0
  %v115 = vadd.f32 %v113, %v114
  %v116 = vsel %vm69, %v91, 0.0
  %v117 = vadd.f32 %v115, %v116
  %v118 = vsel %vm69, %v94, 0.0
  %v119 = vadd.f32 %v117, %v118
  %v120 = vrot.slane %v119, 4
  %v121 = vadd.f32 %v119, %v120
  %v122 = vrot.slane %v121, 2
  %v123 = vadd.f32 %v121, %v122
  %v124 = vrot.slane %v123, 1
  %v125 = vadd.f32 %v123, %v124
  %v126 = vsub.f32 %v14, %v26
  %v127 = vsub.f32 %v15, %v27
  %v128 = vsub.f32 %v16, %v28
  %v129 = vsub.f32 %v17, %v29
  %v130 = vsub.f32 %v18, %v30
  %v131 = vsub.f32 %v19, %v31
  %v132 = vsub.f32 %v20, %v32
  %v133 = vsub.f32 %v21, %v33
  %v134 = vsub.f32 %v22, %v34
  %v135 = vsub.f32 %v23, %v35
  %v136 = vsub.f32 %v24, %v36
  %v137 = vsub.f32 %v25, %v37
  %v138 = vmul.f32 %v126, %v126
  %v139 = vmul.f32 %v127, %v127
  %v140 = vmul.f32 %v128, %v128
  %v141 = vmul.f32 %v129, %v129
  %v142 = vmul.f32 %v130, %v130
  %v143 = vmul.f32 %v131, %v131
  %v144 = vmul.f32 %v132, %v132
  %v145 = vmul.f32 %v133, %v133
  %v146 = vmul.f32 %v134, %v134
  %v147 = vmul.f32 %v135, %v135
  %v148 = vmul.f32 %v136, %v136
  %v149 = vmul.f32 %v137, %v137
  %v150 = vadd.f32 %v138, %v141
  %v151 = vadd.f32 %v150, %v144
  %v152 = vadd.f32 %v151, %v147
  %v153 = vrot.slane %v152, 4
  %v154 = vadd.f32 %v152, %v153
  %v155 = vrot.slane %v154, 2
  %v156 = vadd.f32 %v154, %v155
  %v157 = vrot.slane %v156, 1
  %v158 = vadd.f32 %v156, %v157
  %v159 = vadd.f32 %v139, %v142
  %v160 = vadd.f32 %v159, %v145
  %v161 = vadd.f32 %v160, %v148
  %v162 = vrot.slane %v161, 4
  %v163 = vadd.f32 %v161, %v162
  %v164 = vrot.slane %v163, 2
  %v165 = vadd.f32 %v163, %v164
  %v166 = vrot.slane %v165, 1
  %v167 = vadd.f32 %v165, %v166
  %v168 = vsel %vm69, %v140, 0.0
  %v169 = vsel %vm69, %v143, 0.0
  %v170 = vadd.f32 %v168, %v169
  %v171 = vsel %vm69, %v146, 0.0
  %v172 = vadd.f32 %v170, %v171
  %v173 = vsel %vm69, %v149, 0.0
  %v174 = vadd.f32 %v172, %v173
  %v175 = vrot.slane %v174, 4
  %v176 = vadd.f32 %v174, %v175
  %v177 = vrot.slane %v176, 2
  %v178 = vadd.f32 %v176, %v177
  %v179 = vrot.slane %v178, 1
  %v180 = vadd.f32 %v178, %v179
  %v184 = vcombine.low %v59, %v68
  %v186 = vunpack.c.l.s4 1966171168
  %v187 = vunpack.c.0.s8 %v186
  %v188 = vlaneseq
  %v189 = vshrl.u32 %v188, 7
  %v190 = vsub.s32 %v187, %v189
  %v191 = vrot.slane %v184, %v190
  %v193 = vunpack.c.l.s4 1966171168
  %v194 = vunpack.c.0.s8 %v193
  %v195 = vlaneseq
  %v196 = vshrl.u32 %v195, 7
  %v197 = vsub.s32 %v194, %v196
  %v198 = vrot.slane %v82, %v197
  %v199 = vcombine.low %v191, %v198
  %v201 = vunpack.c.l.s4 1966171168
  %v202 = vunpack.c.0.s8 %v201
  %v203 = vlaneseq
  %v204 = vshrl.u32 %v203, 7
  %v205 = vsub.s32 %v202, %v204
  %v206 = vrot.slane %v199, %v205
  %v208 = vmul.f32 %v38, %v206
  %v209 = vsub.f32 1.0, %v208
  %v213 = vcombine.low %v103, %v112
  %v215 = vunpack.c.l.s4 1966171168
  %v216 = vunpack.c.0.s8 %v215
  %v217 = vlaneseq
  %v218 = vshrl.u32 %v217, 7
  %v219 = vsub.s32 %v216, %v218
  %v220 = vrot.slane %v213, %v219
  %v222 = vunpack.c.l.s4 1966171168
  %v223 = vunpack.c.0.s8 %v222
  %v224 = vlaneseq
  %v225 = vshrl.u32 %v224, 7
  %v226 = vsub.s32 %v223, %v225
  %v227 = vrot.slane %v125, %v226
  %v228 = vcombine.low %v220, %v227
  %v230 = vunpack.c.l.s4 1966171168
  %v231 = vunpack.c.0.s8 %v230
  %v232 = vlaneseq
  %v233 = vshrl.u32 %v232, 7
  %v234 = vsub.s32 %v231, %v233
  %v235 = vrot.slane %v228, %v234
  %v237 = vmul.f32 %v38, %v235
  %v238 = vsub.f32 1.0, %v237
  %v239 = vmul.f32 %v209, %v238
  %v240 = vmax.f32 %v239, 1e-07
  %v241 = vmul.f32 %v38, 2.0
  %v245 = vcombine.low %v158, %v167
  %v247 = vunpack.c.l.s4 1966171168
  %v248 = vunpack.c.0.s8 %v247
  %v249 = vlaneseq
  %v250 = vshrl.u32 %v249, 7
  %v251 = vsub.s32 %v248, %v250
  %v252 = vrot.slane %v245, %v251
  %v254 = vunpack.c.l.s4 1966171168
  %v255 = vunpack.c.0.s8 %v254
  %v256 = vlaneseq
  %v257 = vshrl.u32 %v256, 7
  %v258 = vsub.s32 %v255, %v257
  %v259 = vrot.slane %v180, %v258
  %v260 = vcombine.low %v252, %v259
  %v262 = vunpack.c.l.s4 1966171168
  %v263 = vunpack.c.0.s8 %v262
  %v264 = vlaneseq
  %v265 = vshrl.u32 %v264, 7
  %v266 = vsub.s32 %v263, %v265
  %v267 = vrot.slane %v260, %v266
  %v269 = vmul.f32 %v241, %v267
  %v270 = vrcp.pop %v240
  %v271 = vmul.f32 %v269, %v270
  %v272 = vmax.f32 %v271, 1e-07
  %v273 = vadd.f32 %v272, 2.0
  %v274 = vmul.f32 %v272, %v273
  %v275 = vrsqrt.pop %v274
  %v276 = vmul.f32 %v274, %v275
  %vm277 = vcmp.eq.f32.partialorder %v274, inf
  %v278 = vsel %vm277, %v274, %v276
  %vm279 = vcmp.eq.f32.partialorder %v274, 0.0
  %v280 = vand.u32 %v274, 2147483648
  %v281 = vsel %vm279, %v280, %v278
  %v282 = vadd.f32 %v272, %v281
  %v283 = vadd.f32 %v282, 1.0
  %v284 = vlog2.pop %v283
  %v285 = vmul.f32 %v284, 0.6931472
  %v286 = vmul.f32 -0.5, %v282
  %v287 = vadd.f32 %v286, 1.0
  %v288 = vmul.f32 %v287, %v282
  %v289 = vand.u32 2147483647, %v282
  %vm290 = vcmp.lt.f32.partialorder %v289, 0.0004427343
  %v291 = vsel %vm290, %v288, %v285
  %v292 = vmax.f32 %v38, 1e-07
  %v293 = vrsqrt.pop %v292
  %v294 = vmul.f32 %v291, %v293
  %v295 = vsub.f32 0.0, %v294
  %v296 = vxor.u32 %v295, 2147483648
  %v297 = vmul.f32 %v296, 1.442695
  %v298 = vpow.pop %v297
  %v299 = vadd.f32 %v298, 1.0
  %v300 = vrcp.pop %v299
  %v301 = vmul.f32 1.0, %v300
  %v302 = vmul.f32 %v301, 4.0
  %v303 = vlaneseq
  %vm304 = vcmp.ge.s32.totalorder %v303, 0
  %vm305 = vcmp.lt.s32.totalorder %v303, 270
  %vm306 = vmand %vm304, %vm305
  %307 = vst.msk [vmem:[%s3] sm:$0x7] %vm306, %v302
  // Predicated region
  $region14: #{_forward_impl.11} parent=0 // pred_check
    _
  $region15: #{_forward_impl.11} parent=0 // pred_check_branch
    %309 = sbr.rel (0) target = $region17
  $region16: #{_forward_impl.11} parent=0 // pred_region
    _
  $region17: #{_forward_impl.11} parent=0 // pred_fallthru
    _
  // Predicated region
  $region18: #{_forward_impl.11} parent=0 // pred_check
    _
  $region19: #{_forward_impl.11} parent=0 // pred_check_branch
    %311 = sbr.rel (0) target = $region21
  $region20: #{_forward_impl.11} parent=0 // pred_region
    _
  $region21: #{_forward_impl.11} parent=0 // pred_fallthru
    _

</llo_original>
